<compile_context>
chip_gen: v5e
topology: v5e:2x2
jax: 0.10.0
libtpu: 0.0.40
codegen_flags: <defaults>
</compile_context>

<pallas_src>
import math
import functools

import jax
import jax.numpy as jnp
from jax import lax
from jax.experimental import pallas as pl
from jax.experimental.pallas import tpu as pltpu


# ------------------------------ fused kernel -------------------------------

def decoder_kernel(emb_ref, pe_ref, mem_ref, tbias_ref, mbias_ref,
                   sa_wqkv_ref, sa_wo_ref, ca_wqkv_ref, ca_wo_ref,
                   ff_w1_ref, ff_w2_ref, vec_ref, qkvb_ref, ffb1_ref,
                   out_ref, ctx_ref, *, nhead, emb_scale):
    """One grid step == one decoder layer.  The residual stream lives in
    out_ref (same output block every step -> VMEM-resident accumulator)."""
    B, T, E = out_ref.shape
    S = mem_ref.shape[1]
    H = nhead
    dh = E // H
    inv_sqrt_dh = 1.0 / math.sqrt(dh)

    # grid step 0: token-embedding scale + positional encoding (fused here)
    @pl.when(pl.program_id(0) == 0)
    def _init():
        out_ref[...] = emb_ref[...] * emb_scale + pe_ref[...]

    x = out_ref[...]                        # (B, T, E) residual stream (f32)
    mem2d = mem_ref[...].reshape(B * S, E)  # (B*S, E)
    tbias = tbias_ref[...]                  # (T, T)   additive self-attn mask
    mbias = mbias_ref[...]                  # (B, 1, S) additive key-pad mask

    vecs = vec_ref[...]                     # (9, E) packed LN / bias vectors
    n1_w, n1_b = vecs[0:1], vecs[1:2]
    n2_w, n2_b = vecs[2:3], vecs[3:4]
    n3_w, n3_b = vecs[4:5], vecs[5:6]
    sa_bo, ca_bo, ff_b2 = vecs[6:7], vecs[7:8], vecs[8:9]
    sa_bqkv = qkvb_ref[0:1]                 # (1, 3E)
    ca_bqkv = qkvb_ref[1:2]                 # (1, 3E)
    ff_b1 = ffb1_ref[...]                   # (1, F)

    def layer_norm(v, w, b):
        mu = jnp.mean(v, axis=-1, keepdims=True)
        var = jnp.mean((v - mu) ** 2, axis=-1, keepdims=True)
        return (v - mu) * lax.rsqrt(var + 1e-5) * w + b

    def attention(q, k, v, wo, bo, bias):
        # q: (B, T, E); k, v: (B, S_kv, E); bias broadcastable to (B, T, S_kv)
        for h in range(H):                  # static unroll; heads batched over B
            sl = slice(h * dh, (h + 1) * dh)
            s = jnp.einsum("btd,bsd->bts", q[..., sl], k[..., sl],
                           preferred_element_type=jnp.float32) * inv_sqrt_dh
            s = s + bias
            s = s - jnp.max(s, axis=-1, keepdims=True)
            p = jnp.exp(s)
            p = p * pl.reciprocal(jnp.sum(p, axis=-1, keepdims=True), approx=False)
            ctx_ref[:, :, sl] = jnp.einsum("bts,bsd->btd", p, v[..., sl],
                                           preferred_element_type=jnp.float32)
        # single output projection over all heads
        o = jnp.dot(ctx_ref[...].reshape(B * T, E), wo,
                    preferred_element_type=jnp.float32) + bo
        return o.reshape(B, T, E)

    # --- self-attention block (pre-norm + residual), fused QKV matmul ---
    t2 = layer_norm(x, n1_w, n1_b)
    qkv = jnp.dot(t2.reshape(B * T, E), sa_wqkv_ref[...],
                  preferred_element_type=jnp.float32) + sa_bqkv      # (B*T, 3E)
    q = qkv[:, 0 * E:1 * E].reshape(B, T, E)
    k = qkv[:, 1 * E:2 * E].reshape(B, T, E)
    v = qkv[:, 2 * E:3 * E].reshape(B, T, E)
    x = x + attention(q, k, v, sa_wo_ref[...], sa_bo, tbias)

    # --- cross-attention block (keys/values from encoder memory) ---
    t2 = layer_norm(x, n2_w, n2_b)
    ca_wqkv = ca_wqkv_ref[...]
    q = (jnp.dot(t2.reshape(B * T, E), ca_wqkv[:, :E],
                 preferred_element_type=jnp.float32)
         + ca_bqkv[:, :E]).reshape(B, T, E)
    kv = jnp.dot(mem2d, ca_wqkv[:, E:],
                 preferred_element_type=jnp.float32) + ca_bqkv[:, E:]  # (B*S, 2E)
    k = kv[:, :E].reshape(B, S, E)
    v = kv[:, E:].reshape(B, S, E)
    x = x + attention(q, k, v, ca_wo_ref[...], ca_bo, mbias)

    # --- feed-forward block ---
    t2 = layer_norm(x, n3_w, n3_b)
    h1 = jnp.maximum(jnp.dot(t2.reshape(B * T, E), ff_w1_ref[...],
                             preferred_element_type=jnp.float32) + ff_b1, 0.0)
    ff = jnp.dot(h1, ff_w2_ref[...],
                 preferred_element_type=jnp.float32) + ff_b2
    x = x + ff.reshape(B, T, E)

    out_ref[...] = x.astype(out_ref.dtype)


# ----------------------------- wrappers -----------------------------------

PACKED_VEC_ORDER = ("n1_w", "n1_b", "n2_w", "n2_b", "n3_w", "n3_b",
                    "sa_bo", "ca_bo", "ff_b2")


def pack_layer_params(layers):
    """Stack per-layer params along a leading layer axis; fuse QKV weights and
    pack the tiny LayerNorm / bias vectors into a few slabs."""
    def stack(fn):
        return jnp.stack([fn(p) for p in layers], axis=0)

    return dict(
        sa_wqkv=stack(lambda p: jnp.concatenate(
            [p["sa_wq"], p["sa_wk"], p["sa_wv"]], axis=1)),       # (L, E, 3E)
        sa_wo=stack(lambda p: p["sa_wo"]),                        # (L, E, E)
        ca_wqkv=stack(lambda p: jnp.concatenate(
            [p["ca_wq"], p["ca_wk"], p["ca_wv"]], axis=1)),       # (L, E, 3E)
        ca_wo=stack(lambda p: p["ca_wo"]),                        # (L, E, E)
        ff_w1=stack(lambda p: p["ff_w1"]),                        # (L, E, F)
        ff_w2=stack(lambda p: p["ff_w2"]),                        # (L, F, E)
        vecs=stack(lambda p: jnp.concatenate(
            [p[n] for n in PACKED_VEC_ORDER], axis=0)),           # (L, 9, E)
        qkvb=stack(lambda p: jnp.concatenate([
            jnp.concatenate([p["sa_bq"], p["sa_bk"], p["sa_bv"]], axis=1),
            jnp.concatenate([p["ca_bq"], p["ca_bk"], p["ca_bv"]], axis=1)],
            axis=0)),                                             # (L, 2, 3E)
        ffb1=stack(lambda p: p["ff_b1"]),                         # (L, 1, F)
    )


def decoder_forward(tgt_ids, memory, tgt_bias, mem_bias, params, nhead):
    E = params["embedding"].shape[1]
    B, T = tgt_ids.shape
    S = memory.shape[1]
    L = len(params["layers"])
    F = params["layers"][0]["ff_w1"].shape[1]

    # token lookup is a gather (glue, left to XLA); everything else runs in
    # ONE fused Pallas kernel.
    emb = jnp.take(params["embedding"], tgt_ids, axis=0)          # (B, T, E)
    pe = params["pe"][:T]                                         # (T, E)
    packed = pack_layer_params(params["layers"])

    const3 = lambda l: (0, 0, 0)
    const2 = lambda l: (0, 0)
    per_layer = lambda l: (l, 0, 0)

    in_specs = [
        pl.BlockSpec((B, T, E), const3),              # emb
        pl.BlockSpec((T, E), const2),                 # pe
        pl.BlockSpec((B, S, E), const3),              # memory
        pl.BlockSpec((T, T), const2),                 # self-attn additive mask
        pl.BlockSpec((B, 1, S), const3),              # key-padding additive mask
        pl.BlockSpec((None, E, 3 * E), per_layer),    # sa_wqkv
        pl.BlockSpec((None, E, E), per_layer),        # sa_wo
        pl.BlockSpec((None, E, 3 * E), per_layer),    # ca_wqkv
        pl.BlockSpec((None, E, E), per_layer),        # ca_wo
        pl.BlockSpec((None, E, F), per_layer),        # ff_w1
        pl.BlockSpec((None, F, E), per_layer),        # ff_w2
        pl.BlockSpec((None, 9, E), per_layer),        # packed LN / bias vectors
        pl.BlockSpec((None, 2, 3 * E), per_layer),    # packed QKV biases
        pl.BlockSpec((None, 1, F), per_layer),        # ff bias 1
    ]

    return pl.pallas_call(
        functools.partial(decoder_kernel, nhead=nhead,
                          emb_scale=float(math.sqrt(E))),
        out_shape=jax.ShapeDtypeStruct((B, T, E), jnp.float32),
        grid=(L,),
        in_specs=in_specs,
        out_specs=pl.BlockSpec((B, T, E), const3),
        scratch_shapes=[pltpu.VMEM((B, T, E), jnp.float32)],      # head contexts
        compiler_params=pltpu.CompilerParams(
            dimension_semantics=("arbitrary",)),
    )(emb, pe, memory, tgt_bias, mem_bias,
      packed["sa_wqkv"], packed["sa_wo"], packed["ca_wqkv"], packed["ca_wo"],
      packed["ff_w1"], packed["ff_w2"], packed["vecs"], packed["qkvb"],
      packed["ffb1"])


# ------------------------- deterministic parameters -----------------------

def make_positional_encoding(maxlen, E):
    pos = jnp.arange(maxlen, dtype=jnp.float32)[:, None]
    div = jnp.exp(jnp.arange(0, E, 2, dtype=jnp.float32) * (-math.log(10000.0) / E))
    pe = jnp.zeros((maxlen, E), jnp.float32)
    pe = pe.at[:, 0::2].set(jnp.sin(pos * div))
    pe = pe.at[:, 1::2].set(jnp.cos(pos * div))
    return pe


def init_layer_params(key, E, F):
    ks = iter(jax.random.split(key, 16))

    def lin(shape, fan_in):
        return jax.random.normal(next(ks), shape, jnp.float32) / math.sqrt(fan_in)

    p = {}
    for n in ("n1", "n2", "n3"):
        p[n + "_w"] = jnp.ones((1, E), jnp.float32)
        p[n + "_b"] = jnp.zeros((1, E), jnp.float32)
    for pre in ("sa", "ca"):
        p[pre + "_wq"] = lin((E, E), E)
        p[pre + "_wk"] = lin((E, E), E)
        p[pre + "_wv"] = lin((E, E), E)
        p[pre + "_bq"] = jnp.zeros((1, E), jnp.float32)
        p[pre + "_bk"] = jnp.zeros((1, E), jnp.float32)
        p[pre + "_bv"] = jnp.zeros((1, E), jnp.float32)
        p[pre + "_wo"] = lin((E, E), E)
        p[pre + "_bo"] = jnp.zeros((1, E), jnp.float32)
    p["ff_w1"] = lin((E, F), E)
    p["ff_b1"] = jnp.zeros((1, F), jnp.float32)
    p["ff_w2"] = lin((F, E), F)
    p["ff_b2"] = jnp.zeros((1, E), jnp.float32)
    return p


def init_params(key, vocab, num_layers, E, F, max_length):
    keys = jax.random.split(key, num_layers + 1)
    return {
        "embedding": jax.random.normal(keys[0], (vocab, E), jnp.float32),
        "pe": make_positional_encoding(max_length, E),
        "layers": [init_layer_params(keys[i + 1], E, F) for i in range(num_layers)],
    }


# ----------------------------- pure-JAX reference -------------------------

def _ref_ln(x, w, b):
    mu = jnp.mean(x, axis=-1, keepdims=True)
    var = jnp.mean((x - mu) ** 2, axis=-1, keepdims=True)
    return (x - mu) / jnp.sqrt(var + 1e-5) * w + b


def _ref_mha(q_in, kv_in, p, pre, bias, nhead):
    hp = lax.Precision.HIGHEST
    E = q_in.shape[-1]
    dh = E // nhead
    scale = 1.0 / math.sqrt(dh)
    q = jnp.einsum("bte,ef->btf", q_in, p[pre + "_wq"], precision=hp) + p[pre + "_bq"]
    k = jnp.einsum("bse,ef->bsf", kv_in, p[pre + "_wk"], precision=hp) + p[pre + "_bk"]
    v = jnp.einsum("bse,ef->bsf", kv_in, p[pre + "_wv"], precision=hp) + p[pre + "_bv"]
    out = jnp.zeros(q_in.shape[:-1] + (E,), jnp.float32)
    for h in range(nhead):
        sl = slice(h * dh, (h + 1) * dh)
        s = jnp.einsum("btd,bsd->bts", q[..., sl], k[..., sl], precision=hp) * scale + bias
        pr = jax.nn.softmax(s, axis=-1)
        ctx = jnp.einsum("bts,bsd->btd", pr, v[..., sl], precision=hp)
        out = out + jnp.einsum("btd,de->bte", ctx, p[pre + "_wo"][sl, :], precision=hp)
    return out + p[pre + "_bo"]


def _ref_layer(x, mem, tbias, mbias, p, nhead):
    hp = lax.Precision.HIGHEST
    t2 = _ref_ln(x, p["n1_w"], p["n1_b"])
    x = x + _ref_mha(t2, t2, p, "sa", tbias, nhead)
    t2 = _ref_ln(x, p["n2_w"], p["n2_b"])
    x = x + _ref_mha(t2, mem, p, "ca", mbias, nhead)
    t2 = _ref_ln(x, p["n3_w"], p["n3_b"])
    h = jnp.maximum(jnp.einsum("bte,ef->btf", t2, p["ff_w1"], precision=hp) + p["ff_b1"], 0.0)
    return x + jnp.einsum("btf,fe->bte", h, p["ff_w2"], precision=hp) + p["ff_b2"]


def ref_forward(tgt_ids, memory, tgt_bias, mem_bias, params, nhead):
    E = params["embedding"].shape[1]
    T = tgt_ids.shape[1]
    x = jnp.take(params["embedding"], tgt_ids, axis=0) * math.sqrt(E) + params["pe"][:T]
    for lp in params["layers"]:
        x = _ref_layer(x, memory, tgt_bias, mem_bias, lp, nhead)
    return x


# --------------------------------- main ------------------------------------

if __name__ == "__main__":
    # Decoder(tgt_vocab_size=50, num_layers=2, emb_size=32, nhead=4,
    #         dim_feedforward=64, dropout=0.0, max_length=64)
    vocab, num_layers, E, nhead, F, max_length = 50, 2, 32, 4, 64, 64
    B, T, S = 2, 8, 8

    root = jax.random.PRNGKey(0)
    k_par, k_ids, k_mem = jax.random.split(root, 3)

    params = init_params(k_par, vocab, num_layers, E, F, max_length)
    tgt_ids = jax.random.randint(k_ids, (B, T), 0, vocab, dtype=jnp.int32)
    memory = jax.random.normal(k_mem, (B, S, E), jnp.float32)

    # causal additive attn_mask (T,T) and key_padding_mask -> additive (B,1,S)
    causal = jnp.tril(jnp.ones((T, T), dtype=bool))
    tgt_bias = jnp.where(causal, 0.0, -1e9).astype(jnp.float32)
    key_padding = jnp.zeros((B, S), dtype=bool).at[1, S - 2:].set(True)
    mem_bias = jnp.where(key_padding, -1e9, 0.0).astype(jnp.float32)[:, None, :]

    out = decoder_forward(tgt_ids, memory, tgt_bias, mem_bias, params, nhead)
    out = jax.block_until_ready(out)

    ref = ref_forward(tgt_ids, memory, tgt_bias, mem_bias, params, nhead)
    err = float(jnp.max(jnp.abs(out - ref)))
    if err > 1e-2:
        raise AssertionError(f"kernel/reference mismatch: max abs err {err}")

    print("KERNEL_OK")
</pallas_src>

<mosaic_0001>
module attributes {stable_mosaic.version = 11 : i64} {
  func.func @decoder_kernel(%arg0: i32, %arg1: memref<2x8x32xf32, #tpu.memory_space<vmem>>, %arg2: memref<8x32xf32, #tpu.memory_space<vmem>>, %arg3: memref<2x8x32xf32, #tpu.memory_space<vmem>>, %arg4: memref<8x8xf32, #tpu.memory_space<vmem>>, %arg5: memref<2x1x8xf32, #tpu.memory_space<vmem>>, %arg6: memref<1x32x96xf32, #tpu.memory_space<vmem>>, %arg7: memref<1x32x32xf32, #tpu.memory_space<vmem>>, %arg8: memref<1x32x96xf32, #tpu.memory_space<vmem>>, %arg9: memref<1x32x32xf32, #tpu.memory_space<vmem>>, %arg10: memref<1x32x64xf32, #tpu.memory_space<vmem>>, %arg11: memref<1x64x32xf32, #tpu.memory_space<vmem>>, %arg12: memref<1x9x32xf32, #tpu.memory_space<vmem>>, %arg13: memref<1x2x96xf32, #tpu.memory_space<vmem>>, %arg14: memref<1x1x64xf32, #tpu.memory_space<vmem>>, %arg15: memref<2x8x32xf32, #tpu.memory_space<vmem>>, %arg16: memref<2x8x32xf32, #tpu.memory_space<vmem>>) attributes {dimension_semantics = [#tpu.dimension_semantics<arbitrary>], iteration_bounds = array<i64: 2>, scalar_prefetch = 0 : i64, scratch_operands = 1 : i64, tpu.core_type = #tpu.core_type<tc>, window_params = [{pipeline_mode = #tpu.pipeline_mode<synchronous>, transform_indices = @transform_0, window_bounds = array<i64: 2, 8, 32>}, {pipeline_mode = #tpu.pipeline_mode<synchronous>, transform_indices = @transform_1, window_bounds = array<i64: 8, 32>}, {pipeline_mode = #tpu.pipeline_mode<synchronous>, transform_indices = @transform_2, window_bounds = array<i64: 2, 8, 32>}, {pipeline_mode = #tpu.pipeline_mode<synchronous>, transform_indices = @transform_3, window_bounds = array<i64: 8, 8>}, {pipeline_mode = #tpu.pipeline_mode<synchronous>, transform_indices = @transform_4, window_bounds = array<i64: 2, 1, 8>}, {transform_indices = @transform_5, window_bounds = array<i64: 1, 32, 96>}, {transform_indices = @transform_6, window_bounds = array<i64: 1, 32, 32>}, {transform_indices = @transform_7, window_bounds = array<i64: 1, 32, 96>}, {transform_indices = @transform_8, window_bounds = array<i64: 1, 32, 32>}, {transform_indices = @transform_9, window_bounds = array<i64: 1, 32, 64>}, {transform_indices = @transform_10, window_bounds = array<i64: 1, 64, 32>}, {transform_indices = @transform_11, window_bounds = array<i64: 1, 9, 32>}, {transform_indices = @transform_12, window_bounds = array<i64: 1, 2, 96>}, {transform_indices = @transform_13, window_bounds = array<i64: 1, 1, 64>}, {pipeline_mode = #tpu.pipeline_mode<synchronous>, transform_indices = @transform_14, window_bounds = array<i64: 2, 8, 32>}]} {
    %c0_i32 = arith.constant 0 : i32
    %0 = arith.cmpi eq, %arg0, %c0_i32 : i32
    %1 = arith.extui %0 : i1 to i32
    %c0_i32_0 = arith.constant 0 : i32
    %2 = arith.cmpi ne, %1, %c0_i32_0 : i32
    scf.if %2 {
      %c0_132 = arith.constant 0 : index
      %c0_133 = arith.constant 0 : index
      %c0_134 = arith.constant 0 : index
      %325 = vector.load %arg1[%c0_132, %c0_133, %c0_134] : memref<2x8x32xf32, #tpu.memory_space<vmem>>, vector<2x8x32xf32>
      %cst_135 = arith.constant 5.65685415 : f32
      %326 = vector.broadcast %cst_135 : f32 to vector<2x8x32xf32>
      %327 = arith.mulf %325, %326 : vector<2x8x32xf32>
      %c0_136 = arith.constant 0 : index
      %c0_137 = arith.constant 0 : index
      %328 = vector.load %arg2[%c0_136, %c0_137] : memref<8x32xf32, #tpu.memory_space<vmem>>, vector<8x32xf32>
      %329 = vector.shape_cast %328 : vector<8x32xf32> to vector<1x8x32xf32>
      %330 = vector.broadcast %329 : vector<1x8x32xf32> to vector<2x8x32xf32>
      %331 = arith.addf %327, %330 : vector<2x8x32xf32>
      %c0_138 = arith.constant 0 : index
      %c0_139 = arith.constant 0 : index
      %c0_140 = arith.constant 0 : index
      %332 = vector.load %arg15[%c0_138, %c0_139, %c0_140] : memref<2x8x32xf32, #tpu.memory_space<vmem>>, vector<2x8x32xf32>
      tpu.vector_store %arg15[%c0_138, %c0_139, %c0_140], %331 {strides = array<i32>} : memref<2x8x32xf32, #tpu.memory_space<vmem>>, vector<2x8x32xf32>,
    } else {
    }
    %c0 = arith.constant 0 : index
    %c0_1 = arith.constant 0 : index
    %c0_2 = arith.constant 0 : index
    %3 = vector.load %arg15[%c0, %c0_1, %c0_2] : memref<2x8x32xf32, #tpu.memory_space<vmem>>, vector<2x8x32xf32>
    %c0_3 = arith.constant 0 : index
    %c0_4 = arith.constant 0 : index
    %c0_5 = arith.constant 0 : index
    %4 = vector.load %arg3[%c0_3, %c0_4, %c0_5] : memref<2x8x32xf32, #tpu.memory_space<vmem>>, vector<2x8x32xf32>
    %5 = vector.shape_cast %4 : vector<2x8x32xf32> to vector<16x32xf32>
    %c0_6 = arith.constant 0 : index
    %c0_7 = arith.constant 0 : index
    %6 = vector.load %arg4[%c0_6, %c0_7] : memref<8x8xf32, #tpu.memory_space<vmem>>, vector<8x8xf32>
    %c0_8 = arith.constant 0 : index
    %c0_9 = arith.constant 0 : index
    %c0_10 = arith.constant 0 : index
    %7 = vector.load %arg5[%c0_8, %c0_9, %c0_10] : memref<2x1x8xf32, #tpu.memory_space<vmem>>, vector<2x1x8xf32>
    %c0_11 = arith.constant 0 : index
    %c0_12 = arith.constant 0 : index
    %c0_13 = arith.constant 0 : index
    %8 = vector.load %arg12[%c0_11, %c0_12, %c0_13] : memref<1x9x32xf32, #tpu.memory_space<vmem>>, vector<1x9x32xf32>
    %9 = vector.shape_cast %8 : vector<1x9x32xf32> to vector<9x32xf32>
    %10 = vector.extract_strided_slice %9 {offsets = [0, 0], sizes = [1, 32], strides = [1, 1]} : vector<9x32xf32> to vector<1x32xf32>
    %11 = vector.extract_strided_slice %9 {offsets = [1, 0], sizes = [1, 32], strides = [1, 1]} : vector<9x32xf32> to vector<1x32xf32>
    %12 = vector.extract_strided_slice %9 {offsets = [2, 0], sizes = [1, 32], strides = [1, 1]} : vector<9x32xf32> to vector<1x32xf32>
    %13 = vector.extract_strided_slice %9 {offsets = [3, 0], sizes = [1, 32], strides = [1, 1]} : vector<9x32xf32> to vector<1x32xf32>
    %14 = vector.extract_strided_slice %9 {offsets = [4, 0], sizes = [1, 32], strides = [1, 1]} : vector<9x32xf32> to vector<1x32xf32>
    %15 = vector.extract_strided_slice %9 {offsets = [5, 0], sizes = [1, 32], strides = [1, 1]} : vector<9x32xf32> to vector<1x32xf32>
    %16 = vector.extract_strided_slice %9 {offsets = [6, 0], sizes = [1, 32], strides = [1, 1]} : vector<9x32xf32> to vector<1x32xf32>
    %17 = vector.extract_strided_slice %9 {offsets = [7, 0], sizes = [1, 32], strides = [1, 1]} : vector<9x32xf32> to vector<1x32xf32>
    %18 = vector.extract_strided_slice %9 {offsets = [8, 0], sizes = [1, 32], strides = [1, 1]} : vector<9x32xf32> to vector<1x32xf32>
    %c0_14 = arith.constant 0 : index
    %c0_15 = arith.constant 0 : index
    %c0_16 = arith.constant 0 : index
    %19 = vector.load %arg13[%c0_14, %c0_15, %c0_16] : memref<1x2x96xf32, #tpu.memory_space<vmem>>, vector<1x1x96xf32>
    %20 = vector.shape_cast %19 : vector<1x1x96xf32> to vector<1x96xf32>
    %c0_17 = arith.constant 0 : index
    %c1 = arith.constant 1 : index
    %c0_18 = arith.constant 0 : index
    %21 = vector.load %arg13[%c0_17, %c1, %c0_18] : memref<1x2x96xf32, #tpu.memory_space<vmem>>, vector<1x1x96xf32>
    %22 = vector.shape_cast %21 : vector<1x1x96xf32> to vector<1x96xf32>
    %c0_19 = arith.constant 0 : index
    %c0_20 = arith.constant 0 : index
    %c0_21 = arith.constant 0 : index
    %23 = vector.load %arg14[%c0_19, %c0_20, %c0_21] : memref<1x1x64xf32, #tpu.memory_space<vmem>>, vector<1x1x64xf32>
    %24 = vector.shape_cast %23 : vector<1x1x64xf32> to vector<1x64xf32>
    %cst = arith.constant dense<0.000000e+00> : vector<2x8xf32>
    %25 = vector.multi_reduction <add>, %3, %cst [2] : vector<2x8x32xf32> to vector<2x8xf32>
    %26 = vector.shape_cast %25 : vector<2x8xf32> to vector<2x8x1xf32>
    %cst_22 = arith.constant 3.200000e+01 : f32
    %27 = vector.broadcast %cst_22 : f32 to vector<2x8x1xf32>
    %28 = arith.divf %26, %27 : vector<2x8x1xf32>
    %29 = vector.broadcast %28 : vector<2x8x1xf32> to vector<2x8x32xf32>
    %30 = arith.subf %3, %29 : vector<2x8x32xf32>
    %31 = arith.mulf %30, %30 : vector<2x8x32xf32>
    %cst_23 = arith.constant dense<0.000000e+00> : vector<2x8xf32>
    %32 = vector.multi_reduction <add>, %31, %cst_23 [2] : vector<2x8x32xf32> to vector<2x8xf32>
    %33 = vector.shape_cast %32 : vector<2x8xf32> to vector<2x8x1xf32>
    %cst_24 = arith.constant 3.200000e+01 : f32
    %34 = vector.broadcast %cst_24 : f32 to vector<2x8x1xf32>
    %35 = arith.divf %33, %34 : vector<2x8x1xf32>
    %36 = vector.broadcast %28 : vector<2x8x1xf32> to vector<2x8x32xf32>
    %37 = arith.subf %3, %36 : vector<2x8x32xf32>
    %cst_25 = arith.constant 9.99999974E-6 : f32
    %38 = vector.broadcast %cst_25 : f32 to vector<2x8x1xf32>
    %39 = arith.addf %35, %38 : vector<2x8x1xf32>
    %40 = math.rsqrt %39 : vector<2x8x1xf32>
    %41 = vector.broadcast %40 : vector<2x8x1xf32> to vector<2x8x32xf32>
    %42 = arith.mulf %37, %41 : vector<2x8x32xf32>
    %43 = vector.shape_cast %10 : vector<1x32xf32> to vector<1x1x32xf32>
    %44 = vector.broadcast %43 : vector<1x1x32xf32> to vector<2x8x32xf32>
    %45 = arith.mulf %42, %44 : vector<2x8x32xf32>
    %46 = vector.shape_cast %11 : vector<1x32xf32> to vector<1x1x32xf32>
    %47 = vector.broadcast %46 : vector<1x1x32xf32> to vector<2x8x32xf32>
    %48 = arith.addf %45, %47 : vector<2x8x32xf32>
    %49 = vector.shape_cast %48 : vector<2x8x32xf32> to vector<16x32xf32>
    %c0_26 = arith.constant 0 : index
    %c0_27 = arith.constant 0 : index
    %c0_28 = arith.constant 0 : index
    %50 = vector.load %arg6[%c0_26, %c0_27, %c0_28] : memref<1x32x96xf32, #tpu.memory_space<vmem>>, vector<1x32x96xf32>
    %51 = vector.shape_cast %50 : vector<1x32x96xf32> to vector<32x96xf32>
    %cst_29 = arith.constant dense<0.000000e+00> : vector<16x96xf32>
    %52 = tpu.matmul %49, %51, %cst_29 {dimension_numbers = #tpu.dot_dimension_numbers<[1], [0], [0], [1], [0, 0, 1, 1], [], []>} : vector<16x32xf32>, vector<32x96xf32>, vector<16x96xf32> -> vector<16x96xf32>
    %53 = vector.broadcast %20 : vector<1x96xf32> to vector<16x96xf32>
    %54 = arith.addf %52, %53 : vector<16x96xf32>
    %55 = vector.extract_strided_slice %54 {offsets = [0, 0], sizes = [16, 32], strides = [1, 1]} : vector<16x96xf32> to vector<16x32xf32>
    %56 = vector.shape_cast %55 : vector<16x32xf32> to vector<2x8x32xf32>
    %57 = vector.extract_strided_slice %54 {offsets = [0, 32], sizes = [16, 32], strides = [1, 1]} : vector<16x96xf32> to vector<16x32xf32>
    %58 = vector.shape_cast %57 : vector<16x32xf32> to vector<2x8x32xf32>
    %59 = vector.extract_strided_slice %54 {offsets = [0, 64], sizes = [16, 32], strides = [1, 1]} : vector<16x96xf32> to vector<16x32xf32>
    %60 = vector.shape_cast %59 : vector<16x32xf32> to vector<2x8x32xf32>
    %c0_30 = arith.constant 0 : index
    %c0_31 = arith.constant 0 : index
    %c0_32 = arith.constant 0 : index
    %61 = vector.load %arg7[%c0_30, %c0_31, %c0_32] : memref<1x32x32xf32, #tpu.memory_space<vmem>>, vector<1x32x32xf32>
    %62 = vector.shape_cast %61 : vector<1x32x32xf32> to vector<32x32xf32>
    %63 = vector.extract_strided_slice %56 {offsets = [0, 0, 0], sizes = [2, 8, 8], strides = [1, 1, 1]} : vector<2x8x32xf32> to vector<2x8x8xf32>
    %64 = vector.extract_strided_slice %58 {offsets = [0, 0, 0], sizes = [2, 8, 8], strides = [1, 1, 1]} : vector<2x8x32xf32> to vector<2x8x8xf32>
    "tpu.trace_start"() <{level = 10 : i32, message = "btd,bsd->bts"}> : () -> ()
    %cst_33 = arith.constant dense<0.000000e+00> : vector<2x8x8xf32>
    %65 = tpu.matmul %63, %64, %cst_33 {dimension_numbers = #tpu.dot_dimension_numbers<[2], [2], [1], [1], [0, 0, 0, 1, 1, 1], [0], [0]>} : vector<2x8x8xf32>, vector<2x8x8xf32>, vector<2x8x8xf32> -> vector<2x8x8xf32>
    "tpu.trace_stop"() : () -> ()
    %cst_34 = arith.constant 0.353553385 : f32
    %66 = vector.broadcast %cst_34 : f32 to vector<2x8x8xf32>
    %67 = arith.mulf %65, %66 : vector<2x8x8xf32>
    %68 = vector.shape_cast %6 : vector<8x8xf32> to vector<1x8x8xf32>
    %69 = vector.broadcast %68 : vector<1x8x8xf32> to vector<2x8x8xf32>
    %70 = arith.addf %67, %69 : vector<2x8x8xf32>
    %cst_35 = arith.constant dense<0xFF800000> : vector<2x8xf32>
    %71 = vector.multi_reduction <maximumf>, %70, %cst_35 [2] : vector<2x8x8xf32> to vector<2x8xf32>
    %72 = vector.shape_cast %71 : vector<2x8xf32> to vector<2x8x1xf32>
    %73 = vector.broadcast %72 : vector<2x8x1xf32> to vector<2x8x8xf32>
    %74 = arith.subf %70, %73 : vector<2x8x8xf32>
    %75 = math.exp %74 : vector<2x8x8xf32>
    %cst_36 = arith.constant dense<0.000000e+00> : vector<2x8xf32>
    %76 = vector.multi_reduction <add>, %75, %cst_36 [2] : vector<2x8x8xf32> to vector<2x8xf32>
    %77 = vector.shape_cast %76 : vector<2x8xf32> to vector<2x8x1xf32>
    %78 = tpu.reciprocal %77 : vector<2x8x1xf32> -> vector<2x8x1xf32>
    %79 = vector.broadcast %78 : vector<2x8x1xf32> to vector<2x8x8xf32>
    %80 = arith.mulf %75, %79 : vector<2x8x8xf32>
    %81 = vector.extract_strided_slice %60 {offsets = [0, 0, 0], sizes = [2, 8, 8], strides = [1, 1, 1]} : vector<2x8x32xf32> to vector<2x8x8xf32>
    "tpu.trace_start"() <{level = 10 : i32, message = "bts,bsd->btd"}> : () -> ()
    %cst_37 = arith.constant dense<0.000000e+00> : vector<2x8x8xf32>
    %82 = tpu.matmul %80, %81, %cst_37 {dimension_numbers = #tpu.dot_dimension_numbers<[2], [1], [1], [2], [0, 0, 0, 1, 1, 2], [0], [0]>} : vector<2x8x8xf32>, vector<2x8x8xf32>, vector<2x8x8xf32> -> vector<2x8x8xf32>
    "tpu.trace_stop"() : () -> ()
    %c0_38 = arith.constant 0 : index
    %c0_39 = arith.constant 0 : index
    %c0_40 = arith.constant 0 : index
    %83 = vector.load %arg16[%c0_38, %c0_39, %c0_40] : memref<2x8x32xf32, #tpu.memory_space<vmem>>, vector<2x8x8xf32>
    tpu.vector_store %arg16[%c0_38, %c0_39, %c0_40], %82 {strides = array<i32>} : memref<2x8x32xf32, #tpu.memory_space<vmem>>, vector<2x8x8xf32>,
    %84 = vector.extract_strided_slice %56 {offsets = [0, 0, 8], sizes = [2, 8, 8], strides = [1, 1, 1]} : vector<2x8x32xf32> to vector<2x8x8xf32>
    %85 = vector.extract_strided_slice %58 {offsets = [0, 0, 8], sizes = [2, 8, 8], strides = [1, 1, 1]} : vector<2x8x32xf32> to vector<2x8x8xf32>
    "tpu.trace_start"() <{level = 10 : i32, message = "btd,bsd->bts"}> : () -> ()
    %cst_41 = arith.constant dense<0.000000e+00> : vector<2x8x8xf32>
    %86 = tpu.matmul %84, %85, %cst_41 {dimension_numbers = #tpu.dot_dimension_numbers<[2], [2], [1], [1], [0, 0, 0, 1, 1, 1], [0], [0]>} : vector<2x8x8xf32>, vector<2x8x8xf32>, vector<2x8x8xf32> -> vector<2x8x8xf32>
    "tpu.trace_stop"() : () -> ()
    %cst_42 = arith.constant 0.353553385 : f32
    %87 = vector.broadcast %cst_42 : f32 to vector<2x8x8xf32>
    %88 = arith.mulf %86, %87 : vector<2x8x8xf32>
    %89 = vector.shape_cast %6 : vector<8x8xf32> to vector<1x8x8xf32>
    %90 = vector.broadcast %89 : vector<1x8x8xf32> to vector<2x8x8xf32>
    %91 = arith.addf %88, %90 : vector<2x8x8xf32>
    %cst_43 = arith.constant dense<0xFF800000> : vector<2x8xf32>
    %92 = vector.multi_reduction <maximumf>, %91, %cst_43 [2] : vector<2x8x8xf32> to vector<2x8xf32>
    %93 = vector.shape_cast %92 : vector<2x8xf32> to vector<2x8x1xf32>
    %94 = vector.broadcast %93 : vector<2x8x1xf32> to vector<2x8x8xf32>
    %95 = arith.subf %91, %94 : vector<2x8x8xf32>
    %96 = math.exp %95 : vector<2x8x8xf32>
    %cst_44 = arith.constant dense<0.000000e+00> : vector<2x8xf32>
    %97 = vector.multi_reduction <add>, %96, %cst_44 [2] : vector<2x8x8xf32> to vector<2x8xf32>
    %98 = vector.shape_cast %97 : vector<2x8xf32> to vector<2x8x1xf32>
    %99 = tpu.reciprocal %98 : vector<2x8x1xf32> -> vector<2x8x1xf32>
    %100 = vector.broadcast %99 : vector<2x8x1xf32> to vector<2x8x8xf32>
    %101 = arith.mulf %96, %100 : vector<2x8x8xf32>
    %102 = vector.extract_strided_slice %60 {offsets = [0, 0, 8], sizes = [2, 8, 8], strides = [1, 1, 1]} : vector<2x8x32xf32> to vector<2x8x8xf32>
    "tpu.trace_start"() <{level = 10 : i32, message = "bts,bsd->btd"}> : () -> ()
    %cst_45 = arith.constant dense<0.000000e+00> : vector<2x8x8xf32>
    %103 = tpu.matmul %101, %102, %cst_45 {dimension_numbers = #tpu.dot_dimension_numbers<[2], [1], [1], [2], [0, 0, 0, 1, 1, 2], [0], [0]>} : vector<2x8x8xf32>, vector<2x8x8xf32>, vector<2x8x8xf32> -> vector<2x8x8xf32>
    "tpu.trace_stop"() : () -> ()
    %c0_46 = arith.constant 0 : index
    %c0_47 = arith.constant 0 : index
    %c8 = arith.constant 8 : index
    %104 = vector.load %arg16[%c0_46, %c0_47, %c8] : memref<2x8x32xf32, #tpu.memory_space<vmem>>, vector<2x8x8xf32>
    tpu.vector_store %arg16[%c0_46, %c0_47, %c8], %103 {strides = array<i32>} : memref<2x8x32xf32, #tpu.memory_space<vmem>>, vector<2x8x8xf32>,
    %105 = vector.extract_strided_slice %56 {offsets = [0, 0, 16], sizes = [2, 8, 8], strides = [1, 1, 1]} : vector<2x8x32xf32> to vector<2x8x8xf32>
    %106 = vector.extract_strided_slice %58 {offsets = [0, 0, 16], sizes = [2, 8, 8], strides = [1, 1, 1]} : vector<2x8x32xf32> to vector<2x8x8xf32>
    "tpu.trace_start"() <{level = 10 : i32, message = "btd,bsd->bts"}> : () -> ()
    %cst_48 = arith.constant dense<0.000000e+00> : vector<2x8x8xf32>
    %107 = tpu.matmul %105, %106, %cst_48 {dimension_numbers = #tpu.dot_dimension_numbers<[2], [2], [1], [1], [0, 0, 0, 1, 1, 1], [0], [0]>} : vector<2x8x8xf32>, vector<2x8x8xf32>, vector<2x8x8xf32> -> vector<2x8x8xf32>
    "tpu.trace_stop"() : () -> ()
    %cst_49 = arith.constant 0.353553385 : f32
    %108 = vector.broadcast %cst_49 : f32 to vector<2x8x8xf32>
    %109 = arith.mulf %107, %108 : vector<2x8x8xf32>
    %110 = vector.shape_cast %6 : vector<8x8xf32> to vector<1x8x8xf32>
    %111 = vector.broadcast %110 : vector<1x8x8xf32> to vector<2x8x8xf32>
    %112 = arith.addf %109, %111 : vector<2x8x8xf32>
    %cst_50 = arith.constant dense<0xFF800000> : vector<2x8xf32>
    %113 = vector.multi_reduction <maximumf>, %112, %cst_50 [2] : vector<2x8x8xf32> to vector<2x8xf32>
    %114 = vector.shape_cast %113 : vector<2x8xf32> to vector<2x8x1xf32>
    %115 = vector.broadcast %114 : vector<2x8x1xf32> to vector<2x8x8xf32>
    %116 = arith.subf %112, %115 : vector<2x8x8xf32>
    %117 = math.exp %116 : vector<2x8x8xf32>
    %cst_51 = arith.constant dense<0.000000e+00> : vector<2x8xf32>
    %118 = vector.multi_reduction <add>, %117, %cst_51 [2] : vector<2x8x8xf32> to vector<2x8xf32>
    %119 = vector.shape_cast %118 : vector<2x8xf32> to vector<2x8x1xf32>
    %120 = tpu.reciprocal %119 : vector<2x8x1xf32> -> vector<2x8x1xf32>
    %121 = vector.broadcast %120 : vector<2x8x1xf32> to vector<2x8x8xf32>
    %122 = arith.mulf %117, %121 : vector<2x8x8xf32>
    %123 = vector.extract_strided_slice %60 {offsets = [0, 0, 16], sizes = [2, 8, 8], strides = [1, 1, 1]} : vector<2x8x32xf32> to vector<2x8x8xf32>
    "tpu.trace_start"() <{level = 10 : i32, message = "bts,bsd->btd"}> : () -> ()
    %cst_52 = arith.constant dense<0.000000e+00> : vector<2x8x8xf32>
    %124 = tpu.matmul %122, %123, %cst_52 {dimension_numbers = #tpu.dot_dimension_numbers<[2], [1], [1], [2], [0, 0, 0, 1, 1, 2], [0], [0]>} : vector<2x8x8xf32>, vector<2x8x8xf32>, vector<2x8x8xf32> -> vector<2x8x8xf32>
    "tpu.trace_stop"() : () -> ()
    %c0_53 = arith.constant 0 : index
    %c0_54 = arith.constant 0 : index
    %c16 = arith.constant 16 : index
    %125 = vector.load %arg16[%c0_53, %c0_54, %c16] : memref<2x8x32xf32, #tpu.memory_space<vmem>>, vector<2x8x8xf32>
    tpu.vector_store %arg16[%c0_53, %c0_54, %c16], %124 {strides = array<i32>} : memref<2x8x32xf32, #tpu.memory_space<vmem>>, vector<2x8x8xf32>,
    %126 = vector.extract_strided_slice %56 {offsets = [0, 0, 24], sizes = [2, 8, 8], strides = [1, 1, 1]} : vector<2x8x32xf32> to vector<2x8x8xf32>
    %127 = vector.extract_strided_slice %58 {offsets = [0, 0, 24], sizes = [2, 8, 8], strides = [1, 1, 1]} : vector<2x8x32xf32> to vector<2x8x8xf32>
    "tpu.trace_start"() <{level = 10 : i32, message = "btd,bsd->bts"}> : () -> ()
    %cst_55 = arith.constant dense<0.000000e+00> : vector<2x8x8xf32>
    %128 = tpu.matmul %126, %127, %cst_55 {dimension_numbers = #tpu.dot_dimension_numbers<[2], [2], [1], [1], [0, 0, 0, 1, 1, 1], [0], [0]>} : vector<2x8x8xf32>, vector<2x8x8xf32>, vector<2x8x8xf32> -> vector<2x8x8xf32>
    "tpu.trace_stop"() : () -> ()
    %cst_56 = arith.constant 0.353553385 : f32
    %129 = vector.broadcast %cst_56 : f32 to vector<2x8x8xf32>
    %130 = arith.mulf %128, %129 : vector<2x8x8xf32>
    %131 = vector.shape_cast %6 : vector<8x8xf32> to vector<1x8x8xf32>
    %132 = vector.broadcast %131 : vector<1x8x8xf32> to vector<2x8x8xf32>
    %133 = arith.addf %130, %132 : vector<2x8x8xf32>
    %cst_57 = arith.constant dense<0xFF800000> : vector<2x8xf32>
    %134 = vector.multi_reduction <maximumf>, %133, %cst_57 [2] : vector<2x8x8xf32> to vector<2x8xf32>
    %135 = vector.shape_cast %134 : vector<2x8xf32> to vector<2x8x1xf32>
    %136 = vector.broadcast %135 : vector<2x8x1xf32> to vector<2x8x8xf32>
    %137 = arith.subf %133, %136 : vector<2x8x8xf32>
    %138 = math.exp %137 : vector<2x8x8xf32>
    %cst_58 = arith.constant dense<0.000000e+00> : vector<2x8xf32>
    %139 = vector.multi_reduction <add>, %138, %cst_58 [2] : vector<2x8x8xf32> to vector<2x8xf32>
    %140 = vector.shape_cast %139 : vector<2x8xf32> to vector<2x8x1xf32>
    %141 = tpu.reciprocal %140 : vector<2x8x1xf32> -> vector<2x8x1xf32>
    %142 = vector.broadcast %141 : vector<2x8x1xf32> to vector<2x8x8xf32>
    %143 = arith.mulf %138, %142 : vector<2x8x8xf32>
    %144 = vector.extract_strided_slice %60 {offsets = [0, 0, 24], sizes = [2, 8, 8], strides = [1, 1, 1]} : vector<2x8x32xf32> to vector<2x8x8xf32>
    "tpu.trace_start"() <{level = 10 : i32, message = "bts,bsd->btd"}> : () -> ()
    %cst_59 = arith.constant dense<0.000000e+00> : vector<2x8x8xf32>
    %145 = tpu.matmul %143, %144, %cst_59 {dimension_numbers = #tpu.dot_dimension_numbers<[2], [1], [1], [2], [0, 0, 0, 1, 1, 2], [0], [0]>} : vector<2x8x8xf32>, vector<2x8x8xf32>, vector<2x8x8xf32> -> vector<2x8x8xf32>
    "tpu.trace_stop"() : () -> ()
    %c0_60 = arith.constant 0 : index
    %c0_61 = arith.constant 0 : index
    %c24 = arith.constant 24 : index
    %146 = vector.load %arg16[%c0_60, %c0_61, %c24] : memref<2x8x32xf32, #tpu.memory_space<vmem>>, vector<2x8x8xf32>
    tpu.vector_store %arg16[%c0_60, %c0_61, %c24], %145 {strides = array<i32>} : memref<2x8x32xf32, #tpu.memory_space<vmem>>, vector<2x8x8xf32>,
    %c0_62 = arith.constant 0 : index
    %c0_63 = arith.constant 0 : index
    %c0_64 = arith.constant 0 : index
    %147 = vector.load %arg16[%c0_62, %c0_63, %c0_64] : memref<2x8x32xf32, #tpu.memory_space<vmem>>, vector<2x8x32xf32>
    %148 = vector.shape_cast %147 : vector<2x8x32xf32> to vector<16x32xf32>
    %cst_65 = arith.constant dense<0.000000e+00> : vector<16x32xf32>
    %149 = tpu.matmul %148, %62, %cst_65 {dimension_numbers = #tpu.dot_dimension_numbers<[1], [0], [0], [1], [0, 0, 1, 1], [], []>} : vector<16x32xf32>, vector<32x32xf32>, vector<16x32xf32> -> vector<16x32xf32>
    %150 = vector.broadcast %16 : vector<1x32xf32> to vector<16x32xf32>
    %151 = arith.addf %149, %150 : vector<16x32xf32>
    %152 = vector.shape_cast %151 : vector<16x32xf32> to vector<2x8x32xf32>
    %153 = arith.addf %3, %152 : vector<2x8x32xf32>
    %cst_66 = arith.constant dense<0.000000e+00> : vector<2x8xf32>
    %154 = vector.multi_reduction <add>, %153, %cst_66 [2] : vector<2x8x32xf32> to vector<2x8xf32>
    %155 = vector.shape_cast %154 : vector<2x8xf32> to vector<2x8x1xf32>
    %cst_67 = arith.constant 3.200000e+01 : f32
    %156 = vector.broadcast %cst_67 : f32 to vector<2x8x1xf32>
    %157 = arith.divf %155, %156 : vector<2x8x1xf32>
    %158 = vector.broadcast %157 : vector<2x8x1xf32> to vector<2x8x32xf32>
    %159 = arith.subf %153, %158 : vector<2x8x32xf32>
    %160 = arith.mulf %159, %159 : vector<2x8x32xf32>
    %cst_68 = arith.constant dense<0.000000e+00> : vector<2x8xf32>
    %161 = vector.multi_reduction <add>, %160, %cst_68 [2] : vector<2x8x32xf32> to vector<2x8xf32>
    %162 = vector.shape_cast %161 : vector<2x8xf32> to vector<2x8x1xf32>
    %cst_69 = arith.constant 3.200000e+01 : f32
    %163 = vector.broadcast %cst_69 : f32 to vector<2x8x1xf32>
    %164 = arith.divf %162, %163 : vector<2x8x1xf32>
    %165 = vector.broadcast %157 : vector<2x8x1xf32> to vector<2x8x32xf32>
    %166 = arith.subf %153, %165 : vector<2x8x32xf32>
    %cst_70 = arith.constant 9.99999974E-6 : f32
    %167 = vector.broadcast %cst_70 : f32 to vector<2x8x1xf32>
    %168 = arith.addf %164, %167 : vector<2x8x1xf32>
    %169 = math.rsqrt %168 : vector<2x8x1xf32>
    %170 = vector.broadcast %169 : vector<2x8x1xf32> to vector<2x8x32xf32>
    %171 = arith.mulf %166, %170 : vector<2x8x32xf32>
    %172 = vector.shape_cast %12 : vector<1x32xf32> to vector<1x1x32xf32>
    %173 = vector.broadcast %172 : vector<1x1x32xf32> to vector<2x8x32xf32>
    %174 = arith.mulf %171, %173 : vector<2x8x32xf32>
    %175 = vector.shape_cast %13 : vector<1x32xf32> to vector<1x1x32xf32>
    %176 = vector.broadcast %175 : vector<1x1x32xf32> to vector<2x8x32xf32>
    %177 = arith.addf %174, %176 : vector<2x8x32xf32>
    %c0_71 = arith.constant 0 : index
    %c0_72 = arith.constant 0 : index
    %c0_73 = arith.constant 0 : index
    %178 = vector.load %arg8[%c0_71, %c0_72, %c0_73] : memref<1x32x96xf32, #tpu.memory_space<vmem>>, vector<1x32x96xf32>
    %179 = vector.shape_cast %178 : vector<1x32x96xf32> to vector<32x96xf32>
    %180 = vector.shape_cast %177 : vector<2x8x32xf32> to vector<16x32xf32>
    %181 = vector.extract_strided_slice %179 {offsets = [0, 0], sizes = [32, 32], strides = [1, 1]} : vector<32x96xf32> to vector<32x32xf32>
    %cst_74 = arith.constant dense<0.000000e+00> : vector<16x32xf32>
    %182 = tpu.matmul %180, %181, %cst_74 {dimension_numbers = #tpu.dot_dimension_numbers<[1], [0], [0], [1], [0, 0, 1, 1], [], []>} : vector<16x32xf32>, vector<32x32xf32>, vector<16x32xf32> -> vector<16x32xf32>
    %183 = vector.extract_strided_slice %22 {offsets = [0, 0], sizes = [1, 32], strides = [1, 1]} : vector<1x96xf32> to vector<1x32xf32>
    %184 = vector.broadcast %183 : vector<1x32xf32> to vector<16x32xf32>
    %185 = arith.addf %182, %184 : vector<16x32xf32>
    %186 = vector.shape_cast %185 : vector<16x32xf32> to vector<2x8x32xf32>
    %187 = vector.extract_strided_slice %179 {offsets = [0, 32], sizes = [32, 64], strides = [1, 1]} : vector<32x96xf32> to vector<32x64xf32>
    %cst_75 = arith.constant dense<0.000000e+00> : vector<16x64xf32>
    %188 = tpu.matmul %5, %187, %cst_75 {dimension_numbers = #tpu.dot_dimension_numbers<[1], [0], [0], [1], [0, 0, 1, 1], [], []>} : vector<16x32xf32>, vector<32x64xf32>, vector<16x64xf32> -> vector<16x64xf32>
    %189 = vector.extract_strided_slice %22 {offsets = [0, 32], sizes = [1, 64], strides = [1, 1]} : vector<1x96xf32> to vector<1x64xf32>
    %190 = vector.broadcast %189 : vector<1x64xf32> to vector<16x64xf32>
    %191 = arith.addf %188, %190 : vector<16x64xf32>
    %192 = vector.extract_strided_slice %191 {offsets = [0, 0], sizes = [16, 32], strides = [1, 1]} : vector<16x64xf32> to vector<16x32xf32>
    %193 = vector.shape_cast %192 : vector<16x32xf32> to vector<2x8x32xf32>
    %194 = vector.extract_strided_slice %191 {offsets = [0, 32], sizes = [16, 32], strides = [1, 1]} : vector<16x64xf32> to vector<16x32xf32>
    %195 = vector.shape_cast %194 : vector<16x32xf32> to vector<2x8x32xf32>
    %c0_76 = arith.constant 0 : index
    %c0_77 = arith.constant 0 : index
    %c0_78 = arith.constant 0 : index
    %196 = vector.load %arg9[%c0_76, %c0_77, %c0_78] : memref<1x32x32xf32, #tpu.memory_space<vmem>>, vector<1x32x32xf32>
    %197 = vector.shape_cast %196 : vector<1x32x32xf32> to vector<32x32xf32>
    %198 = vector.extract_strided_slice %186 {offsets = [0, 0, 0], sizes = [2, 8, 8], strides = [1, 1, 1]} : vector<2x8x32xf32> to vector<2x8x8xf32>
    %199 = vector.extract_strided_slice %193 {offsets = [0, 0, 0], sizes = [2, 8, 8], strides = [1, 1, 1]} : vector<2x8x32xf32> to vector<2x8x8xf32>
    "tpu.trace_start"() <{level = 10 : i32, message = "btd,bsd->bts"}> : () -> ()
    %cst_79 = arith.constant dense<0.000000e+00> : vector<2x8x8xf32>
    %200 = tpu.matmul %198, %199, %cst_79 {dimension_numbers = #tpu.dot_dimension_numbers<[2], [2], [1], [1], [0, 0, 0, 1, 1, 1], [0], [0]>} : vector<2x8x8xf32>, vector<2x8x8xf32>, vector<2x8x8xf32> -> vector<2x8x8xf32>
    "tpu.trace_stop"() : () -> ()
    %cst_80 = arith.constant 0.353553385 : f32
    %201 = vector.broadcast %cst_80 : f32 to vector<2x8x8xf32>
    %202 = arith.mulf %200, %201 : vector<2x8x8xf32>
    %203 = vector.broadcast %7 : vector<2x1x8xf32> to vector<2x8x8xf32>
    %204 = arith.addf %202, %203 : vector<2x8x8xf32>
    %cst_81 = arith.constant dense<0xFF800000> : vector<2x8xf32>
    %205 = vector.multi_reduction <maximumf>, %204, %cst_81 [2] : vector<2x8x8xf32> to vector<2x8xf32>
    %206 = vector.shape_cast %205 : vector<2x8xf32> to vector<2x8x1xf32>
    %207 = vector.broadcast %206 : vector<2x8x1xf32> to vector<2x8x8xf32>
    %208 = arith.subf %204, %207 : vector<2x8x8xf32>
    %209 = math.exp %208 : vector<2x8x8xf32>
    %cst_82 = arith.constant dense<0.000000e+00> : vector<2x8xf32>
    %210 = vector.multi_reduction <add>, %209, %cst_82 [2] : vector<2x8x8xf32> to vector<2x8xf32>
    %211 = vector.shape_cast %210 : vector<2x8xf32> to vector<2x8x1xf32>
    %212 = tpu.reciprocal %211 : vector<2x8x1xf32> -> vector<2x8x1xf32>
    %213 = vector.broadcast %212 : vector<2x8x1xf32> to vector<2x8x8xf32>
    %214 = arith.mulf %209, %213 : vector<2x8x8xf32>
    %215 = vector.extract_strided_slice %195 {offsets = [0, 0, 0], sizes = [2, 8, 8], strides = [1, 1, 1]} : vector<2x8x32xf32> to vector<2x8x8xf32>
    "tpu.trace_start"() <{level = 10 : i32, message = "bts,bsd->btd"}> : () -> ()
    %cst_83 = arith.constant dense<0.000000e+00> : vector<2x8x8xf32>
    %216 = tpu.matmul %214, %215, %cst_83 {dimension_numbers = #tpu.dot_dimension_numbers<[2], [1], [1], [2], [0, 0, 0, 1, 1, 2], [0], [0]>} : vector<2x8x8xf32>, vector<2x8x8xf32>, vector<2x8x8xf32> -> vector<2x8x8xf32>
    "tpu.trace_stop"() : () -> ()
    %c0_84 = arith.constant 0 : index
    %c0_85 = arith.constant 0 : index
    %c0_86 = arith.constant 0 : index
    %217 = vector.load %arg16[%c0_84, %c0_85, %c0_86] : memref<2x8x32xf32, #tpu.memory_space<vmem>>, vector<2x8x8xf32>
    tpu.vector_store %arg16[%c0_84, %c0_85, %c0_86], %216 {strides = array<i32>} : memref<2x8x32xf32, #tpu.memory_space<vmem>>, vector<2x8x8xf32>,
    %218 = vector.extract_strided_slice %186 {offsets = [0, 0, 8], sizes = [2, 8, 8], strides = [1, 1, 1]} : vector<2x8x32xf32> to vector<2x8x8xf32>
    %219 = vector.extract_strided_slice %193 {offsets = [0, 0, 8], sizes = [2, 8, 8], strides = [1, 1, 1]} : vector<2x8x32xf32> to vector<2x8x8xf32>
    "tpu.trace_start"() <{level = 10 : i32, message = "btd,bsd->bts"}> : () -> ()
    %cst_87 = arith.constant dense<0.000000e+00> : vector<2x8x8xf32>
    %220 = tpu.matmul %218, %219, %cst_87 {dimension_numbers = #tpu.dot_dimension_numbers<[2], [2], [1], [1], [0, 0, 0, 1, 1, 1], [0], [0]>} : vector<2x8x8xf32>, vector<2x8x8xf32>, vector<2x8x8xf32> -> vector<2x8x8xf32>
    "tpu.trace_stop"() : () -> ()
    %cst_88 = arith.constant 0.353553385 : f32
    %221 = vector.broadcast %cst_88 : f32 to vector<2x8x8xf32>
    %222 = arith.mulf %220, %221 : vector<2x8x8xf32>
    %223 = vector.broadcast %7 : vector<2x1x8xf32> to vector<2x8x8xf32>
    %224 = arith.addf %222, %223 : vector<2x8x8xf32>
    %cst_89 = arith.constant dense<0xFF800000> : vector<2x8xf32>
    %225 = vector.multi_reduction <maximumf>, %224, %cst_89 [2] : vector<2x8x8xf32> to vector<2x8xf32>
    %226 = vector.shape_cast %225 : vector<2x8xf32> to vector<2x8x1xf32>
    %227 = vector.broadcast %226 : vector<2x8x1xf32> to vector<2x8x8xf32>
    %228 = arith.subf %224, %227 : vector<2x8x8xf32>
    %229 = math.exp %228 : vector<2x8x8xf32>
    %cst_90 = arith.constant dense<0.000000e+00> : vector<2x8xf32>
    %230 = vector.multi_reduction <add>, %229, %cst_90 [2] : vector<2x8x8xf32> to vector<2x8xf32>
    %231 = vector.shape_cast %230 : vector<2x8xf32> to vector<2x8x1xf32>
    %232 = tpu.reciprocal %231 : vector<2x8x1xf32> -> vector<2x8x1xf32>
    %233 = vector.broadcast %232 : vector<2x8x1xf32> to vector<2x8x8xf32>
    %234 = arith.mulf %229, %233 : vector<2x8x8xf32>
    %235 = vector.extract_strided_slice %195 {offsets = [0, 0, 8], sizes = [2, 8, 8], strides = [1, 1, 1]} : vector<2x8x32xf32> to vector<2x8x8xf32>
    "tpu.trace_start"() <{level = 10 : i32, message = "bts,bsd->btd"}> : () -> ()
    %cst_91 = arith.constant dense<0.000000e+00> : vector<2x8x8xf32>
    %236 = tpu.matmul %234, %235, %cst_91 {dimension_numbers = #tpu.dot_dimension_numbers<[2], [1], [1], [2], [0, 0, 0, 1, 1, 2], [0], [0]>} : vector<2x8x8xf32>, vector<2x8x8xf32>, vector<2x8x8xf32> -> vector<2x8x8xf32>
    "tpu.trace_stop"() : () -> ()
    %c0_92 = arith.constant 0 : index
    %c0_93 = arith.constant 0 : index
    %c8_94 = arith.constant 8 : index
    %237 = vector.load %arg16[%c0_92, %c0_93, %c8_94] : memref<2x8x32xf32, #tpu.memory_space<vmem>>, vector<2x8x8xf32>
    tpu.vector_store %arg16[%c0_92, %c0_93, %c8_94], %236 {strides = array<i32>} : memref<2x8x32xf32, #tpu.memory_space<vmem>>, vector<2x8x8xf32>,
    %238 = vector.extract_strided_slice %186 {offsets = [0, 0, 16], sizes = [2, 8, 8], strides = [1, 1, 1]} : vector<2x8x32xf32> to vector<2x8x8xf32>
    %239 = vector.extract_strided_slice %193 {offsets = [0, 0, 16], sizes = [2, 8, 8], strides = [1, 1, 1]} : vector<2x8x32xf32> to vector<2x8x8xf32>
    "tpu.trace_start"() <{level = 10 : i32, message = "btd,bsd->bts"}> : () -> ()
    %cst_95 = arith.constant dense<0.000000e+00> : vector<2x8x8xf32>
    %240 = tpu.matmul %238, %239, %cst_95 {dimension_numbers = #tpu.dot_dimension_numbers<[2], [2], [1], [1], [0, 0, 0, 1, 1, 1], [0], [0]>} : vector<2x8x8xf32>, vector<2x8x8xf32>, vector<2x8x8xf32> -> vector<2x8x8xf32>
    "tpu.trace_stop"() : () -> ()
    %cst_96 = arith.constant 0.353553385 : f32
    %241 = vector.broadcast %cst_96 : f32 to vector<2x8x8xf32>
    %242 = arith.mulf %240, %241 : vector<2x8x8xf32>
    %243 = vector.broadcast %7 : vector<2x1x8xf32> to vector<2x8x8xf32>
    %244 = arith.addf %242, %243 : vector<2x8x8xf32>
    %cst_97 = arith.constant dense<0xFF800000> : vector<2x8xf32>
    %245 = vector.multi_reduction <maximumf>, %244, %cst_97 [2] : vector<2x8x8xf32> to vector<2x8xf32>
    %246 = vector.shape_cast %245 : vector<2x8xf32> to vector<2x8x1xf32>
    %247 = vector.broadcast %246 : vector<2x8x1xf32> to vector<2x8x8xf32>
    %248 = arith.subf %244, %247 : vector<2x8x8xf32>
    %249 = math.exp %248 : vector<2x8x8xf32>
    %cst_98 = arith.constant dense<0.000000e+00> : vector<2x8xf32>
    %250 = vector.multi_reduction <add>, %249, %cst_98 [2] : vector<2x8x8xf32> to vector<2x8xf32>
    %251 = vector.shape_cast %250 : vector<2x8xf32> to vector<2x8x1xf32>
    %252 = tpu.reciprocal %251 : vector<2x8x1xf32> -> vector<2x8x1xf32>
    %253 = vector.broadcast %252 : vector<2x8x1xf32> to vector<2x8x8xf32>
    %254 = arith.mulf %249, %253 : vector<2x8x8xf32>
    %255 = vector.extract_strided_slice %195 {offsets = [0, 0, 16], sizes = [2, 8, 8], strides = [1, 1, 1]} : vector<2x8x32xf32> to vector<2x8x8xf32>
    "tpu.trace_start"() <{level = 10 : i32, message = "bts,bsd->btd"}> : () -> ()
    %cst_99 = arith.constant dense<0.000000e+00> : vector<2x8x8xf32>
    %256 = tpu.matmul %254, %255, %cst_99 {dimension_numbers = #tpu.dot_dimension_numbers<[2], [1], [1], [2], [0, 0, 0, 1, 1, 2], [0], [0]>} : vector<2x8x8xf32>, vector<2x8x8xf32>, vector<2x8x8xf32> -> vector<2x8x8xf32>
    "tpu.trace_stop"() : () -> ()
    %c0_100 = arith.constant 0 : index
    %c0_101 = arith.constant 0 : index
    %c16_102 = arith.constant 16 : index
    %257 = vector.load %arg16[%c0_100, %c0_101, %c16_102] : memref<2x8x32xf32, #tpu.memory_space<vmem>>, vector<2x8x8xf32>
    tpu.vector_store %arg16[%c0_100, %c0_101, %c16_102], %256 {strides = array<i32>} : memref<2x8x32xf32, #tpu.memory_space<vmem>>, vector<2x8x8xf32>,
    %258 = vector.extract_strided_slice %186 {offsets = [0, 0, 24], sizes = [2, 8, 8], strides = [1, 1, 1]} : vector<2x8x32xf32> to vector<2x8x8xf32>
    %259 = vector.extract_strided_slice %193 {offsets = [0, 0, 24], sizes = [2, 8, 8], strides = [1, 1, 1]} : vector<2x8x32xf32> to vector<2x8x8xf32>
    "tpu.trace_start"() <{level = 10 : i32, message = "btd,bsd->bts"}> : () -> ()
    %cst_103 = arith.constant dense<0.000000e+00> : vector<2x8x8xf32>
    %260 = tpu.matmul %258, %259, %cst_103 {dimension_numbers = #tpu.dot_dimension_numbers<[2], [2], [1], [1], [0, 0, 0, 1, 1, 1], [0], [0]>} : vector<2x8x8xf32>, vector<2x8x8xf32>, vector<2x8x8xf32> -> vector<2x8x8xf32>
    "tpu.trace_stop"() : () -> ()
    %cst_104 = arith.constant 0.353553385 : f32
    %261 = vector.broadcast %cst_104 : f32 to vector<2x8x8xf32>
    %262 = arith.mulf %260, %261 : vector<2x8x8xf32>
    %263 = vector.broadcast %7 : vector<2x1x8xf32> to vector<2x8x8xf32>
    %264 = arith.addf %262, %263 : vector<2x8x8xf32>
    %cst_105 = arith.constant dense<0xFF800000> : vector<2x8xf32>
    %265 = vector.multi_reduction <maximumf>, %264, %cst_105 [2] : vector<2x8x8xf32> to vector<2x8xf32>
    %266 = vector.shape_cast %265 : vector<2x8xf32> to vector<2x8x1xf32>
    %267 = vector.broadcast %266 : vector<2x8x1xf32> to vector<2x8x8xf32>
    %268 = arith.subf %264, %267 : vector<2x8x8xf32>
    %269 = math.exp %268 : vector<2x8x8xf32>
    %cst_106 = arith.constant dense<0.000000e+00> : vector<2x8xf32>
    %270 = vector.multi_reduction <add>, %269, %cst_106 [2] : vector<2x8x8xf32> to vector<2x8xf32>
    %271 = vector.shape_cast %270 : vector<2x8xf32> to vector<2x8x1xf32>
    %272 = tpu.reciprocal %271 : vector<2x8x1xf32> -> vector<2x8x1xf32>
    %273 = vector.broadcast %272 : vector<2x8x1xf32> to vector<2x8x8xf32>
    %274 = arith.mulf %269, %273 : vector<2x8x8xf32>
    %275 = vector.extract_strided_slice %195 {offsets = [0, 0, 24], sizes = [2, 8, 8], strides = [1, 1, 1]} : vector<2x8x32xf32> to vector<2x8x8xf32>
    "tpu.trace_start"() <{level = 10 : i32, message = "bts,bsd->btd"}> : () -> ()
    %cst_107 = arith.constant dense<0.000000e+00> : vector<2x8x8xf32>
    %276 = tpu.matmul %274, %275, %cst_107 {dimension_numbers = #tpu.dot_dimension_numbers<[2], [1], [1], [2], [0, 0, 0, 1, 1, 2], [0], [0]>} : vector<2x8x8xf32>, vector<2x8x8xf32>, vector<2x8x8xf32> -> vector<2x8x8xf32>
    "tpu.trace_stop"() : () -> ()
    %c0_108 = arith.constant 0 : index
    %c0_109 = arith.constant 0 : index
    %c24_110 = arith.constant 24 : index
    %277 = vector.load %arg16[%c0_108, %c0_109, %c24_110] : memref<2x8x32xf32, #tpu.memory_space<vmem>>, vector<2x8x8xf32>
    tpu.vector_store %arg16[%c0_108, %c0_109, %c24_110], %276 {strides = array<i32>} : memref<2x8x32xf32, #tpu.memory_space<vmem>>, vector<2x8x8xf32>,
    %c0_111 = arith.constant 0 : index
    %c0_112 = arith.constant 0 : index
    %c0_113 = arith.constant 0 : index
    %278 = vector.load %arg16[%c0_111, %c0_112, %c0_113] : memref<2x8x32xf32, #tpu.memory_space<vmem>>, vector<2x8x32xf32>
    %279 = vector.shape_cast %278 : vector<2x8x32xf32> to vector<16x32xf32>
    %cst_114 = arith.constant dense<0.000000e+00> : vector<16x32xf32>
    %280 = tpu.matmul %279, %197, %cst_114 {dimension_numbers = #tpu.dot_dimension_numbers<[1], [0], [0], [1], [0, 0, 1, 1], [], []>} : vector<16x32xf32>, vector<32x32xf32>, vector<16x32xf32> -> vector<16x32xf32>
    %281 = vector.broadcast %17 : vector<1x32xf32> to vector<16x32xf32>
    %282 = arith.addf %280, %281 : vector<16x32xf32>
    %283 = vector.shape_cast %282 : vector<16x32xf32> to vector<2x8x32xf32>
    %284 = arith.addf %153, %283 : vector<2x8x32xf32>
    %cst_115 = arith.constant dense<0.000000e+00> : vector<2x8xf32>
    %285 = vector.multi_reduction <add>, %284, %cst_115 [2] : vector<2x8x32xf32> to vector<2x8xf32>
    %286 = vector.shape_cast %285 : vector<2x8xf32> to vector<2x8x1xf32>
    %cst_116 = arith.constant 3.200000e+01 : f32
    %287 = vector.broadcast %cst_116 : f32 to vector<2x8x1xf32>
    %288 = arith.divf %286, %287 : vector<2x8x1xf32>
    %289 = vector.broadcast %288 : vector<2x8x1xf32> to vector<2x8x32xf32>
    %290 = arith.subf %284, %289 : vector<2x8x32xf32>
    %291 = arith.mulf %290, %290 : vector<2x8x32xf32>
    %cst_117 = arith.constant dense<0.000000e+00> : vector<2x8xf32>
    %292 = vector.multi_reduction <add>, %291, %cst_117 [2] : vector<2x8x32xf32> to vector<2x8xf32>
    %293 = vector.shape_cast %292 : vector<2x8xf32> to vector<2x8x1xf32>
    %cst_118 = arith.constant 3.200000e+01 : f32
    %294 = vector.broadcast %cst_118 : f32 to vector<2x8x1xf32>
    %295 = arith.divf %293, %294 : vector<2x8x1xf32>
    %296 = vector.broadcast %288 : vector<2x8x1xf32> to vector<2x8x32xf32>
    %297 = arith.subf %284, %296 : vector<2x8x32xf32>
    %cst_119 = arith.constant 9.99999974E-6 : f32
    %298 = vector.broadcast %cst_119 : f32 to vector<2x8x1xf32>
    %299 = arith.addf %295, %298 : vector<2x8x1xf32>
    %300 = math.rsqrt %299 : vector<2x8x1xf32>
    %301 = vector.broadcast %300 : vector<2x8x1xf32> to vector<2x8x32xf32>
    %302 = arith.mulf %297, %301 : vector<2x8x32xf32>
    %303 = vector.shape_cast %14 : vector<1x32xf32> to vector<1x1x32xf32>
    %304 = vector.broadcast %303 : vector<1x1x32xf32> to vector<2x8x32xf32>
    %305 = arith.mulf %302, %304 : vector<2x8x32xf32>
    %306 = vector.shape_cast %15 : vector<1x32xf32> to vector<1x1x32xf32>
    %307 = vector.broadcast %306 : vector<1x1x32xf32> to vector<2x8x32xf32>
    %308 = arith.addf %305, %307 : vector<2x8x32xf32>
    %309 = vector.shape_cast %308 : vector<2x8x32xf32> to vector<16x32xf32>
    %c0_120 = arith.constant 0 : index
    %c0_121 = arith.constant 0 : index
    %c0_122 = arith.constant 0 : index
    %310 = vector.load %arg10[%c0_120, %c0_121, %c0_122] : memref<1x32x64xf32, #tpu.memory_space<vmem>>, vector<1x32x64xf32>
    %311 = vector.shape_cast %310 : vector<1x32x64xf32> to vector<32x64xf32>
    %cst_123 = arith.constant dense<0.000000e+00> : vector<16x64xf32>
    %312 = tpu.matmul %309, %311, %cst_123 {dimension_numbers = #tpu.dot_dimension_numbers<[1], [0], [0], [1], [0, 0, 1, 1], [], []>} : vector<16x32xf32>, vector<32x64xf32>, vector<16x64xf32> -> vector<16x64xf32>
    %313 = vector.broadcast %24 : vector<1x64xf32> to vector<16x64xf32>
    %314 = arith.addf %312, %313 : vector<16x64xf32>
    %cst_124 = arith.constant 0.000000e+00 : f32
    %315 = vector.broadcast %cst_124 : f32 to vector<16x64xf32>
    %316 = arith.maximumf %314, %315 : vector<16x64xf32>
    %c0_125 = arith.constant 0 : index
    %c0_126 = arith.constant 0 : index
    %c0_127 = arith.constant 0 : index
    %317 = vector.load %arg11[%c0_125, %c0_126, %c0_127] : memref<1x64x32xf32, #tpu.memory_space<vmem>>, vector<1x64x32xf32>
    %318 = vector.shape_cast %317 : vector<1x64x32xf32> to vector<64x32xf32>
    %cst_128 = arith.constant dense<0.000000e+00> : vector<16x32xf32>
    %319 = tpu.matmul %316, %318, %cst_128 {dimension_numbers = #tpu.dot_dimension_numbers<[1], [0], [0], [1], [0, 0, 1, 1], [], []>} : vector<16x64xf32>, vector<64x32xf32>, vector<16x32xf32> -> vector<16x32xf32>
    %320 = vector.broadcast %18 : vector<1x32xf32> to vector<16x32xf32>
    %321 = arith.addf %319, %320 : vector<16x32xf32>
    %322 = vector.shape_cast %321 : vector<16x32xf32> to vector<2x8x32xf32>
    %323 = arith.addf %284, %322 : vector<2x8x32xf32>
    %c0_129 = arith.constant 0 : index
    %c0_130 = arith.constant 0 : index
    %c0_131 = arith.constant 0 : index
    %324 = vector.load %arg15[%c0_129, %c0_130, %c0_131] : memref<2x8x32xf32, #tpu.memory_space<vmem>>, vector<2x8x32xf32>
    tpu.vector_store %arg15[%c0_129, %c0_130, %c0_131], %323 {strides = array<i32>} : memref<2x8x32xf32, #tpu.memory_space<vmem>>, vector<2x8x32xf32>,
    return
  }
  func.func @transform_0(%arg0: i32) -> (i32, i32, i32) {
    %c0_i32 = arith.constant 0 : i32
    %c0_i32_0 = arith.constant 0 : i32
    %c0_i32_1 = arith.constant 0 : i32
    %c0_i32_2 = arith.constant 0 : i32
    return %c0_i32, %c0_i32_0, %c0_i32_1 : i32, i32, i32
  }
  func.func @transform_1(%arg0: i32) -> (i32, i32) {
    %c0_i32 = arith.constant 0 : i32
    %c0_i32_0 = arith.constant 0 : i32
    %c0_i32_1 = arith.constant 0 : i32
    return %c0_i32, %c0_i32_0 : i32, i32
  }
  func.func @transform_2(%arg0: i32) -> (i32, i32, i32) {
    %c0_i32 = arith.constant 0 : i32
    %c0_i32_0 = arith.constant 0 : i32
    %c0_i32_1 = arith.constant 0 : i32
    %c0_i32_2 = arith.constant 0 : i32
    return %c0_i32, %c0_i32_0, %c0_i32_1 : i32, i32, i32
  }
  func.func @transform_3(%arg0: i32) -> (i32, i32) {
    %c0_i32 = arith.constant 0 : i32
    %c0_i32_0 = arith.constant 0 : i32
    %c0_i32_1 = arith.constant 0 : i32
    return %c0_i32, %c0_i32_0 : i32, i32
  }
  func.func @transform_4(%arg0: i32) -> (i32, i32, i32) {
    %c0_i32 = arith.constant 0 : i32
    %c0_i32_0 = arith.constant 0 : i32
    %c0_i32_1 = arith.constant 0 : i32
    %c0_i32_2 = arith.constant 0 : i32
    return %c0_i32, %c0_i32_0, %c0_i32_1 : i32, i32, i32
  }
  func.func @transform_5(%arg0: i32) -> (i32, i32, i32) {
    %c0_i32 = arith.constant 0 : i32
    %c0_i32_0 = arith.constant 0 : i32
    %c0_i32_1 = arith.constant 0 : i32
    return %arg0, %c0_i32, %c0_i32_0 : i32, i32, i32
  }
  func.func @transform_6(%arg0: i32) -> (i32, i32, i32) {
    %c0_i32 = arith.constant 0 : i32
    %c0_i32_0 = arith.constant 0 : i32
    %c0_i32_1 = arith.constant 0 : i32
    return %arg0, %c0_i32, %c0_i32_0 : i32, i32, i32
  }
  func.func @transform_7(%arg0: i32) -> (i32, i32, i32) {
    %c0_i32 = arith.constant 0 : i32
    %c0_i32_0 = arith.constant 0 : i32
    %c0_i32_1 = arith.constant 0 : i32
    return %arg0, %c0_i32, %c0_i32_0 : i32, i32, i32
  }
  func.func @transform_8(%arg0: i32) -> (i32, i32, i32) {
    %c0_i32 = arith.constant 0 : i32
    %c0_i32_0 = arith.constant 0 : i32
    %c0_i32_1 = arith.constant 0 : i32
    return %arg0, %c0_i32, %c0_i32_0 : i32, i32, i32
  }
  func.func @transform_9(%arg0: i32) -> (i32, i32, i32) {
    %c0_i32 = arith.constant 0 : i32
    %c0_i32_0 = arith.constant 0 : i32
    %c0_i32_1 = arith.constant 0 : i32
    return %arg0, %c0_i32, %c0_i32_0 : i32, i32, i32
  }
  func.func @transform_10(%arg0: i32) -> (i32, i32, i32) {
    %c0_i32 = arith.constant 0 : i32
    %c0_i32_0 = arith.constant 0 : i32
    %c0_i32_1 = arith.constant 0 : i32
    return %arg0, %c0_i32, %c0_i32_0 : i32, i32, i32
  }
  func.func @transform_11(%arg0: i32) -> (i32, i32, i32) {
    %c0_i32 = arith.constant 0 : i32
    %c0_i32_0 = arith.constant 0 : i32
    %c0_i32_1 = arith.constant 0 : i32
    return %arg0, %c0_i32, %c0_i32_0 : i32, i32, i32
  }
  func.func @transform_12(%arg0: i32) -> (i32, i32, i32) {
    %c0_i32 = arith.constant 0 : i32
    %c0_i32_0 = arith.constant 0 : i32
    %c0_i32_1 = arith.constant 0 : i32
    return %arg0, %c0_i32, %c0_i32_0 : i32, i32, i32
  }
  func.func @transform_13(%arg0: i32) -> (i32, i32, i32) {
    %c0_i32 = arith.constant 0 : i32
    %c0_i32_0 = arith.constant 0 : i32
    %c0_i32_1 = arith.constant 0 : i32
    return %arg0, %c0_i32, %c0_i32_0 : i32, i32, i32
  }
  func.func @transform_14(%arg0: i32) -> (i32, i32, i32) {
    %c0_i32 = arith.constant 0 : i32
    %c0_i32_0 = arith.constant 0 : i32
    %c0_i32_1 = arith.constant 0 : i32
    %c0_i32_2 = arith.constant 0 : i32
    return %c0_i32, %c0_i32_0, %c0_i32_1 : i32, i32, i32
  }
}

</mosaic_0001>

<llo_original>
// kernel: tpu_custom_call.1
$region0: #{tpu_custom_call.1}
  #allocation0 [shape = 'u32[]', space=smem, size = 0x4, offset = 0x4, fixed_abs, tag = 'smem constant byte address 0x4 - core index']
  #allocation1 [shape = 'u32[72,128]{1,0:T(1,128)}', space=vmem, size = 0x9000, scoped, tag = 'internal scratch']
  #allocation2 [shape = 'f32[2,8,32]{2,1,0:T(8,128)}', space=vmem, size = 0x2000, scoped, tag = 'scratch operand']
  %s0 = inlined_call_operand.vmem [shape: f32[2,8,32], index: 0, kind: input, shape index: {}]
  %s1 = inlined_call_operand.vmem [shape: f32[8,32], index: 1, kind: input, shape index: {}]
  %s2 = inlined_call_operand.vmem [shape: f32[2,8,32], index: 2, kind: input, shape index: {}]
  %s3 = inlined_call_operand.vmem [shape: f32[8,8], index: 3, kind: input, shape index: {}]
  %s4 = inlined_call_operand.hbm [shape: f32[2,1,8], index: 4, kind: input, shape index: {}]
  %s5 = inlined_call_operand.vmem [shape: f32[2,32,96], index: 5, kind: input, shape index: {}]
  %s6 = inlined_call_operand.vmem [shape: f32[2,32,32], index: 6, kind: input, shape index: {}]
  %s7 = inlined_call_operand.vmem [shape: f32[2,32,96], index: 7, kind: input, shape index: {}]
  %s8 = inlined_call_operand.hbm [shape: f32[2,32,32], index: 8, kind: input, shape index: {}]
  %s9 = inlined_call_operand.hbm [shape: f32[2,32,64], index: 9, kind: input, shape index: {}]
  %s10 = inlined_call_operand.vmem [shape: f32[2,64,32], index: 10, kind: input, shape index: {}]
  %s11 = inlined_call_operand.vmem [shape: f32[2,9,32], index: 11, kind: input, shape index: {}]
  %s12 = inlined_call_operand.vmem [shape: f32[2,2,96], index: 12, kind: input, shape index: {}]
  %s13 = inlined_call_operand.vmem [shape: f32[2,1,64], index: 13, kind: input, shape index: {}]
  %s14 = inlined_call_operand.hbm [shape: f32[2,8,32], index: 14, kind: output, shape index: {}]
  %s15 = sld [smem:[#allocation0]]
  $region105: #{tpu_custom_call.1} parent=0
    _
  %s17 = ssub.s32 1, %s15
  %s18 = scalar_select 0, %s17, %s15
  $region1: #{tpu_custom_call.1} parent=0
    #allocation3 [shape = 'u8[1024]{0}', space=vmem, size = 0x400, scoped, tag = 'input window, operand 4, single buffered']
    #allocation4 [shape = 's32[2]{0}', space=sflag, size = 0x8, scoped, tag = 'scoped memory for tpu_custom_call.1']
    #allocation5 [shape = 's32[2]{0}', space=sflag, size = 0x8, scoped, tag = 'scoped memory for tpu_custom_call.1']
    #allocation6 [shape = 'u8[32768]{0}', space=vmem, size = 0x8000, scoped, tag = 'input window, operand 8']
    #allocation7 [shape = 's32[2]{0}', space=sflag, size = 0x8, scoped, tag = 'scoped memory for tpu_custom_call.1']
    #allocation8 [shape = 'u8[32768]{0}', space=vmem, size = 0x8000, scoped, tag = 'input window, operand 9']
    #allocation9 [shape = 'u8[8192]{0}', space=vmem, size = 0x2000, scoped, tag = 'output window, operand 0, single buffered']
    %19 = vsyncpa [#allocation4], 0
    %20 = vsyncpa [#allocation7], 0
    %s21 = scalar_lea.sflag [#allocation7], 1
    %22 = vsyncpa %s21, 0
    %23 = vsyncpa [#allocation5], 0
    loop: start=0, step=1, limit=4
    $region2: #{tpu_custom_call.1} parent=1 // loop_pre_header
      _
    $region3: #{tpu_custom_call.1} parent=1 // loop_header
      %s25 = sphi 0, %s29
      %p26 = scmp.ge.s32.totalorder %s25, 4
      %s33 = sphi 0, %s33
      %s35 = sphi 0, %s33
      %s36 = sphi 0, %s35
      %s50 = sphi 0, %s36
      %s54 = sphi 0, %s54
      %s56 = sphi 0, %s54
      %s57 = sphi 0, %s56
      %s71 = sphi 0, %s57
      %s75 = sphi 0, %s75
      %s77 = sphi 0, %s75
      %s78 = sphi 0, %s77
      %s92 = sphi 0, %s78
      %s96 = sphi 0, %s96
      %s98 = sphi 0, %s96
      %s99 = sphi 0, %s98
      %s113 = sphi 0, %s99
      %s117 = sphi 0, %s117
      %s119 = sphi 0, %s117
      %s120 = sphi 0, %s119
      %s134 = sphi 0, %s120
      %s140 = sphi 0, %s142
      %s143 = sphi 0, %s140
      %s144 = sphi 0, %s143
      %s160 = sphi 0, %s144
      %s166 = sphi 0, %s168
      %s169 = sphi 0, %s166
      %s170 = sphi 0, %s169
      %s186 = sphi 0, %s170
      %s192 = sphi 0, %s194
      %s195 = sphi 0, %s192
      %s196 = sphi 0, %s195
      %s212 = sphi 0, %s196
      %s218 = sphi 0, %s220
      %s221 = sphi 0, %s218
      %s222 = sphi 0, %s221
      %s238 = sphi 0, %s222
      %s244 = sphi 0, %s246
      %s247 = sphi 0, %s244
      %s248 = sphi 0, %s247
      %s264 = sphi 0, %s248
      %s270 = sphi 0, %s272
      %s273 = sphi 0, %s270
      %s274 = sphi 0, %s273
      %s290 = sphi 0, %s274
      %s296 = sphi 0, %s298
      %s299 = sphi 0, %s296
      %s300 = sphi 0, %s299
      %s316 = sphi 0, %s300
      %s322 = sphi 0, %s324
      %s325 = sphi 0, %s322
      %s326 = sphi 0, %s325
      %s342 = sphi 0, %s326
      %s348 = sphi 0, %s350
      %s351 = sphi 0, %s348
      %s352 = sphi 0, %s351
      %s368 = sphi 0, %s352
      %s372 = sphi 0, %s372
      %s374 = sphi 0, %s372
      %s375 = sphi 0, %s374
      %s389 = sphi 0, %s375
    $region4: #{tpu_custom_call.1} parent=1 // loop_header_branch
      %28 = sbr.rel (%p26) target = $region8
    $region5: #{tpu_custom_call.1} parent=1 // loop_body
      %s30 = ssub.s32 %s25, 1
      %s31 = ssub.s32 %s25, 2
      %s32 = sadd.s32 %s25, 1
      %s34 = sadd.s32 %s33, 1
      %p37 = scmp.eq.s32.totalorder %s25, 1
      %p38 = scmp.ne.s32.totalorder %s33, %s35
      %p39 = scmp.eq.s32.totalorder %s25, 0
      %p40 = por %p38, %p39
      %p41 = scmp.ne.s32.totalorder %s33, %s35
      %p42 = scmp.eq.s32.totalorder %s30, 1
      %p43 = por %p41, %p42
      %p44 = scmp.ne.s32.totalorder %s35, %s36
      %p45 = scmp.eq.s32.totalorder %s30, 0
      %p46 = por %p44, %p45
      %p47 = scmp.ne.s32.totalorder %s35, %s36
      %p48 = scmp.eq.s32.totalorder %s31, 1
      %p49 = por %p47, %p48
      %p51 = scmp.ne.s32.totalorder %s36, %s50
      %p52 = scmp.eq.s32.totalorder %s31, 0
      %p53 = por %p51, %p52
      %s55 = sadd.s32 %s54, 1
      %p58 = scmp.eq.s32.totalorder %s25, 1
      %p59 = scmp.ne.s32.totalorder %s54, %s56
      %p60 = scmp.eq.s32.totalorder %s25, 0
      %p61 = por %p59, %p60
      %p62 = scmp.ne.s32.totalorder %s54, %s56
      %p63 = scmp.eq.s32.totalorder %s30, 1
      %p64 = por %p62, %p63
      %p65 = scmp.ne.s32.totalorder %s56, %s57
      %p66 = scmp.eq.s32.totalorder %s30, 0
      %p67 = por %p65, %p66
      %p68 = scmp.ne.s32.totalorder %s56, %s57
      %p69 = scmp.eq.s32.totalorder %s31, 1
      %p70 = por %p68, %p69
      %p72 = scmp.ne.s32.totalorder %s57, %s71
      %p73 = scmp.eq.s32.totalorder %s31, 0
      %p74 = por %p72, %p73
      %s76 = sadd.s32 %s75, 1
      %p79 = scmp.eq.s32.totalorder %s25, 1
      %p80 = scmp.ne.s32.totalorder %s75, %s77
      %p81 = scmp.eq.s32.totalorder %s25, 0
      %p82 = por %p80, %p81
      %p83 = scmp.ne.s32.totalorder %s75, %s77
      %p84 = scmp.eq.s32.totalorder %s30, 1
      %p85 = por %p83, %p84
      %p86 = scmp.ne.s32.totalorder %s77, %s78
      %p87 = scmp.eq.s32.totalorder %s30, 0
      %p88 = por %p86, %p87
      %p89 = scmp.ne.s32.totalorder %s77, %s78
      %p90 = scmp.eq.s32.totalorder %s31, 1
      %p91 = por %p89, %p90
      %p93 = scmp.ne.s32.totalorder %s78, %s92
      %p94 = scmp.eq.s32.totalorder %s31, 0
      %p95 = por %p93, %p94
      %s97 = sadd.s32 %s96, 1
      %p100 = scmp.eq.s32.totalorder %s25, 1
      %p101 = scmp.ne.s32.totalorder %s96, %s98
      %p102 = scmp.eq.s32.totalorder %s25, 0
      %p103 = por %p101, %p102
      %p104 = scmp.ne.s32.totalorder %s96, %s98
      %p105 = scmp.eq.s32.totalorder %s30, 1
      %p106 = por %p104, %p105
      %p107 = scmp.ne.s32.totalorder %s98, %s99
      %p108 = scmp.eq.s32.totalorder %s30, 0
      %p109 = por %p107, %p108
      %p110 = scmp.ne.s32.totalorder %s98, %s99
      %p111 = scmp.eq.s32.totalorder %s31, 1
      %p112 = por %p110, %p111
      %p114 = scmp.ne.s32.totalorder %s99, %s113
      %p115 = scmp.eq.s32.totalorder %s31, 0
      %p116 = por %p114, %p115
      %s118 = sadd.s32 %s117, 1
      %p121 = scmp.eq.s32.totalorder %s25, 1
      %p122 = scmp.ne.s32.totalorder %s117, %s119
      %p123 = scmp.eq.s32.totalorder %s25, 0
      %p124 = por %p122, %p123
      %p125 = scmp.ne.s32.totalorder %s117, %s119
      %p126 = scmp.eq.s32.totalorder %s30, 1
      %p127 = por %p125, %p126
      %p128 = scmp.ne.s32.totalorder %s119, %s120
      %p129 = scmp.eq.s32.totalorder %s30, 0
      %p130 = por %p128, %p129
      %p131 = scmp.ne.s32.totalorder %s119, %s120
      %p132 = scmp.eq.s32.totalorder %s31, 1
      %p133 = por %p131, %p132
      %p135 = scmp.ne.s32.totalorder %s120, %s134
      %p136 = scmp.eq.s32.totalorder %s31, 0
      %p137 = por %p135, %p136
      %s138 = ssub.s32 %s25, %s32
      %p139 = scmp.eq.s32.totalorder %s138, 0
      %s141 = sadd.s32 %s140, 1
      %s142 = scalar_select %p139, %s140, %s141
      %p145 = pneg %p139
      %p146 = scmp.eq.s32.totalorder %s25, 1
      %p147 = por %p145, %p146
      %p148 = scmp.ne.s32.totalorder %s140, %s143
      %p149 = scmp.eq.s32.totalorder %s25, 0
      %p150 = por %p148, %p149
      %p151 = scmp.ne.s32.totalorder %s140, %s143
      %p152 = scmp.eq.s32.totalorder %s30, 1
      %p153 = por %p151, %p152
      %p154 = scmp.ne.s32.totalorder %s143, %s144
      %p155 = scmp.eq.s32.totalorder %s30, 0
      %p156 = por %p154, %p155
      %p157 = scmp.ne.s32.totalorder %s143, %s144
      %p158 = scmp.eq.s32.totalorder %s31, 1
      %p159 = por %p157, %p158
      %p161 = scmp.ne.s32.totalorder %s144, %s160
      %p162 = scmp.eq.s32.totalorder %s31, 0
      %p163 = por %p161, %p162
      %s164 = ssub.s32 %s25, %s32
      %p165 = scmp.eq.s32.totalorder %s164, 0
      %s167 = sadd.s32 %s166, 1
      %s168 = scalar_select %p165, %s166, %s167
      %p171 = pneg %p165
      %p172 = scmp.eq.s32.totalorder %s25, 1
      %p173 = por %p171, %p172
      %p174 = scmp.ne.s32.totalorder %s166, %s169
      %p175 = scmp.eq.s32.totalorder %s25, 0
      %p176 = por %p174, %p175
      %p177 = scmp.ne.s32.totalorder %s166, %s169
      %p178 = scmp.eq.s32.totalorder %s30, 1
      %p179 = por %p177, %p178
      %p180 = scmp.ne.s32.totalorder %s169, %s170
      %p181 = scmp.eq.s32.totalorder %s30, 0
      %p182 = por %p180, %p181
      %p183 = scmp.ne.s32.totalorder %s169, %s170
      %p184 = scmp.eq.s32.totalorder %s31, 1
      %p185 = por %p183, %p184
      %p187 = scmp.ne.s32.totalorder %s170, %s186
      %p188 = scmp.eq.s32.totalorder %s31, 0
      %p189 = por %p187, %p188
      %s190 = ssub.s32 %s25, %s32
      %p191 = scmp.eq.s32.totalorder %s190, 0
      %s193 = sadd.s32 %s192, 1
      %s194 = scalar_select %p191, %s192, %s193
      %p197 = pneg %p191
      %p198 = scmp.eq.s32.totalorder %s25, 1
      %p199 = por %p197, %p198
      %p200 = scmp.ne.s32.totalorder %s192, %s195
      %p201 = scmp.eq.s32.totalorder %s25, 0
      %p202 = por %p200, %p201
      %p203 = scmp.ne.s32.totalorder %s192, %s195
      %p204 = scmp.eq.s32.totalorder %s30, 1
      %p205 = por %p203, %p204
      %p206 = scmp.ne.s32.totalorder %s195, %s196
      %p207 = scmp.eq.s32.totalorder %s30, 0
      %p208 = por %p206, %p207
      %p209 = scmp.ne.s32.totalorder %s195, %s196
      %p210 = scmp.eq.s32.totalorder %s31, 1
      %p211 = por %p209, %p210
      %p213 = scmp.ne.s32.totalorder %s196, %s212
      %p214 = scmp.eq.s32.totalorder %s31, 0
      %p215 = por %p213, %p214
      %s216 = ssub.s32 %s25, %s32
      %p217 = scmp.eq.s32.totalorder %s216, 0
      %s219 = sadd.s32 %s218, 1
      %s220 = scalar_select %p217, %s218, %s219
      %p223 = pneg %p217
      %p224 = scmp.eq.s32.totalorder %s25, 1
      %p225 = por %p223, %p224
      %p226 = scmp.ne.s32.totalorder %s218, %s221
      %p227 = scmp.eq.s32.totalorder %s25, 0
      %p228 = por %p226, %p227
      %p229 = scmp.ne.s32.totalorder %s218, %s221
      %p230 = scmp.eq.s32.totalorder %s30, 1
      %p231 = por %p229, %p230
      %p232 = scmp.ne.s32.totalorder %s221, %s222
      %p233 = scmp.eq.s32.totalorder %s30, 0
      %p234 = por %p232, %p233
      %p235 = scmp.ne.s32.totalorder %s221, %s222
      %p236 = scmp.eq.s32.totalorder %s31, 1
      %p237 = por %p235, %p236
      %p239 = scmp.ne.s32.totalorder %s222, %s238
      %p240 = scmp.eq.s32.totalorder %s31, 0
      %p241 = por %p239, %p240
      %s242 = ssub.s32 %s25, %s32
      %p243 = scmp.eq.s32.totalorder %s242, 0
      %s245 = sadd.s32 %s244, 1
      %s246 = scalar_select %p243, %s244, %s245
      %p249 = pneg %p243
      %p250 = scmp.eq.s32.totalorder %s25, 1
      %p251 = por %p249, %p250
      %p252 = scmp.ne.s32.totalorder %s244, %s247
      %p253 = scmp.eq.s32.totalorder %s25, 0
      %p254 = por %p252, %p253
      %p255 = scmp.ne.s32.totalorder %s244, %s247
      %p256 = scmp.eq.s32.totalorder %s30, 1
      %p257 = por %p255, %p256
      %p258 = scmp.ne.s32.totalorder %s247, %s248
      %p259 = scmp.eq.s32.totalorder %s30, 0
      %p260 = por %p258, %p259
      %p261 = scmp.ne.s32.totalorder %s247, %s248
      %p262 = scmp.eq.s32.totalorder %s31, 1
      %p263 = por %p261, %p262
      %p265 = scmp.ne.s32.totalorder %s248, %s264
      %p266 = scmp.eq.s32.totalorder %s31, 0
      %p267 = por %p265, %p266
      %s268 = ssub.s32 %s25, %s32
      %p269 = scmp.eq.s32.totalorder %s268, 0
      %s271 = sadd.s32 %s270, 1
      %s272 = scalar_select %p269, %s270, %s271
      %p275 = pneg %p269
      %p276 = scmp.eq.s32.totalorder %s25, 1
      %p277 = por %p275, %p276
      %p278 = scmp.ne.s32.totalorder %s270, %s273
      %p279 = scmp.eq.s32.totalorder %s25, 0
      %p280 = por %p278, %p279
      %p281 = scmp.ne.s32.totalorder %s270, %s273
      %p282 = scmp.eq.s32.totalorder %s30, 1
      %p283 = por %p281, %p282
      %p284 = scmp.ne.s32.totalorder %s273, %s274
      %p285 = scmp.eq.s32.totalorder %s30, 0
      %p286 = por %p284, %p285
      %p287 = scmp.ne.s32.totalorder %s273, %s274
      %p288 = scmp.eq.s32.totalorder %s31, 1
      %p289 = por %p287, %p288
      %p291 = scmp.ne.s32.totalorder %s274, %s290
      %p292 = scmp.eq.s32.totalorder %s31, 0
      %p293 = por %p291, %p292
      %s294 = ssub.s32 %s25, %s32
      %p295 = scmp.eq.s32.totalorder %s294, 0
      %s297 = sadd.s32 %s296, 1
      %s298 = scalar_select %p295, %s296, %s297
      %p301 = pneg %p295
      %p302 = scmp.eq.s32.totalorder %s25, 1
      %p303 = por %p301, %p302
      %p304 = scmp.ne.s32.totalorder %s296, %s299
      %p305 = scmp.eq.s32.totalorder %s25, 0
      %p306 = por %p304, %p305
      %p307 = scmp.ne.s32.totalorder %s296, %s299
      %p308 = scmp.eq.s32.totalorder %s30, 1
      %p309 = por %p307, %p308
      %p310 = scmp.ne.s32.totalorder %s299, %s300
      %p311 = scmp.eq.s32.totalorder %s30, 0
      %p312 = por %p310, %p311
      %p313 = scmp.ne.s32.totalorder %s299, %s300
      %p314 = scmp.eq.s32.totalorder %s31, 1
      %p315 = por %p313, %p314
      %p317 = scmp.ne.s32.totalorder %s300, %s316
      %p318 = scmp.eq.s32.totalorder %s31, 0
      %p319 = por %p317, %p318
      %s320 = ssub.s32 %s25, %s32
      %p321 = scmp.eq.s32.totalorder %s320, 0
      %s323 = sadd.s32 %s322, 1
      %s324 = scalar_select %p321, %s322, %s323
      %p327 = pneg %p321
      %p328 = scmp.eq.s32.totalorder %s25, 1
      %p329 = por %p327, %p328
      %p330 = scmp.ne.s32.totalorder %s322, %s325
      %p331 = scmp.eq.s32.totalorder %s25, 0
      %p332 = por %p330, %p331
      %p333 = scmp.ne.s32.totalorder %s322, %s325
      %p334 = scmp.eq.s32.totalorder %s30, 1
      %p335 = por %p333, %p334
      %p336 = scmp.ne.s32.totalorder %s325, %s326
      %p337 = scmp.eq.s32.totalorder %s30, 0
      %p338 = por %p336, %p337
      %p339 = scmp.ne.s32.totalorder %s325, %s326
      %p340 = scmp.eq.s32.totalorder %s31, 1
      %p341 = por %p339, %p340
      %p343 = scmp.ne.s32.totalorder %s326, %s342
      %p344 = scmp.eq.s32.totalorder %s31, 0
      %p345 = por %p343, %p344
      %s346 = ssub.s32 %s25, %s32
      %p347 = scmp.eq.s32.totalorder %s346, 0
      %s349 = sadd.s32 %s348, 1
      %s350 = scalar_select %p347, %s348, %s349
      %p353 = pneg %p347
      %p354 = scmp.eq.s32.totalorder %s25, 1
      %p355 = por %p353, %p354
      %p356 = scmp.ne.s32.totalorder %s348, %s351
      %p357 = scmp.eq.s32.totalorder %s25, 0
      %p358 = por %p356, %p357
      %p359 = scmp.ne.s32.totalorder %s348, %s351
      %p360 = scmp.eq.s32.totalorder %s30, 1
      %p361 = por %p359, %p360
      %p362 = scmp.ne.s32.totalorder %s351, %s352
      %p363 = scmp.eq.s32.totalorder %s30, 0
      %p364 = por %p362, %p363
      %p365 = scmp.ne.s32.totalorder %s351, %s352
      %p366 = scmp.eq.s32.totalorder %s31, 1
      %p367 = por %p365, %p366
      %p369 = scmp.ne.s32.totalorder %s352, %s368
      %p370 = scmp.eq.s32.totalorder %s31, 0
      %p371 = por %p369, %p370
      %s373 = sadd.s32 %s372, 1
      %p376 = scmp.eq.s32.totalorder %s25, 1
      %p377 = scmp.ne.s32.totalorder %s372, %s374
      %p378 = scmp.eq.s32.totalorder %s25, 0
      %p379 = por %p377, %p378
      %p380 = scmp.ne.s32.totalorder %s372, %s374
      %p381 = scmp.eq.s32.totalorder %s30, 1
      %p382 = por %p380, %p381
      %p383 = scmp.ne.s32.totalorder %s374, %s375
      %p384 = scmp.eq.s32.totalorder %s30, 0
      %p385 = por %p383, %p384
      %p386 = scmp.ne.s32.totalorder %s374, %s375
      %p387 = scmp.eq.s32.totalorder %s31, 1
      %p388 = por %p386, %p387
      %p390 = scmp.ne.s32.totalorder %s375, %s389
      %p391 = scmp.eq.s32.totalorder %s31, 0
      %p392 = por %p390, %p391
      %p393 = scmp.le.s32.totalorder 1, %s25
      %p394 = scmp.lt.s32.totalorder %s25, 3
      %p395 = pnand %p393, %p394
      %p396 = pneg %p395
      // Predicated region
      $region9: #{tpu_custom_call.1} parent=5 // pred_check
        _
      $region10: #{tpu_custom_call.1} parent=5 // pred_check_branch
        %398 = sbr.rel (%p395) target = $region12
      $region11: #{tpu_custom_call.1} parent=5 // pred_region
        %s399 = ssub.s32 %s25, 1
        // Predicated region
        $region13: #{tpu_custom_call.1} parent=11 // pred_check
          %p400 = pneg %p46
        $region14: #{tpu_custom_call.1} parent=11 // pred_check_branch
          %402 = sbr.rel (%p400) target = $region16
        $region15: #{tpu_custom_call.1} parent=11 // pred_region
          _
        $region16: #{tpu_custom_call.1} parent=11 // pred_fallthru
          _
        // Predicated region
        $region17: #{tpu_custom_call.1} parent=11 // pred_check
          %p403 = pneg %p67
        $region18: #{tpu_custom_call.1} parent=11 // pred_check_branch
          %405 = sbr.rel (%p403) target = $region20
        $region19: #{tpu_custom_call.1} parent=11 // pred_region
          _
        $region20: #{tpu_custom_call.1} parent=11 // pred_fallthru
          _
        // Predicated region
        $region21: #{tpu_custom_call.1} parent=11 // pred_check
          %p406 = pneg %p88
        $region22: #{tpu_custom_call.1} parent=11 // pred_check_branch
          %408 = sbr.rel (%p406) target = $region24
        $region23: #{tpu_custom_call.1} parent=11 // pred_region
          _
        $region24: #{tpu_custom_call.1} parent=11 // pred_fallthru
          _
        // Predicated region
        $region25: #{tpu_custom_call.1} parent=11 // pred_check
          %p409 = pneg %p109
        $region26: #{tpu_custom_call.1} parent=11 // pred_check_branch
          %411 = sbr.rel (%p409) target = $region28
        $region27: #{tpu_custom_call.1} parent=11 // pred_region
          _
        $region28: #{tpu_custom_call.1} parent=11 // pred_fallthru
          _
        // Predicated region
        $region29: #{tpu_custom_call.1} parent=11 // pred_check
          %p412 = pneg %p130
        $region30: #{tpu_custom_call.1} parent=11 // pred_check_branch
          %414 = sbr.rel (%p412) target = $region32
        $region31: #{tpu_custom_call.1} parent=11 // pred_region
          %416 = vsyncadd [#allocation4], 0
          %s417 = sshll.u32 %s4, 4
          %s418 = int_to_ptr.hbm [resolvable:$true] %s417
          %s419 = sshll.u32 [#allocation3], 4
          %s420 = int_to_ptr.vmem [resolvable:$true] %s419
          %425 = dma.hbm_to_vmem [thread:$0]  %s418, 32, %s420, [#allocation4], 16, 16, 1
        $region32: #{tpu_custom_call.1} parent=11 // pred_fallthru
          _
      $region12: #{tpu_custom_call.1} parent=5 // pred_fallthru
        _
      %p426 = scmp.lt.s32.totalorder %s25, 2
      // Predicated region
      $region33: #{tpu_custom_call.1} parent=5 // pred_check
        %p427 = pneg %p426
      $region34: #{tpu_custom_call.1} parent=5 // pred_check_branch
        %429 = sbr.rel (%p427) target = $region36
      $region35: #{tpu_custom_call.1} parent=5 // pred_region
        // Predicated region
        $region37: #{tpu_custom_call.1} parent=35 // pred_check
          %p430 = pneg %p150
        $region38: #{tpu_custom_call.1} parent=35 // pred_check_branch
          %432 = sbr.rel (%p430) target = $region40
        $region39: #{tpu_custom_call.1} parent=35 // pred_region
          %p433 = scmp.lt.s32.totalorder %s25, 1
          %s434 = scalar_select %p433, %s25, 1
          %s435 = smul.addr %s434, 4
          %s436 = smul.addr %s435, 8
          %s437 = scalar_lea.vmem %s5, %s436
        $region40: #{tpu_custom_call.1} parent=35 // pred_fallthru
          _
        // Predicated region
        $region41: #{tpu_custom_call.1} parent=35 // pred_check
          %p438 = pneg %p176
        $region42: #{tpu_custom_call.1} parent=35 // pred_check_branch
          %440 = sbr.rel (%p438) target = $region44
        $region43: #{tpu_custom_call.1} parent=35 // pred_region
          %p441 = scmp.lt.s32.totalorder %s25, 1
          %s442 = scalar_select %p441, %s25, 1
          %s443 = smul.addr %s442, 4
          %s444 = smul.addr %s443, 8
          %s445 = scalar_lea.vmem %s6, %s444
        $region44: #{tpu_custom_call.1} parent=35 // pred_fallthru
          _
        // Predicated region
        $region45: #{tpu_custom_call.1} parent=35 // pred_check
          %p446 = pneg %p202
        $region46: #{tpu_custom_call.1} parent=35 // pred_check_branch
          %448 = sbr.rel (%p446) target = $region48
        $region47: #{tpu_custom_call.1} parent=35 // pred_region
          %p449 = scmp.lt.s32.totalorder %s25, 1
          %s450 = scalar_select %p449, %s25, 1
          %s451 = smul.addr %s450, 4
          %s452 = smul.addr %s451, 8
          %s453 = scalar_lea.vmem %s7, %s452
        $region48: #{tpu_custom_call.1} parent=35 // pred_fallthru
          _
        // Predicated region
        $region49: #{tpu_custom_call.1} parent=35 // pred_check
          %p454 = pneg %p228
        $region50: #{tpu_custom_call.1} parent=35 // pred_check_branch
          %456 = sbr.rel (%p454) target = $region52
        $region51: #{tpu_custom_call.1} parent=35 // pred_region
          %s457 = sand.u32 %s25, 1
          %s458 = scalar_lea.sflag [#allocation7], %s457
          %s459 = sand.u32 %s218, 1
          %s460 = smul.addr %s459, 32
          %s461 = scalar_lea.vmem [#allocation6], %s460
          %463 = vsyncadd %s458, 0
          %s464 = smul.addr %s25, 4
          %s465 = smul.addr %s464, 8
          %s466 = scalar_lea.hbm %s8, %s465
          %s467 = sshll.u32 %s466, 4
          %s468 = int_to_ptr.hbm [resolvable:$true] %s467
          %s469 = sshll.u32 %s461, 4
          %s470 = int_to_ptr.vmem [resolvable:$true] %s469
          %475 = dma.hbm_to_vmem [thread:$0]  %s468, 512, %s470, %s458, 128, 128, 8
        $region52: #{tpu_custom_call.1} parent=35 // pred_fallthru
          _
        // Predicated region
        $region53: #{tpu_custom_call.1} parent=35 // pred_check
          %p476 = pneg %p254
        $region54: #{tpu_custom_call.1} parent=35 // pred_check_branch
          %478 = sbr.rel (%p476) target = $region56
        $region55: #{tpu_custom_call.1} parent=35 // pred_region
          %s479 = sand.u32 %s25, 1
          %s480 = scalar_lea.sflag [#allocation7], %s479
          %s481 = sand.u32 %s244, 1
          %s482 = smul.addr %s481, 32
          %s483 = scalar_lea.vmem [#allocation8], %s482
          %485 = vsyncadd %s480, 0
          %s486 = smul.addr %s25, 4
          %s487 = smul.addr %s486, 8
          %s488 = scalar_lea.hbm %s9, %s487
          %s489 = sshll.u32 %s488, 4
          %s490 = int_to_ptr.hbm [resolvable:$true] %s489
          %s491 = sshll.u32 %s483, 4
          %s492 = int_to_ptr.vmem [resolvable:$true] %s491
          %497 = dma.hbm_to_vmem [thread:$0]  %s490, 512, %s492, %s480, 128, 128, 8
        $region56: #{tpu_custom_call.1} parent=35 // pred_fallthru
          _
        // Predicated region
        $region57: #{tpu_custom_call.1} parent=35 // pred_check
          %p498 = pneg %p280
        $region58: #{tpu_custom_call.1} parent=35 // pred_check_branch
          %500 = sbr.rel (%p498) target = $region60
        $region59: #{tpu_custom_call.1} parent=35 // pred_region
          %p501 = scmp.lt.s32.totalorder %s25, 1
          %s502 = scalar_select %p501, %s25, 1
          %s503 = smul.addr %s502, 8
          %s504 = smul.addr %s503, 8
          %s505 = scalar_lea.vmem %s10, %s504
        $region60: #{tpu_custom_call.1} parent=35 // pred_fallthru
          _
        // Predicated region
        $region61: #{tpu_custom_call.1} parent=35 // pred_check
          %p506 = pneg %p306
        $region62: #{tpu_custom_call.1} parent=35 // pred_check_branch
          %508 = sbr.rel (%p506) target = $region64
        $region63: #{tpu_custom_call.1} parent=35 // pred_region
          %p509 = scmp.lt.s32.totalorder %s25, 1
          %s510 = scalar_select %p509, %s25, 1
          %s511 = smul.addr %s510, 2
          %s512 = smul.addr %s511, 8
          %s513 = scalar_lea.vmem %s11, %s512
        $region64: #{tpu_custom_call.1} parent=35 // pred_fallthru
          _
        // Predicated region
        $region65: #{tpu_custom_call.1} parent=35 // pred_check
          %p514 = pneg %p332
        $region66: #{tpu_custom_call.1} parent=35 // pred_check_branch
          %516 = sbr.rel (%p514) target = $region68
        $region67: #{tpu_custom_call.1} parent=35 // pred_region
          %p517 = scmp.lt.s32.totalorder %s25, 1
          %s518 = scalar_select %p517, %s25, 1
          %s519 = smul.addr %s518, 2
          %s520 = scalar_lea.vmem %s12, %s519
        $region68: #{tpu_custom_call.1} parent=35 // pred_fallthru
          _
        // Predicated region
        $region69: #{tpu_custom_call.1} parent=35 // pred_check
          %p521 = pneg %p358
        $region70: #{tpu_custom_call.1} parent=35 // pred_check_branch
          %523 = sbr.rel (%p521) target = $region72
        $region71: #{tpu_custom_call.1} parent=35 // pred_region
          %p524 = scmp.lt.s32.totalorder %s25, 1
          %s525 = scalar_select %p524, %s25, 1
          %s526 = scalar_lea.vmem %s13, %s525
        $region72: #{tpu_custom_call.1} parent=35 // pred_fallthru
          _
      $region36: #{tpu_custom_call.1} parent=5 // pred_fallthru
        _
      %p527 = scmp.le.s32.totalorder 1, %s25
      %p528 = scmp.lt.s32.totalorder %s25, 3
      %p529 = pnand %p527, %p528
      %p530 = pneg %p529
      // Predicated region
      $region73: #{tpu_custom_call.1} parent=5 // pred_check
        _
      $region74: #{tpu_custom_call.1} parent=5 // pred_check_branch
        %532 = sbr.rel (%p529) target = $region76
      $region75: #{tpu_custom_call.1} parent=5 // pred_region
        %s533 = ssub.s32 %s25, 1
        // Predicated region
        $region77: #{tpu_custom_call.1} parent=75 // pred_check
          %p534 = pneg %p130
        $region78: #{tpu_custom_call.1} parent=75 // pred_check_branch
          %536 = sbr.rel (%p534) target = $region80
        $region79: #{tpu_custom_call.1} parent=75 // pred_region
          %538 = dma.done [#allocation4], 32
        $region80: #{tpu_custom_call.1} parent=75 // pred_fallthru
          _
        %s539 = sand.u32 %s30, 1
        %s540 = scalar_lea.sflag [#allocation7], %s539
        %s541 = sand.u32 %s221, 1
        %s542 = smul.addr %s541, 32
        %s543 = scalar_lea.vmem [#allocation6], %s542
        // Predicated region
        $region81: #{tpu_custom_call.1} parent=75 // pred_check
          %p544 = pneg %p234
        $region82: #{tpu_custom_call.1} parent=75 // pred_check_branch
          %546 = sbr.rel (%p544) target = $region84
        $region83: #{tpu_custom_call.1} parent=75 // pred_region
          %548 = dma.done %s540, 512
        $region84: #{tpu_custom_call.1} parent=75 // pred_fallthru
          _
        %s549 = sand.u32 %s30, 1
        %s550 = scalar_lea.sflag [#allocation7], %s549
        %s551 = sand.u32 %s247, 1
        %s552 = smul.addr %s551, 32
        %s553 = scalar_lea.vmem [#allocation8], %s552
        // Predicated region
        $region85: #{tpu_custom_call.1} parent=75 // pred_check
          %p554 = pneg %p260
        $region86: #{tpu_custom_call.1} parent=75 // pred_check_branch
          %556 = sbr.rel (%p554) target = $region88
        $region87: #{tpu_custom_call.1} parent=75 // pred_region
          %558 = dma.done %s550, 512
        $region88: #{tpu_custom_call.1} parent=75 // pred_fallthru
          _
        %p559 = pneg %p46
        %p560 = pneg %p43
        %p561 = pneg %p67
        %p562 = pneg %p64
        %p563 = pneg %p88
        %p564 = pneg %p85
        %p565 = pneg %p109
        %p566 = pneg %p106
        %p567 = pneg %p130
        %p568 = pneg %p127
        %p569 = scmp.lt.s32.totalorder %s30, 1
        %s570 = scalar_select %p569, %s30, 1
        %s571 = smul.addr %s570, 4
        %s572 = smul.addr %s571, 8
        %s573 = scalar_lea.vmem %s5, %s572
        %p574 = pneg %p156
        %p575 = pneg %p153
        %p576 = scmp.lt.s32.totalorder %s30, 1
        %s577 = scalar_select %p576, %s30, 1
        %s578 = smul.addr %s577, 4
        %s579 = smul.addr %s578, 8
        %s580 = scalar_lea.vmem %s6, %s579
        %p581 = pneg %p182
        %p582 = pneg %p179
        %p583 = scmp.lt.s32.totalorder %s30, 1
        %s584 = scalar_select %p583, %s30, 1
        %s585 = smul.addr %s584, 4
        %s586 = smul.addr %s585, 8
        %s587 = scalar_lea.vmem %s7, %s586
        %p588 = pneg %p208
        %p589 = pneg %p205
        %s590 = sand.u32 %s30, 1
        %s591 = scalar_lea.sflag [#allocation7], %s590
        %s592 = sand.u32 %s221, 1
        %s593 = smul.addr %s592, 32
        %s594 = scalar_lea.vmem [#allocation6], %s593
        %p595 = pneg %p234
        %p596 = pneg %p231
        %s597 = sand.u32 %s30, 1
        %s598 = scalar_lea.sflag [#allocation7], %s597
        %s599 = sand.u32 %s247, 1
        %s600 = smul.addr %s599, 32
        %s601 = scalar_lea.vmem [#allocation8], %s600
        %p602 = pneg %p260
        %p603 = pneg %p257
        %p604 = scmp.lt.s32.totalorder %s30, 1
        %s605 = scalar_select %p604, %s30, 1
        %s606 = smul.addr %s605, 8
        %s607 = smul.addr %s606, 8
        %s608 = scalar_lea.vmem %s10, %s607
        %p609 = pneg %p286
        %p610 = pneg %p283
        %p611 = scmp.lt.s32.totalorder %s30, 1
        %s612 = scalar_select %p611, %s30, 1
        %s613 = smul.addr %s612, 2
        %s614 = smul.addr %s613, 8
        %s615 = scalar_lea.vmem %s11, %s614
        %p616 = pneg %p312
        %p617 = pneg %p309
        %p618 = scmp.lt.s32.totalorder %s30, 1
        %s619 = scalar_select %p618, %s30, 1
        %s620 = smul.addr %s619, 2
        %s621 = scalar_lea.vmem %s12, %s620
        %p622 = pneg %p338
        %p623 = pneg %p335
        %p624 = scmp.lt.s32.totalorder %s30, 1
        %s625 = scalar_select %p624, %s30, 1
        %s626 = scalar_lea.vmem %s13, %s625
        %p627 = pneg %p364
        %p628 = pneg %p361
        %p629 = pneg %p385
        %p630 = pneg %p382
        %p631 = scmp.lt.s32.totalorder %s30, 1
        %s632 = scalar_select %p631, %s30, 1
        %s633 = smul.addr %s632, 4
        %s634 = smul.addr %s633, 8
        %s635 = scalar_lea.vmem %s5, %s634
        %p636 = scmp.lt.s32.totalorder %s30, 1
        %s637 = scalar_select %p636, %s30, 1
        %s638 = smul.addr %s637, 4
        %s639 = smul.addr %s638, 8
        %s640 = scalar_lea.vmem %s6, %s639
        %p641 = scmp.lt.s32.totalorder %s30, 1
        %s642 = scalar_select %p641, %s30, 1
        %s643 = smul.addr %s642, 4
        %s644 = smul.addr %s643, 8
        %s645 = scalar_lea.vmem %s7, %s644
        %p646 = scmp.lt.s32.totalorder %s30, 1
        %s647 = scalar_select %p646, %s30, 1
        %s648 = smul.addr %s647, 8
        %s649 = smul.addr %s648, 8
        %s650 = scalar_lea.vmem %s10, %s649
        %p651 = scmp.lt.s32.totalorder %s30, 1
        %s652 = scalar_select %p651, %s30, 1
        %s653 = smul.addr %s652, 2
        %s654 = smul.addr %s653, 8
        %s655 = scalar_lea.vmem %s11, %s654
        %p656 = scmp.lt.s32.totalorder %s30, 1
        %s657 = scalar_select %p656, %s30, 1
        %s658 = smul.addr %s657, 2
        %s659 = scalar_lea.vmem %s12, %s658
        %p660 = scmp.lt.s32.totalorder %s30, 1
        %s661 = scalar_select %p660, %s30, 1
        %s662 = scalar_lea.vmem %s13, %s661
        %p663 = scmp.eq.s32.totalorder %s30, 0
        // Predicated region
        $region89: #{tpu_custom_call.1} parent=75 // pred_check
          %p664 = pneg %p663
        $region90: #{tpu_custom_call.1} parent=75 // pred_check_branch
          %666 = sbr.rel (%p664) target = $region92
        $region91: #{tpu_custom_call.1} parent=75 // pred_region
          %v667 = vld [vmem:[%s0] sm:$0xff]
          %v668 = vld [vmem:[%s0 + $0x8] sm:$0xff]
          %v669 = vmul.f32 %v667, 5.656854
          %v670 = vmul.f32 %v668, 5.656854
          %v671 = vld [vmem:[%s1] sm:$0xff]
          %v672 = vadd.f32 %v669, %v671
          %v673 = vadd.f32 %v670, %v671
          %vm674 = vcmask 261120
          %675 = vst.msk [vmem:[#allocation9] sm:$0xff] %vm674, %v672
          %676 = vst.msk [vmem:[#allocation9 + $0x8] sm:$0xff] %vm674, %v673
        $region92: #{tpu_custom_call.1} parent=75 // pred_fallthru
          _
        %v677 = vld [vmem:[#allocation9] sm:$0xff]
        %v678 = vld [vmem:[#allocation9 + $0x8] sm:$0xff]
        %v679 = vld [vmem:[%s2] sm:$0xff]
        %v680 = vld [vmem:[%s2 + $0x8] sm:$0xff]
        %v681 = vld [vmem:[%s3] sm:$0xff]
        %v682 = vld [vmem:[#allocation3] sm:$0x1]
        %v683 = vld [vmem:[#allocation3 + $0x1] sm:$0x1]
        %v684 = vld [vmem:[%s655] sm:$0xff]
        %v685 = vld [vmem:[%s655 + $0x8] sm:$0x1]
        %v686 = vld [vmem:[%s659] sm:$0x1]
        %v687 = vld [vmem:[%s659 + $0x1] sm:$0x1]
        %v688 = vld [vmem:[%s662] sm:$0x1]
        %vm689 = vcmask 261120
        %v690 = vsel %vm689, %v677, 0.0
        %691 = vadd.xlane.f32.xlu0 %v690
        %v692 = vpop.xlane.xlu0 %691
        %v693 = vsel %vm689, %v678, 0.0
        %694 = vadd.xlane.f32.xlu0 %v693
        %v695 = vpop.xlane.xlu0 %694
        %v696 = vrcp.pop 32.0
        %v697 = vmul.f32 32.0, %v696
        %v698 = vsub.f32 1.0, %v697
        %v699 = vmul.f32 %v696, %v698
        %v700 = vadd.f32 %v696, %v699
        %vm701 = vweird.f32 %v696
        %v702 = vsel %vm701, %v696, %v700
        %v703 = vmul.f32 %v692, %v702
        %v704 = vmul.f32 %v695, %v702
        %v705 = vsub.f32 %v677, %v703
        %v706 = vsub.f32 %v678, %v704
        %v707 = vmul.f32 %v705, %v705
        %v708 = vmul.f32 %v706, %v706
        %v709 = vsel %vm689, %v707, 0.0
        %710 = vadd.xlane.f32.xlu0 %v709
        %v711 = vpop.xlane.xlu0 %710
        %v712 = vsel %vm689, %v708, 0.0
        %713 = vadd.xlane.f32.xlu0 %v712
        %v714 = vpop.xlane.xlu0 %713
        %v715 = vmul.f32 %v711, %v702
        %v716 = vmul.f32 %v714, %v702
        %v717 = vadd.f32 %v715, 1e-05
        %v718 = vadd.f32 %v716, 1e-05
        %v719 = vrsqrt.pop %v717
        %v720 = vmul.f32 %v719, %v717
        %v721 = vmul.f32 %v720, %v719
        %v722 = vmul.f32 0.5, %v721
        %v723 = vsub.f32 1.5, %v722
        %v724 = vmul.f32 %v719, %v723
        %vm725 = vweird.f32 %v717
        %vm726 = vweird.f32 %v719
        %vm727 = vmor %vm725, %vm726
        %v728 = vsel %vm727, %v719, %v724
        %v729 = vrsqrt.pop %v718
        %v730 = vmul.f32 %v729, %v718
        %v731 = vmul.f32 %v730, %v729
        %v732 = vmul.f32 0.5, %v731
        %v733 = vsub.f32 1.5, %v732
        %v734 = vmul.f32 %v729, %v733
        %vm735 = vweird.f32 %v718
        %vm736 = vweird.f32 %v729
        %vm737 = vmor %vm735, %vm736
        %v738 = vsel %vm737, %v729, %v734
        %v739 = vmul.f32 %v705, %v728
        %v740 = vmul.f32 %v706, %v738
        %v741 = vperm.slane %v684, 0
        %v742 = vmul.f32 %v739, %v741
        %v743 = vmul.f32 %v740, %v741
        %v744 = vperm.slane %v684, 1
        %v745 = vadd.f32 %v742, %v744
        %v746 = vadd.f32 %v743, %v744
        %v747 = vld [vmem:[%s635] sm:$0xff]
        %v748 = vld [vmem:[%s635 + $0x8] sm:$0xff]
        %v749 = vld [vmem:[%s635 + $0x10] sm:$0xff]
        %v750 = vld [vmem:[%s635 + $0x18] sm:$0xff]
        %v751 = vperm.slane %v686, 0
        %v753 = vsel %vm689, %v745, 0
        %v756 = vsel %vm689, %v746, 0
        %758 = vmatpush.msra.mxu0 0.0
        %759 = vmatpush.msra.mxu0 0.0
        %760 = vmatpush.msra.mxu0 0.0
        %761 = vmatpush.msra.mxu0 0.0
        %762 = vmatpush.msra.mxu0 0.0
        %763 = vmatpush.msra.mxu0 0.0
        %764 = vmatpush.msra.mxu0 0.0
        %765 = vmatpush.msra.mxu0 0.0
        %766 = vmatpush.msra.mxu0 0.0
        %767 = vmatpush.msra.mxu0 0.0
        %768 = vmatpush.msra.mxu0 0.0
        %769 = vmatpush.msra.mxu0 0.0
        %770 = vmatpush.msra.mxu0 %v750
        %771 = vmatpush.msra.mxu0 %v749
        %772 = vmatpush.msra.mxu0 %v748
        %773 = vmatpush.msra.mxu0 %v747
        %774 = vmatmul.f32.gmra.mxu0 %v753
        %v775 = vpop.f32.mrf.mxu0
        %v776 = vadd.f32 %v751, %v775
        %777 = vmatmul.f32.gmra.mxu0 %v756
        %v778 = vpop.f32.mrf.mxu0
        %v779 = vadd.f32 %v751, %v778
        %780 = vdwg.mxu0
        %v781 = vld [vmem:[%s640] sm:$0xff]
        %v782 = vld [vmem:[%s640 + $0x8] sm:$0xff]
        %v783 = vld [vmem:[%s640 + $0x10] sm:$0xff]
        %v784 = vld [vmem:[%s640 + $0x18] sm:$0xff]
        %786 = vrot.lane.b32.xlu0 %v776, 96
        %v787 = vpop.permute.xlu0 %786
        %vm788 = vcmask 64512
        %v789 = vsel %vm788, %v776, 0
        %v791 = vsel %vm788, %v787, 0
        %793 = vmatpush.xpose.msra.mxu0 0.0
        %794 = vmatpush.xpose.msra.mxu0 0.0
        %795 = vmatpush.xpose.msra.mxu0 0.0
        %796 = vmatpush.xpose.msra.mxu0 0.0
        %797 = vmatpush.xpose.msra.mxu0 0.0
        %798 = vmatpush.xpose.msra.mxu0 0.0
        %799 = vmatpush.xpose.msra.mxu0 0.0
        %800 = vmatpush.xpose.msra.mxu0 0.0
        %801 = vmatpush.xpose.msra.mxu0 0.0
        %802 = vmatpush.xpose.msra.mxu0 0.0
        %803 = vmatpush.xpose.msra.mxu0 0.0
        %804 = vmatpush.xpose.msra.mxu0 0.0
        %805 = vmatpush.xpose.msra.mxu0 0.0
        %806 = vmatpush.xpose.msra.mxu0 0.0
        %807 = vmatpush.xpose.msra.mxu0 0.0
        %808 = vmatpush.xpose.msra.mxu0 %v791
        %809 = vmatmul.f32.gmra.mxu0 %v789
        %v810 = vpop.f32.mrf.mxu0
        %v811 = vadd.f32 0.0, %v810
        %812 = vdwg.mxu0
        %814 = vrot.lane.b32.xlu0 %v779, 96
        %v815 = vpop.permute.xlu0 %814
        %v816 = vsel %vm788, %v779, 0
        %v818 = vsel %vm788, %v815, 0
        %820 = vmatpush.xpose.msra.mxu0 0.0
        %821 = vmatpush.xpose.msra.mxu0 0.0
        %822 = vmatpush.xpose.msra.mxu0 0.0
        %823 = vmatpush.xpose.msra.mxu0 0.0
        %824 = vmatpush.xpose.msra.mxu0 0.0
        %825 = vmatpush.xpose.msra.mxu0 0.0
        %826 = vmatpush.xpose.msra.mxu0 0.0
        %827 = vmatpush.xpose.msra.mxu0 0.0
        %828 = vmatpush.xpose.msra.mxu0 0.0
        %829 = vmatpush.xpose.msra.mxu0 0.0
        %830 = vmatpush.xpose.msra.mxu0 0.0
        %831 = vmatpush.xpose.msra.mxu0 0.0
        %832 = vmatpush.xpose.msra.mxu0 0.0
        %833 = vmatpush.xpose.msra.mxu0 0.0
        %834 = vmatpush.xpose.msra.mxu0 0.0
        %835 = vmatpush.xpose.msra.mxu0 %v818
        %836 = vmatmul.f32.gmra.mxu0 %v816
        %v837 = vpop.f32.mrf.mxu0
        %v838 = vadd.f32 0.0, %v837
        %839 = vdwg.mxu0
        %v840 = vmul.f32 %v811, 0.35355338
        %v841 = vmul.f32 %v838, 0.35355338
        %v842 = vadd.f32 %v840, %v681
        %v843 = vadd.f32 %v841, %v681
        %v844 = vsel %vm788, %v842, -inf
        %845 = vmax.xlane.f32.xlu0 %v844
        %v846 = vpop.xlane.xlu0 %845
        %v847 = vsel %vm788, %v843, -inf
        %848 = vmax.xlane.f32.xlu0 %v847
        %v849 = vpop.xlane.xlu0 %848
        %v850 = vsub.f32 %v842, %v846
        %v851 = vsub.f32 %v843, %v849
        %v852 = vmul.f32 %v850, 1.442695
        %v853 = vpow.pop %v852
        %v854 = vmul.f32 %v851, 1.442695
        %v855 = vpow.pop %v854
        %v856 = vsel %vm788, %v853, 0.0
        %857 = vadd.xlane.f32.xlu0 %v856
        %v858 = vpop.xlane.xlu0 %857
        %v859 = vsel %vm788, %v855, 0.0
        %860 = vadd.xlane.f32.xlu0 %v859
        %v861 = vpop.xlane.xlu0 %860
        %v862 = vrcp.pop %v858
        %v863 = vmul.f32 %v858, %v862
        %v864 = vsub.f32 1.0, %v863
        %v865 = vmul.f32 %v862, %v864
        %v866 = vadd.f32 %v862, %v865
        %vm867 = vweird.f32 %v858
        %vm868 = vweird.f32 %v862
        %vm869 = vmor %vm867, %vm868
        %v870 = vsel %vm869, %v862, %v866
        %v871 = vand.u32 2147483647, %v858
        %vm872 = vcmp.eq.f32.partialorder %v871, 8.507059e+37
        %v873 = vand.u32 %v858, 2147483648
        %v874 = vor.u32 1.1754944e-38, %v873
        %v875 = vsel %vm872, %v874, %v870
        %v876 = vrcp.pop %v861
        %v877 = vmul.f32 %v861, %v876
        %v878 = vsub.f32 1.0, %v877
        %v879 = vmul.f32 %v876, %v878
        %v880 = vadd.f32 %v876, %v879
        %vm881 = vweird.f32 %v861
        %vm882 = vweird.f32 %v876
        %vm883 = vmor %vm881, %vm882
        %v884 = vsel %vm883, %v876, %v880
        %v885 = vand.u32 2147483647, %v861
        %vm886 = vcmp.eq.f32.partialorder %v885, 8.507059e+37
        %v887 = vand.u32 %v861, 2147483648
        %v888 = vor.u32 1.1754944e-38, %v887
        %v889 = vsel %vm886, %v888, %v884
        %v890 = vmul.f32 %v853, %v875
        %v891 = vmul.f32 %v855, %v889
        %892 = vrot.lane.b32.xlu0 %v776, 64
        %v893 = vpop.permute.xlu0 %892
        %v896 = vsel %vm788, %v890, 0
        %898 = vmatpush.msra.mxu0 0.0
        %899 = vmatpush.msra.mxu0 0.0
        %900 = vmatpush.msra.mxu0 0.0
        %901 = vmatpush.msra.mxu0 0.0
        %902 = vmatpush.msra.mxu0 0.0
        %903 = vmatpush.msra.mxu0 0.0
        %904 = vmatpush.msra.mxu0 0.0
        %905 = vmatpush.msra.mxu0 0.0
        %906 = vmatpush.msra.mxu0 0.0
        %907 = vmatpush.msra.mxu0 0.0
        %908 = vmatpush.msra.mxu0 0.0
        %909 = vmatpush.msra.mxu0 0.0
        %910 = vmatpush.msra.mxu0 0.0
        %911 = vmatpush.msra.mxu0 0.0
        %912 = vmatpush.msra.mxu0 0.0
        %913 = vmatpush.msra.mxu0 %v893
        %914 = vmatmul.f32.gmra.mxu0 %v896
        %v915 = vpop.f32.mrf.mxu0
        %v916 = vadd.f32 0.0, %v915
        %917 = vdwg.mxu0
        %918 = vrot.lane.b32.xlu0 %v779, 64
        %v919 = vpop.permute.xlu0 %918
        %v922 = vsel %vm788, %v891, 0
        %924 = vmatpush.msra.mxu0 0.0
        %925 = vmatpush.msra.mxu0 0.0
        %926 = vmatpush.msra.mxu0 0.0
        %927 = vmatpush.msra.mxu0 0.0
        %928 = vmatpush.msra.mxu0 0.0
        %929 = vmatpush.msra.mxu0 0.0
        %930 = vmatpush.msra.mxu0 0.0
        %931 = vmatpush.msra.mxu0 0.0
        %932 = vmatpush.msra.mxu0 0.0
        %933 = vmatpush.msra.mxu0 0.0
        %934 = vmatpush.msra.mxu0 0.0
        %935 = vmatpush.msra.mxu0 0.0
        %936 = vmatpush.msra.mxu0 0.0
        %937 = vmatpush.msra.mxu0 0.0
        %938 = vmatpush.msra.mxu0 0.0
        %939 = vmatpush.msra.mxu0 %v919
        %940 = vmatmul.f32.gmra.mxu0 %v922
        %v941 = vpop.f32.mrf.mxu0
        %v942 = vadd.f32 0.0, %v941
        %943 = vdwg.mxu0
        %944 = vst.msk [vmem:[#allocation2] sm:$0xff] %vm788, %v916
        %945 = vst.msk [vmem:[#allocation2 + $0x8] sm:$0xff] %vm788, %v942
        %946 = vrot.lane.b32.xlu0 %v776, 120
        %v947 = vpop.permute.xlu0 %946
        %948 = vrot.lane.b32.xlu0 %v776, 88
        %v949 = vpop.permute.xlu0 %948
        %v950 = vsel %vm788, %v947, 0
        %v952 = vsel %vm788, %v949, 0
        %954 = vmatpush.xpose.msra.mxu0 0.0
        %955 = vmatpush.xpose.msra.mxu0 0.0
        %956 = vmatpush.xpose.msra.mxu0 0.0
        %957 = vmatpush.xpose.msra.mxu0 0.0
        %958 = vmatpush.xpose.msra.mxu0 0.0
        %959 = vmatpush.xpose.msra.mxu0 0.0
        %960 = vmatpush.xpose.msra.mxu0 0.0
        %961 = vmatpush.xpose.msra.mxu0 0.0
        %962 = vmatpush.xpose.msra.mxu0 0.0
        %963 = vmatpush.xpose.msra.mxu0 0.0
        %964 = vmatpush.xpose.msra.mxu0 0.0
        %965 = vmatpush.xpose.msra.mxu0 0.0
        %966 = vmatpush.xpose.msra.mxu0 0.0
        %967 = vmatpush.xpose.msra.mxu0 0.0
        %968 = vmatpush.xpose.msra.mxu0 0.0
        %969 = vmatpush.xpose.msra.mxu0 %v952
        %970 = vmatmul.f32.gmra.mxu0 %v950
        %v971 = vpop.f32.mrf.mxu0
        %v972 = vadd.f32 0.0, %v971
        %973 = vdwg.mxu0
        %974 = vrot.lane.b32.xlu0 %v779, 120
        %v975 = vpop.permute.xlu0 %974
        %976 = vrot.lane.b32.xlu0 %v779, 88
        %v977 = vpop.permute.xlu0 %976
        %v978 = vsel %vm788, %v975, 0
        %v980 = vsel %vm788, %v977, 0
        %982 = vmatpush.xpose.msra.mxu0 0.0
        %983 = vmatpush.xpose.msra.mxu0 0.0
        %984 = vmatpush.xpose.msra.mxu0 0.0
        %985 = vmatpush.xpose.msra.mxu0 0.0
        %986 = vmatpush.xpose.msra.mxu0 0.0
        %987 = vmatpush.xpose.msra.mxu0 0.0
        %988 = vmatpush.xpose.msra.mxu0 0.0
        %989 = vmatpush.xpose.msra.mxu0 0.0
        %990 = vmatpush.xpose.msra.mxu0 0.0
        %991 = vmatpush.xpose.msra.mxu0 0.0
        %992 = vmatpush.xpose.msra.mxu0 0.0
        %993 = vmatpush.xpose.msra.mxu0 0.0
        %994 = vmatpush.xpose.msra.mxu0 0.0
        %995 = vmatpush.xpose.msra.mxu0 0.0
        %996 = vmatpush.xpose.msra.mxu0 0.0
        %997 = vmatpush.xpose.msra.mxu0 %v980
        %998 = vmatmul.f32.gmra.mxu0 %v978
        %v999 = vpop.f32.mrf.mxu0
        %v1000 = vadd.f32 0.0, %v999
        %1001 = vdwg.mxu0
        %v1002 = vmul.f32 %v972, 0.35355338
        %v1003 = vmul.f32 %v1000, 0.35355338
        %v1004 = vadd.f32 %v1002, %v681
        %v1005 = vadd.f32 %v1003, %v681
        %v1006 = vsel %vm788, %v1004, -inf
        %1007 = vmax.xlane.f32.xlu0 %v1006
        %v1008 = vpop.xlane.xlu0 %1007
        %v1009 = vsel %vm788, %v1005, -inf
        %1010 = vmax.xlane.f32.xlu0 %v1009
        %v1011 = vpop.xlane.xlu0 %1010
        %v1012 = vsub.f32 %v1004, %v1008
        %v1013 = vsub.f32 %v1005, %v1011
        %v1014 = vmul.f32 %v1012, 1.442695
        %v1015 = vpow.pop %v1014
        %v1016 = vmul.f32 %v1013, 1.442695
        %v1017 = vpow.pop %v1016
        %v1018 = vsel %vm788, %v1015, 0.0
        %1019 = vadd.xlane.f32.xlu0 %v1018
        %v1020 = vpop.xlane.xlu0 %1019
        %v1021 = vsel %vm788, %v1017, 0.0
        %1022 = vadd.xlane.f32.xlu0 %v1021
        %v1023 = vpop.xlane.xlu0 %1022
        %v1024 = vrcp.pop %v1020
        %v1025 = vmul.f32 %v1020, %v1024
        %v1026 = vsub.f32 1.0, %v1025
        %v1027 = vmul.f32 %v1024, %v1026
        %v1028 = vadd.f32 %v1024, %v1027
        %vm1029 = vweird.f32 %v1020
        %vm1030 = vweird.f32 %v1024
        %vm1031 = vmor %vm1029, %vm1030
        %v1032 = vsel %vm1031, %v1024, %v1028
        %v1033 = vand.u32 2147483647, %v1020
        %vm1034 = vcmp.eq.f32.partialorder %v1033, 8.507059e+37
        %v1035 = vand.u32 %v1020, 2147483648
        %v1036 = vor.u32 1.1754944e-38, %v1035
        %v1037 = vsel %vm1034, %v1036, %v1032
        %v1038 = vrcp.pop %v1023
        %v1039 = vmul.f32 %v1023, %v1038
        %v1040 = vsub.f32 1.0, %v1039
        %v1041 = vmul.f32 %v1038, %v1040
        %v1042 = vadd.f32 %v1038, %v1041
        %vm1043 = vweird.f32 %v1023
        %vm1044 = vweird.f32 %v1038
        %vm1045 = vmor %vm1043, %vm1044
        %v1046 = vsel %vm1045, %v1038, %v1042
        %v1047 = vand.u32 2147483647, %v1023
        %vm1048 = vcmp.eq.f32.partialorder %v1047, 8.507059e+37
        %v1049 = vand.u32 %v1023, 2147483648
        %v1050 = vor.u32 1.1754944e-38, %v1049
        %v1051 = vsel %vm1048, %v1050, %v1046
        %v1052 = vmul.f32 %v1015, %v1037
        %v1053 = vmul.f32 %v1017, %v1051
        %1054 = vrot.lane.b32.xlu0 %v776, 56
        %v1055 = vpop.permute.xlu0 %1054
        %v1058 = vsel %vm788, %v1052, 0
        %1060 = vmatpush.msra.mxu0 0.0
        %1061 = vmatpush.msra.mxu0 0.0
        %1062 = vmatpush.msra.mxu0 0.0
        %1063 = vmatpush.msra.mxu0 0.0
        %1064 = vmatpush.msra.mxu0 0.0
        %1065 = vmatpush.msra.mxu0 0.0
        %1066 = vmatpush.msra.mxu0 0.0
        %1067 = vmatpush.msra.mxu0 0.0
        %1068 = vmatpush.msra.mxu0 0.0
        %1069 = vmatpush.msra.mxu0 0.0
        %1070 = vmatpush.msra.mxu0 0.0
        %1071 = vmatpush.msra.mxu0 0.0
        %1072 = vmatpush.msra.mxu0 0.0
        %1073 = vmatpush.msra.mxu0 0.0
        %1074 = vmatpush.msra.mxu0 0.0
        %1075 = vmatpush.msra.mxu0 %v1055
        %1076 = vmatmul.f32.gmra.mxu0 %v1058
        %v1077 = vpop.f32.mrf.mxu0
        %v1078 = vadd.f32 0.0, %v1077
        %1079 = vdwg.mxu0
        %1080 = vrot.lane.b32.xlu0 %v779, 56
        %v1081 = vpop.permute.xlu0 %1080
        %v1084 = vsel %vm788, %v1053, 0
        %1086 = vmatpush.msra.mxu0 0.0
        %1087 = vmatpush.msra.mxu0 0.0
        %1088 = vmatpush.msra.mxu0 0.0
        %1089 = vmatpush.msra.mxu0 0.0
        %1090 = vmatpush.msra.mxu0 0.0
        %1091 = vmatpush.msra.mxu0 0.0
        %1092 = vmatpush.msra.mxu0 0.0
        %1093 = vmatpush.msra.mxu0 0.0
        %1094 = vmatpush.msra.mxu0 0.0
        %1095 = vmatpush.msra.mxu0 0.0
        %1096 = vmatpush.msra.mxu0 0.0
        %1097 = vmatpush.msra.mxu0 0.0
        %1098 = vmatpush.msra.mxu0 0.0
        %1099 = vmatpush.msra.mxu0 0.0
        %1100 = vmatpush.msra.mxu0 0.0
        %1101 = vmatpush.msra.mxu0 %v1081
        %1102 = vmatmul.f32.gmra.mxu0 %v1084
        %v1103 = vpop.f32.mrf.mxu0
        %v1104 = vadd.f32 0.0, %v1103
        %1105 = vdwg.mxu0
        %1108 = vrot.lane.b32.xlu0 %v1078, 8
        %v1109 = vpop.permute.xlu0 %1108
        %1110 = vrot.lane.b32.xlu0 %v1104, 8
        %v1111 = vpop.permute.xlu0 %1110
        %vm1114 = vcmask 130112
        %1115 = vst.msk [vmem:[#allocation2] sm:$0xff] %vm1114, %v1109
        %1116 = vst.msk [vmem:[#allocation2 + $0x8] sm:$0xff] %vm1114, %v1111
        %1117 = vrot.lane.b32.xlu0 %v776, 112
        %v1118 = vpop.permute.xlu0 %1117
        %1119 = vrot.lane.b32.xlu0 %v776, 80
        %v1120 = vpop.permute.xlu0 %1119
        %v1121 = vsel %vm788, %v1118, 0
        %v1123 = vsel %vm788, %v1120, 0
        %1125 = vmatpush.xpose.msra.mxu0 0.0
        %1126 = vmatpush.xpose.msra.mxu0 0.0
        %1127 = vmatpush.xpose.msra.mxu0 0.0
        %1128 = vmatpush.xpose.msra.mxu0 0.0
        %1129 = vmatpush.xpose.msra.mxu0 0.0
        %1130 = vmatpush.xpose.msra.mxu0 0.0
        %1131 = vmatpush.xpose.msra.mxu0 0.0
        %1132 = vmatpush.xpose.msra.mxu0 0.0
        %1133 = vmatpush.xpose.msra.mxu0 0.0
        %1134 = vmatpush.xpose.msra.mxu0 0.0
        %1135 = vmatpush.xpose.msra.mxu0 0.0
        %1136 = vmatpush.xpose.msra.mxu0 0.0
        %1137 = vmatpush.xpose.msra.mxu0 0.0
        %1138 = vmatpush.xpose.msra.mxu0 0.0
        %1139 = vmatpush.xpose.msra.mxu0 0.0
        %1140 = vmatpush.xpose.msra.mxu0 %v1123
        %1141 = vmatmul.f32.gmra.mxu0 %v1121
        %v1142 = vpop.f32.mrf.mxu0
        %v1143 = vadd.f32 0.0, %v1142
        %1144 = vdwg.mxu0
        %1145 = vrot.lane.b32.xlu0 %v779, 112
        %v1146 = vpop.permute.xlu0 %1145
        %1147 = vrot.lane.b32.xlu0 %v779, 80
        %v1148 = vpop.permute.xlu0 %1147
        %v1149 = vsel %vm788, %v1146, 0
        %v1151 = vsel %vm788, %v1148, 0
        %1153 = vmatpush.xpose.msra.mxu0 0.0
        %1154 = vmatpush.xpose.msra.mxu0 0.0
        %1155 = vmatpush.xpose.msra.mxu0 0.0
        %1156 = vmatpush.xpose.msra.mxu0 0.0
        %1157 = vmatpush.xpose.msra.mxu0 0.0
        %1158 = vmatpush.xpose.msra.mxu0 0.0
        %1159 = vmatpush.xpose.msra.mxu0 0.0
        %1160 = vmatpush.xpose.msra.mxu0 0.0
        %1161 = vmatpush.xpose.msra.mxu0 0.0
        %1162 = vmatpush.xpose.msra.mxu0 0.0
        %1163 = vmatpush.xpose.msra.mxu0 0.0
        %1164 = vmatpush.xpose.msra.mxu0 0.0
        %1165 = vmatpush.xpose.msra.mxu0 0.0
        %1166 = vmatpush.xpose.msra.mxu0 0.0
        %1167 = vmatpush.xpose.msra.mxu0 0.0
        %1168 = vmatpush.xpose.msra.mxu0 %v1151
        %1169 = vmatmul.f32.gmra.mxu0 %v1149
        %v1170 = vpop.f32.mrf.mxu0
        %v1171 = vadd.f32 0.0, %v1170
        %1172 = vdwg.mxu0
        %v1173 = vmul.f32 %v1143, 0.35355338
        %v1174 = vmul.f32 %v1171, 0.35355338
        %v1175 = vadd.f32 %v1173, %v681
        %v1176 = vadd.f32 %v1174, %v681
        %v1177 = vsel %vm788, %v1175, -inf
        %1178 = vmax.xlane.f32.xlu0 %v1177
        %v1179 = vpop.xlane.xlu0 %1178
        %v1180 = vsel %vm788, %v1176, -inf
        %1181 = vmax.xlane.f32.xlu0 %v1180
        %v1182 = vpop.xlane.xlu0 %1181
        %v1183 = vsub.f32 %v1175, %v1179
        %v1184 = vsub.f32 %v1176, %v1182
        %v1185 = vmul.f32 %v1183, 1.442695
        %v1186 = vpow.pop %v1185
        %v1187 = vmul.f32 %v1184, 1.442695
        %v1188 = vpow.pop %v1187
        %v1189 = vsel %vm788, %v1186, 0.0
        %1190 = vadd.xlane.f32.xlu0 %v1189
        %v1191 = vpop.xlane.xlu0 %1190
        %v1192 = vsel %vm788, %v1188, 0.0
        %1193 = vadd.xlane.f32.xlu0 %v1192
        %v1194 = vpop.xlane.xlu0 %1193
        %v1195 = vrcp.pop %v1191
        %v1196 = vmul.f32 %v1191, %v1195
        %v1197 = vsub.f32 1.0, %v1196
        %v1198 = vmul.f32 %v1195, %v1197
        %v1199 = vadd.f32 %v1195, %v1198
        %vm1200 = vweird.f32 %v1191
        %vm1201 = vweird.f32 %v1195
        %vm1202 = vmor %vm1200, %vm1201
        %v1203 = vsel %vm1202, %v1195, %v1199
        %v1204 = vand.u32 2147483647, %v1191
        %vm1205 = vcmp.eq.f32.partialorder %v1204, 8.507059e+37
        %v1206 = vand.u32 %v1191, 2147483648
        %v1207 = vor.u32 1.1754944e-38, %v1206
        %v1208 = vsel %vm1205, %v1207, %v1203
        %v1209 = vrcp.pop %v1194
        %v1210 = vmul.f32 %v1194, %v1209
        %v1211 = vsub.f32 1.0, %v1210
        %v1212 = vmul.f32 %v1209, %v1211
        %v1213 = vadd.f32 %v1209, %v1212
        %vm1214 = vweird.f32 %v1194
        %vm1215 = vweird.f32 %v1209
        %vm1216 = vmor %vm1214, %vm1215
        %v1217 = vsel %vm1216, %v1209, %v1213
        %v1218 = vand.u32 2147483647, %v1194
        %vm1219 = vcmp.eq.f32.partialorder %v1218, 8.507059e+37
        %v1220 = vand.u32 %v1194, 2147483648
        %v1221 = vor.u32 1.1754944e-38, %v1220
        %v1222 = vsel %vm1219, %v1221, %v1217
        %v1223 = vmul.f32 %v1186, %v1208
        %v1224 = vmul.f32 %v1188, %v1222
        %1225 = vrot.lane.b32.xlu0 %v776, 48
        %v1226 = vpop.permute.xlu0 %1225
        %v1229 = vsel %vm788, %v1223, 0
        %1231 = vmatpush.msra.mxu0 0.0
        %1232 = vmatpush.msra.mxu0 0.0
        %1233 = vmatpush.msra.mxu0 0.0
        %1234 = vmatpush.msra.mxu0 0.0
        %1235 = vmatpush.msra.mxu0 0.0
        %1236 = vmatpush.msra.mxu0 0.0
        %1237 = vmatpush.msra.mxu0 0.0
        %1238 = vmatpush.msra.mxu0 0.0
        %1239 = vmatpush.msra.mxu0 0.0
        %1240 = vmatpush.msra.mxu0 0.0
        %1241 = vmatpush.msra.mxu0 0.0
        %1242 = vmatpush.msra.mxu0 0.0
        %1243 = vmatpush.msra.mxu0 0.0
        %1244 = vmatpush.msra.mxu0 0.0
        %1245 = vmatpush.msra.mxu0 0.0
        %1246 = vmatpush.msra.mxu0 %v1226
        %1247 = vmatmul.f32.gmra.mxu0 %v1229
        %v1248 = vpop.f32.mrf.mxu0
        %v1249 = vadd.f32 0.0, %v1248
        %1250 = vdwg.mxu0
        %1251 = vrot.lane.b32.xlu0 %v779, 48
        %v1252 = vpop.permute.xlu0 %1251
        %v1255 = vsel %vm788, %v1224, 0
        %1257 = vmatpush.msra.mxu0 0.0
        %1258 = vmatpush.msra.mxu0 0.0
        %1259 = vmatpush.msra.mxu0 0.0
        %1260 = vmatpush.msra.mxu0 0.0
        %1261 = vmatpush.msra.mxu0 0.0
        %1262 = vmatpush.msra.mxu0 0.0
        %1263 = vmatpush.msra.mxu0 0.0
        %1264 = vmatpush.msra.mxu0 0.0
        %1265 = vmatpush.msra.mxu0 0.0
        %1266 = vmatpush.msra.mxu0 0.0
        %1267 = vmatpush.msra.mxu0 0.0
        %1268 = vmatpush.msra.mxu0 0.0
        %1269 = vmatpush.msra.mxu0 0.0
        %1270 = vmatpush.msra.mxu0 0.0
        %1271 = vmatpush.msra.mxu0 0.0
        %1272 = vmatpush.msra.mxu0 %v1252
        %1273 = vmatmul.f32.gmra.mxu0 %v1255
        %v1274 = vpop.f32.mrf.mxu0
        %v1275 = vadd.f32 0.0, %v1274
        %1276 = vdwg.mxu0
        %1279 = vrot.lane.b32.xlu0 %v1249, 16
        %v1280 = vpop.permute.xlu0 %1279
        %1281 = vrot.lane.b32.xlu0 %v1275, 16
        %v1282 = vpop.permute.xlu0 %1281
        %vm1285 = vcmask 195712
        %1286 = vst.msk [vmem:[#allocation2] sm:$0xff] %vm1285, %v1280
        %1287 = vst.msk [vmem:[#allocation2 + $0x8] sm:$0xff] %vm1285, %v1282
        %1288 = vrot.lane.b32.xlu0 %v776, 104
        %v1289 = vpop.permute.xlu0 %1288
        %1290 = vrot.lane.b32.xlu0 %v776, 72
        %v1291 = vpop.permute.xlu0 %1290
        %v1292 = vsel %vm788, %v1289, 0
        %v1294 = vsel %vm788, %v1291, 0
        %1296 = vmatpush.xpose.msra.mxu0 0.0
        %1297 = vmatpush.xpose.msra.mxu0 0.0
        %1298 = vmatpush.xpose.msra.mxu0 0.0
        %1299 = vmatpush.xpose.msra.mxu0 0.0
        %1300 = vmatpush.xpose.msra.mxu0 0.0
        %1301 = vmatpush.xpose.msra.mxu0 0.0
        %1302 = vmatpush.xpose.msra.mxu0 0.0
        %1303 = vmatpush.xpose.msra.mxu0 0.0
        %1304 = vmatpush.xpose.msra.mxu0 0.0
        %1305 = vmatpush.xpose.msra.mxu0 0.0
        %1306 = vmatpush.xpose.msra.mxu0 0.0
        %1307 = vmatpush.xpose.msra.mxu0 0.0
        %1308 = vmatpush.xpose.msra.mxu0 0.0
        %1309 = vmatpush.xpose.msra.mxu0 0.0
        %1310 = vmatpush.xpose.msra.mxu0 0.0
        %1311 = vmatpush.xpose.msra.mxu0 %v1294
        %1312 = vmatmul.f32.gmra.mxu0 %v1292
        %v1313 = vpop.f32.mrf.mxu0
        %v1314 = vadd.f32 0.0, %v1313
        %1315 = vdwg.mxu0
        %1316 = vrot.lane.b32.xlu0 %v779, 104
        %v1317 = vpop.permute.xlu0 %1316
        %1318 = vrot.lane.b32.xlu0 %v779, 72
        %v1319 = vpop.permute.xlu0 %1318
        %v1320 = vsel %vm788, %v1317, 0
        %v1322 = vsel %vm788, %v1319, 0
        %1324 = vmatpush.xpose.msra.mxu0 0.0
        %1325 = vmatpush.xpose.msra.mxu0 0.0
        %1326 = vmatpush.xpose.msra.mxu0 0.0
        %1327 = vmatpush.xpose.msra.mxu0 0.0
        %1328 = vmatpush.xpose.msra.mxu0 0.0
        %1329 = vmatpush.xpose.msra.mxu0 0.0
        %1330 = vmatpush.xpose.msra.mxu0 0.0
        %1331 = vmatpush.xpose.msra.mxu0 0.0
        %1332 = vmatpush.xpose.msra.mxu0 0.0
        %1333 = vmatpush.xpose.msra.mxu0 0.0
        %1334 = vmatpush.xpose.msra.mxu0 0.0
        %1335 = vmatpush.xpose.msra.mxu0 0.0
        %1336 = vmatpush.xpose.msra.mxu0 0.0
        %1337 = vmatpush.xpose.msra.mxu0 0.0
        %1338 = vmatpush.xpose.msra.mxu0 0.0
        %1339 = vmatpush.xpose.msra.mxu0 %v1322
        %1340 = vmatmul.f32.gmra.mxu0 %v1320
        %v1341 = vpop.f32.mrf.mxu0
        %v1342 = vadd.f32 0.0, %v1341
        %1343 = vdwg.mxu0
        %v1344 = vmul.f32 %v1314, 0.35355338
        %v1345 = vmul.f32 %v1342, 0.35355338
        %v1346 = vadd.f32 %v1344, %v681
        %v1347 = vadd.f32 %v1345, %v681
        %v1348 = vsel %vm788, %v1346, -inf
        %1349 = vmax.xlane.f32.xlu0 %v1348
        %v1350 = vpop.xlane.xlu0 %1349
        %v1351 = vsel %vm788, %v1347, -inf
        %1352 = vmax.xlane.f32.xlu0 %v1351
        %v1353 = vpop.xlane.xlu0 %1352
        %v1354 = vsub.f32 %v1346, %v1350
        %v1355 = vsub.f32 %v1347, %v1353
        %v1356 = vmul.f32 %v1354, 1.442695
        %v1357 = vpow.pop %v1356
        %v1358 = vmul.f32 %v1355, 1.442695
        %v1359 = vpow.pop %v1358
        %v1360 = vsel %vm788, %v1357, 0.0
        %1361 = vadd.xlane.f32.xlu0 %v1360
        %v1362 = vpop.xlane.xlu0 %1361
        %v1363 = vsel %vm788, %v1359, 0.0
        %1364 = vadd.xlane.f32.xlu0 %v1363
        %v1365 = vpop.xlane.xlu0 %1364
        %v1366 = vrcp.pop %v1362
        %v1367 = vmul.f32 %v1362, %v1366
        %v1368 = vsub.f32 1.0, %v1367
        %v1369 = vmul.f32 %v1366, %v1368
        %v1370 = vadd.f32 %v1366, %v1369
        %vm1371 = vweird.f32 %v1362
        %vm1372 = vweird.f32 %v1366
        %vm1373 = vmor %vm1371, %vm1372
        %v1374 = vsel %vm1373, %v1366, %v1370
        %v1375 = vand.u32 2147483647, %v1362
        %vm1376 = vcmp.eq.f32.partialorder %v1375, 8.507059e+37
        %v1377 = vand.u32 %v1362, 2147483648
        %v1378 = vor.u32 1.1754944e-38, %v1377
        %v1379 = vsel %vm1376, %v1378, %v1374
        %v1380 = vrcp.pop %v1365
        %v1381 = vmul.f32 %v1365, %v1380
        %v1382 = vsub.f32 1.0, %v1381
        %v1383 = vmul.f32 %v1380, %v1382
        %v1384 = vadd.f32 %v1380, %v1383
        %vm1385 = vweird.f32 %v1365
        %vm1386 = vweird.f32 %v1380
        %vm1387 = vmor %vm1385, %vm1386
        %v1388 = vsel %vm1387, %v1380, %v1384
        %v1389 = vand.u32 2147483647, %v1365
        %vm1390 = vcmp.eq.f32.partialorder %v1389, 8.507059e+37
        %v1391 = vand.u32 %v1365, 2147483648
        %v1392 = vor.u32 1.1754944e-38, %v1391
        %v1393 = vsel %vm1390, %v1392, %v1388
        %v1394 = vmul.f32 %v1357, %v1379
        %v1395 = vmul.f32 %v1359, %v1393
        %1396 = vrot.lane.b32.xlu0 %v776, 40
        %v1397 = vpop.permute.xlu0 %1396
        %v1400 = vsel %vm788, %v1394, 0
        %1402 = vmatpush.msra.mxu0 0.0
        %1403 = vmatpush.msra.mxu0 0.0
        %1404 = vmatpush.msra.mxu0 0.0
        %1405 = vmatpush.msra.mxu0 0.0
        %1406 = vmatpush.msra.mxu0 0.0
        %1407 = vmatpush.msra.mxu0 0.0
        %1408 = vmatpush.msra.mxu0 0.0
        %1409 = vmatpush.msra.mxu0 0.0
        %1410 = vmatpush.msra.mxu0 0.0
        %1411 = vmatpush.msra.mxu0 0.0
        %1412 = vmatpush.msra.mxu0 0.0
        %1413 = vmatpush.msra.mxu0 0.0
        %1414 = vmatpush.msra.mxu0 0.0
        %1415 = vmatpush.msra.mxu0 0.0
        %1416 = vmatpush.msra.mxu0 0.0
        %1417 = vmatpush.msra.mxu0 %v1397
        %1418 = vmatmul.f32.gmra.mxu0 %v1400
        %v1419 = vpop.f32.mrf.mxu0
        %v1420 = vadd.f32 0.0, %v1419
        %1421 = vdwg.mxu0
        %1422 = vrot.lane.b32.xlu0 %v779, 40
        %v1423 = vpop.permute.xlu0 %1422
        %v1426 = vsel %vm788, %v1395, 0
        %1428 = vmatpush.msra.mxu0 0.0
        %1429 = vmatpush.msra.mxu0 0.0
        %1430 = vmatpush.msra.mxu0 0.0
        %1431 = vmatpush.msra.mxu0 0.0
        %1432 = vmatpush.msra.mxu0 0.0
        %1433 = vmatpush.msra.mxu0 0.0
        %1434 = vmatpush.msra.mxu0 0.0
        %1435 = vmatpush.msra.mxu0 0.0
        %1436 = vmatpush.msra.mxu0 0.0
        %1437 = vmatpush.msra.mxu0 0.0
        %1438 = vmatpush.msra.mxu0 0.0
        %1439 = vmatpush.msra.mxu0 0.0
        %1440 = vmatpush.msra.mxu0 0.0
        %1441 = vmatpush.msra.mxu0 0.0
        %1442 = vmatpush.msra.mxu0 0.0
        %1443 = vmatpush.msra.mxu0 %v1423
        %1444 = vmatmul.f32.gmra.mxu0 %v1426
        %v1445 = vpop.f32.mrf.mxu0
        %v1446 = vadd.f32 0.0, %v1445
        %1447 = vdwg.mxu0
        %1450 = vrot.lane.b32.xlu0 %v1420, 24
        %v1451 = vpop.permute.xlu0 %1450
        %1452 = vrot.lane.b32.xlu0 %v1446, 24
        %v1453 = vpop.permute.xlu0 %1452
        %vm1456 = vcmask 261312
        %1457 = vst.msk [vmem:[#allocation2] sm:$0xff] %vm1456, %v1451
        %1458 = vst.msk [vmem:[#allocation2 + $0x8] sm:$0xff] %vm1456, %v1453
        %v1459 = vld [vmem:[#allocation2] sm:$0xff]
        %v1460 = vld [vmem:[#allocation2 + $0x8] sm:$0xff]
        %v1461 = vperm.slane %v684, 6
        %v1463 = vsel %vm689, %v1459, 0
        %v1466 = vsel %vm689, %v1460, 0
        %1468 = vmatpush.msra.mxu0 0.0
        %1469 = vmatpush.msra.mxu0 0.0
        %1470 = vmatpush.msra.mxu0 0.0
        %1471 = vmatpush.msra.mxu0 0.0
        %1472 = vmatpush.msra.mxu0 0.0
        %1473 = vmatpush.msra.mxu0 0.0
        %1474 = vmatpush.msra.mxu0 0.0
        %1475 = vmatpush.msra.mxu0 0.0
        %1476 = vmatpush.msra.mxu0 0.0
        %1477 = vmatpush.msra.mxu0 0.0
        %1478 = vmatpush.msra.mxu0 0.0
        %1479 = vmatpush.msra.mxu0 0.0
        %1480 = vmatpush.msra.mxu0 %v784
        %1481 = vmatpush.msra.mxu0 %v783
        %1482 = vmatpush.msra.mxu0 %v782
        %1483 = vmatpush.msra.mxu0 %v781
        %1484 = vmatmul.f32.gmra.mxu0 %v1463
        %v1485 = vpop.f32.mrf.mxu0
        %v1486 = vadd.f32 %v1461, %v1485
        %1487 = vmatmul.f32.gmra.mxu0 %v1466
        %v1488 = vpop.f32.mrf.mxu0
        %v1489 = vadd.f32 %v1461, %v1488
        %1490 = vdwg.mxu0
        %v1491 = vadd.f32 %v677, %v1486
        %v1492 = vadd.f32 %v678, %v1489
        %v1493 = vsel %vm689, %v1491, 0.0
        %1494 = vadd.xlane.f32.xlu0 %v1493
        %v1495 = vpop.xlane.xlu0 %1494
        %v1496 = vsel %vm689, %v1492, 0.0
        %1497 = vadd.xlane.f32.xlu0 %v1496
        %v1498 = vpop.xlane.xlu0 %1497
        %v1499 = vmul.f32 %v1495, %v702
        %v1500 = vmul.f32 %v1498, %v702
        %v1501 = vsub.f32 %v1491, %v1499
        %v1502 = vsub.f32 %v1492, %v1500
        %v1503 = vmul.f32 %v1501, %v1501
        %v1504 = vmul.f32 %v1502, %v1502
        %v1505 = vsel %vm689, %v1503, 0.0
        %1506 = vadd.xlane.f32.xlu0 %v1505
        %v1507 = vpop.xlane.xlu0 %1506
        %v1508 = vsel %vm689, %v1504, 0.0
        %1509 = vadd.xlane.f32.xlu0 %v1508
        %v1510 = vpop.xlane.xlu0 %1509
        %v1511 = vmul.f32 %v1507, %v702
        %v1512 = vmul.f32 %v1510, %v702
        %v1513 = vadd.f32 %v1511, 1e-05
        %v1514 = vadd.f32 %v1512, 1e-05
        %v1515 = vrsqrt.pop %v1513
        %v1516 = vmul.f32 %v1515, %v1513
        %v1517 = vmul.f32 %v1516, %v1515
        %v1518 = vmul.f32 0.5, %v1517
        %v1519 = vsub.f32 1.5, %v1518
        %v1520 = vmul.f32 %v1515, %v1519
        %vm1521 = vweird.f32 %v1513
        %vm1522 = vweird.f32 %v1515
        %vm1523 = vmor %vm1521, %vm1522
        %v1524 = vsel %vm1523, %v1515, %v1520
        %v1525 = vrsqrt.pop %v1514
        %v1526 = vmul.f32 %v1525, %v1514
        %v1527 = vmul.f32 %v1526, %v1525
        %v1528 = vmul.f32 0.5, %v1527
        %v1529 = vsub.f32 1.5, %v1528
        %v1530 = vmul.f32 %v1525, %v1529
        %vm1531 = vweird.f32 %v1514
        %vm1532 = vweird.f32 %v1525
        %vm1533 = vmor %vm1531, %vm1532
        %v1534 = vsel %vm1533, %v1525, %v1530
        %v1535 = vmul.f32 %v1501, %v1524
        %v1536 = vmul.f32 %v1502, %v1534
        %v1537 = vperm.slane %v684, 2
        %v1538 = vmul.f32 %v1535, %v1537
        %v1539 = vmul.f32 %v1536, %v1537
        %v1540 = vperm.slane %v684, 3
        %v1541 = vadd.f32 %v1538, %v1540
        %v1542 = vadd.f32 %v1539, %v1540
        %v1543 = vld [vmem:[%s645] sm:$0xff]
        %v1544 = vld [vmem:[%s645 + $0x8] sm:$0xff]
        %v1545 = vld [vmem:[%s645 + $0x10] sm:$0xff]
        %v1546 = vld [vmem:[%s645 + $0x18] sm:$0xff]
        %v1547 = vperm.slane %v687, 0
        %v1549 = vsel %vm689, %v1541, 0
        %v1552 = vsel %vm689, %v1542, 0
        %1554 = vmatpush.msra.mxu0 0.0
        %1555 = vmatpush.msra.mxu0 0.0
        %1556 = vmatpush.msra.mxu0 0.0
        %1557 = vmatpush.msra.mxu0 0.0
        %1558 = vmatpush.msra.mxu0 0.0
        %1559 = vmatpush.msra.mxu0 0.0
        %1560 = vmatpush.msra.mxu0 0.0
        %1561 = vmatpush.msra.mxu0 0.0
        %1562 = vmatpush.msra.mxu0 0.0
        %1563 = vmatpush.msra.mxu0 0.0
        %1564 = vmatpush.msra.mxu0 0.0
        %1565 = vmatpush.msra.mxu0 0.0
        %1566 = vmatpush.msra.mxu0 %v1546
        %1567 = vmatpush.msra.mxu0 %v1545
        %1568 = vmatpush.msra.mxu0 %v1544
        %1569 = vmatpush.msra.mxu0 %v1543
        %1570 = vmatmul.f32.gmra.mxu0 %v1549
        %v1571 = vpop.f32.mrf.mxu0
        %v1572 = vadd.f32 %v1547, %v1571
        %1573 = vmatmul.f32.gmra.mxu0 %v1552
        %v1574 = vpop.f32.mrf.mxu0
        %v1575 = vadd.f32 %v1547, %v1574
        %1576 = vdwg.mxu0
        %1581 = vrot.lane.b32.xlu0 %v1543, 96
        %v1582 = vpop.permute.xlu0 %1581
        %1583 = vrot.lane.b32.xlu0 %v1544, 96
        %v1584 = vpop.permute.xlu0 %1583
        %1585 = vrot.lane.b32.xlu0 %v1545, 96
        %v1586 = vpop.permute.xlu0 %1585
        %1587 = vrot.lane.b32.xlu0 %v1546, 96
        %v1588 = vpop.permute.xlu0 %1587
        %1594 = vrot.lane.b32.xlu0 %v1547, 96
        %v1595 = vpop.permute.xlu0 %1594
        %v1598 = vsel %vm689, %v679, 0
        %v1601 = vsel %vm689, %v680, 0
        %1603 = vmatpush.msra.mxu0 0.0
        %1604 = vmatpush.msra.mxu0 0.0
        %1605 = vmatpush.msra.mxu0 0.0
        %1606 = vmatpush.msra.mxu0 0.0
        %1607 = vmatpush.msra.mxu0 0.0
        %1608 = vmatpush.msra.mxu0 0.0
        %1609 = vmatpush.msra.mxu0 0.0
        %1610 = vmatpush.msra.mxu0 0.0
        %1611 = vmatpush.msra.mxu0 0.0
        %1612 = vmatpush.msra.mxu0 0.0
        %1613 = vmatpush.msra.mxu0 0.0
        %1614 = vmatpush.msra.mxu0 0.0
        %1615 = vmatpush.msra.mxu0 %v1588
        %1616 = vmatpush.msra.mxu0 %v1586
        %1617 = vmatpush.msra.mxu0 %v1584
        %1618 = vmatpush.msra.mxu0 %v1582
        %1619 = vmatmul.f32.gmra.mxu0 %v1598
        %v1620 = vpop.f32.mrf.mxu0
        %v1621 = vadd.f32 %v1595, %v1620
        %1622 = vmatmul.f32.gmra.mxu0 %v1601
        %v1623 = vpop.f32.mrf.mxu0
        %v1624 = vadd.f32 %v1595, %v1623
        %1625 = vdwg.mxu0
        %v1626 = vld [vmem:[%s543] sm:$0xff]
        %v1627 = vld [vmem:[%s543 + $0x8] sm:$0xff]
        %v1628 = vld [vmem:[%s543 + $0x10] sm:$0xff]
        %v1629 = vld [vmem:[%s543 + $0x18] sm:$0xff]
        %v1631 = vsel %vm788, %v1572, 0
        %v1634 = vsel %vm788, %v1621, 0
        %1636 = vmatpush.xpose.msra.mxu0 0.0
        %1637 = vmatpush.xpose.msra.mxu0 0.0
        %1638 = vmatpush.xpose.msra.mxu0 0.0
        %1639 = vmatpush.xpose.msra.mxu0 0.0
        %1640 = vmatpush.xpose.msra.mxu0 0.0
        %1641 = vmatpush.xpose.msra.mxu0 0.0
        %1642 = vmatpush.xpose.msra.mxu0 0.0
        %1643 = vmatpush.xpose.msra.mxu0 0.0
        %1644 = vmatpush.xpose.msra.mxu0 0.0
        %1645 = vmatpush.xpose.msra.mxu0 0.0
        %1646 = vmatpush.xpose.msra.mxu0 0.0
        %1647 = vmatpush.xpose.msra.mxu0 0.0
        %1648 = vmatpush.xpose.msra.mxu0 0.0
        %1649 = vmatpush.xpose.msra.mxu0 0.0
        %1650 = vmatpush.xpose.msra.mxu0 0.0
        %1651 = vmatpush.xpose.msra.mxu0 %v1634
        %1652 = vmatmul.f32.gmra.mxu0 %v1631
        %v1653 = vpop.f32.mrf.mxu0
        %v1654 = vadd.f32 0.0, %v1653
        %1655 = vdwg.mxu0
        %v1657 = vsel %vm788, %v1575, 0
        %v1660 = vsel %vm788, %v1624, 0
        %1662 = vmatpush.xpose.msra.mxu0 0.0
        %1663 = vmatpush.xpose.msra.mxu0 0.0
        %1664 = vmatpush.xpose.msra.mxu0 0.0
        %1665 = vmatpush.xpose.msra.mxu0 0.0
        %1666 = vmatpush.xpose.msra.mxu0 0.0
        %1667 = vmatpush.xpose.msra.mxu0 0.0
        %1668 = vmatpush.xpose.msra.mxu0 0.0
        %1669 = vmatpush.xpose.msra.mxu0 0.0
        %1670 = vmatpush.xpose.msra.mxu0 0.0
        %1671 = vmatpush.xpose.msra.mxu0 0.0
        %1672 = vmatpush.xpose.msra.mxu0 0.0
        %1673 = vmatpush.xpose.msra.mxu0 0.0
        %1674 = vmatpush.xpose.msra.mxu0 0.0
        %1675 = vmatpush.xpose.msra.mxu0 0.0
        %1676 = vmatpush.xpose.msra.mxu0 0.0
        %1677 = vmatpush.xpose.msra.mxu0 %v1660
        %1678 = vmatmul.f32.gmra.mxu0 %v1657
        %v1679 = vpop.f32.mrf.mxu0
        %v1680 = vadd.f32 0.0, %v1679
        %1681 = vdwg.mxu0
        %v1682 = vmul.f32 %v1654, 0.35355338
        %v1683 = vmul.f32 %v1680, 0.35355338
        %v1686 = vperm.slane %v682, 0
        %v1687 = vperm.slane %v683, 0
        %v1690 = vadd.f32 %v1682, %v1686
        %v1691 = vadd.f32 %v1683, %v1687
        %v1692 = vsel %vm788, %v1690, -inf
        %1693 = vmax.xlane.f32.xlu0 %v1692
        %v1694 = vpop.xlane.xlu0 %1693
        %v1695 = vsel %vm788, %v1691, -inf
        %1696 = vmax.xlane.f32.xlu0 %v1695
        %v1697 = vpop.xlane.xlu0 %1696
        %v1698 = vsub.f32 %v1690, %v1694
        %v1699 = vsub.f32 %v1691, %v1697
        %v1700 = vmul.f32 %v1698, 1.442695
        %v1701 = vpow.pop %v1700
        %v1702 = vmul.f32 %v1699, 1.442695
        %v1703 = vpow.pop %v1702
        %v1704 = vsel %vm788, %v1701, 0.0
        %1705 = vadd.xlane.f32.xlu0 %v1704
        %v1706 = vpop.xlane.xlu0 %1705
        %v1707 = vsel %vm788, %v1703, 0.0
        %1708 = vadd.xlane.f32.xlu0 %v1707
        %v1709 = vpop.xlane.xlu0 %1708
        %v1710 = vrcp.pop %v1706
        %v1711 = vmul.f32 %v1706, %v1710
        %v1712 = vsub.f32 1.0, %v1711
        %v1713 = vmul.f32 %v1710, %v1712
        %v1714 = vadd.f32 %v1710, %v1713
        %vm1715 = vweird.f32 %v1706
        %vm1716 = vweird.f32 %v1710
        %vm1717 = vmor %vm1715, %vm1716
        %v1718 = vsel %vm1717, %v1710, %v1714
        %v1719 = vand.u32 2147483647, %v1706
        %vm1720 = vcmp.eq.f32.partialorder %v1719, 8.507059e+37
        %v1721 = vand.u32 %v1706, 2147483648
        %v1722 = vor.u32 1.1754944e-38, %v1721
        %v1723 = vsel %vm1720, %v1722, %v1718
        %v1724 = vrcp.pop %v1709
        %v1725 = vmul.f32 %v1709, %v1724
        %v1726 = vsub.f32 1.0, %v1725
        %v1727 = vmul.f32 %v1724, %v1726
        %v1728 = vadd.f32 %v1724, %v1727
        %vm1729 = vweird.f32 %v1709
        %vm1730 = vweird.f32 %v1724
        %vm1731 = vmor %vm1729, %vm1730
        %v1732 = vsel %vm1731, %v1724, %v1728
        %v1733 = vand.u32 2147483647, %v1709
        %vm1734 = vcmp.eq.f32.partialorder %v1733, 8.507059e+37
        %v1735 = vand.u32 %v1709, 2147483648
        %v1736 = vor.u32 1.1754944e-38, %v1735
        %v1737 = vsel %vm1734, %v1736, %v1732
        %v1738 = vmul.f32 %v1701, %v1723
        %v1739 = vmul.f32 %v1703, %v1737
        %1740 = vrot.lane.b32.xlu0 %v1621, 96
        %v1741 = vpop.permute.xlu0 %1740
        %v1744 = vsel %vm788, %v1738, 0
        %1746 = vmatpush.msra.mxu0 0.0
        %1747 = vmatpush.msra.mxu0 0.0
        %1748 = vmatpush.msra.mxu0 0.0
        %1749 = vmatpush.msra.mxu0 0.0
        %1750 = vmatpush.msra.mxu0 0.0
        %1751 = vmatpush.msra.mxu0 0.0
        %1752 = vmatpush.msra.mxu0 0.0
        %1753 = vmatpush.msra.mxu0 0.0
        %1754 = vmatpush.msra.mxu0 0.0
        %1755 = vmatpush.msra.mxu0 0.0
        %1756 = vmatpush.msra.mxu0 0.0
        %1757 = vmatpush.msra.mxu0 0.0
        %1758 = vmatpush.msra.mxu0 0.0
        %1759 = vmatpush.msra.mxu0 0.0
        %1760 = vmatpush.msra.mxu0 0.0
        %1761 = vmatpush.msra.mxu0 %v1741
        %1762 = vmatmul.f32.gmra.mxu0 %v1744
        %v1763 = vpop.f32.mrf.mxu0
        %v1764 = vadd.f32 0.0, %v1763
        %1765 = vdwg.mxu0
        %1766 = vrot.lane.b32.xlu0 %v1624, 96
        %v1767 = vpop.permute.xlu0 %1766
        %v1770 = vsel %vm788, %v1739, 0
        %1772 = vmatpush.msra.mxu0 0.0
        %1773 = vmatpush.msra.mxu0 0.0
        %1774 = vmatpush.msra.mxu0 0.0
        %1775 = vmatpush.msra.mxu0 0.0
        %1776 = vmatpush.msra.mxu0 0.0
        %1777 = vmatpush.msra.mxu0 0.0
        %1778 = vmatpush.msra.mxu0 0.0
        %1779 = vmatpush.msra.mxu0 0.0
        %1780 = vmatpush.msra.mxu0 0.0
        %1781 = vmatpush.msra.mxu0 0.0
        %1782 = vmatpush.msra.mxu0 0.0
        %1783 = vmatpush.msra.mxu0 0.0
        %1784 = vmatpush.msra.mxu0 0.0
        %1785 = vmatpush.msra.mxu0 0.0
        %1786 = vmatpush.msra.mxu0 0.0
        %1787 = vmatpush.msra.mxu0 %v1767
        %1788 = vmatmul.f32.gmra.mxu0 %v1770
        %v1789 = vpop.f32.mrf.mxu0
        %v1790 = vadd.f32 0.0, %v1789
        %1791 = vdwg.mxu0
        %1792 = vst.msk [vmem:[#allocation2] sm:$0xff] %vm788, %v1764
        %1793 = vst.msk [vmem:[#allocation2 + $0x8] sm:$0xff] %vm788, %v1790
        %1794 = vrot.lane.b32.xlu0 %v1572, 120
        %v1795 = vpop.permute.xlu0 %1794
        %1796 = vrot.lane.b32.xlu0 %v1621, 120
        %v1797 = vpop.permute.xlu0 %1796
        %v1798 = vsel %vm788, %v1795, 0
        %v1800 = vsel %vm788, %v1797, 0
        %1802 = vmatpush.xpose.msra.mxu0 0.0
        %1803 = vmatpush.xpose.msra.mxu0 0.0
        %1804 = vmatpush.xpose.msra.mxu0 0.0
        %1805 = vmatpush.xpose.msra.mxu0 0.0
        %1806 = vmatpush.xpose.msra.mxu0 0.0
        %1807 = vmatpush.xpose.msra.mxu0 0.0
        %1808 = vmatpush.xpose.msra.mxu0 0.0
        %1809 = vmatpush.xpose.msra.mxu0 0.0
        %1810 = vmatpush.xpose.msra.mxu0 0.0
        %1811 = vmatpush.xpose.msra.mxu0 0.0
        %1812 = vmatpush.xpose.msra.mxu0 0.0
        %1813 = vmatpush.xpose.msra.mxu0 0.0
        %1814 = vmatpush.xpose.msra.mxu0 0.0
        %1815 = vmatpush.xpose.msra.mxu0 0.0
        %1816 = vmatpush.xpose.msra.mxu0 0.0
        %1817 = vmatpush.xpose.msra.mxu0 %v1800
        %1818 = vmatmul.f32.gmra.mxu0 %v1798
        %v1819 = vpop.f32.mrf.mxu0
        %v1820 = vadd.f32 0.0, %v1819
        %1821 = vdwg.mxu0
        %1822 = vrot.lane.b32.xlu0 %v1575, 120
        %v1823 = vpop.permute.xlu0 %1822
        %1824 = vrot.lane.b32.xlu0 %v1624, 120
        %v1825 = vpop.permute.xlu0 %1824
        %v1826 = vsel %vm788, %v1823, 0
        %v1828 = vsel %vm788, %v1825, 0
        %1830 = vmatpush.xpose.msra.mxu0 0.0
        %1831 = vmatpush.xpose.msra.mxu0 0.0
        %1832 = vmatpush.xpose.msra.mxu0 0.0
        %1833 = vmatpush.xpose.msra.mxu0 0.0
        %1834 = vmatpush.xpose.msra.mxu0 0.0
        %1835 = vmatpush.xpose.msra.mxu0 0.0
        %1836 = vmatpush.xpose.msra.mxu0 0.0
        %1837 = vmatpush.xpose.msra.mxu0 0.0
        %1838 = vmatpush.xpose.msra.mxu0 0.0
        %1839 = vmatpush.xpose.msra.mxu0 0.0
        %1840 = vmatpush.xpose.msra.mxu0 0.0
        %1841 = vmatpush.xpose.msra.mxu0 0.0
        %1842 = vmatpush.xpose.msra.mxu0 0.0
        %1843 = vmatpush.xpose.msra.mxu0 0.0
        %1844 = vmatpush.xpose.msra.mxu0 0.0
        %1845 = vmatpush.xpose.msra.mxu0 %v1828
        %1846 = vmatmul.f32.gmra.mxu0 %v1826
        %v1847 = vpop.f32.mrf.mxu0
        %v1848 = vadd.f32 0.0, %v1847
        %1849 = vdwg.mxu0
        %v1850 = vmul.f32 %v1820, 0.35355338
        %v1851 = vmul.f32 %v1848, 0.35355338
        %v1852 = vadd.f32 %v1850, %v1686
        %v1853 = vadd.f32 %v1851, %v1687
        %v1854 = vsel %vm788, %v1852, -inf
        %1855 = vmax.xlane.f32.xlu0 %v1854
        %v1856 = vpop.xlane.xlu0 %1855
        %v1857 = vsel %vm788, %v1853, -inf
        %1858 = vmax.xlane.f32.xlu0 %v1857
        %v1859 = vpop.xlane.xlu0 %1858
        %v1860 = vsub.f32 %v1852, %v1856
        %v1861 = vsub.f32 %v1853, %v1859
        %v1862 = vmul.f32 %v1860, 1.442695
        %v1863 = vpow.pop %v1862
        %v1864 = vmul.f32 %v1861, 1.442695
        %v1865 = vpow.pop %v1864
        %v1866 = vsel %vm788, %v1863, 0.0
        %1867 = vadd.xlane.f32.xlu0 %v1866
        %v1868 = vpop.xlane.xlu0 %1867
        %v1869 = vsel %vm788, %v1865, 0.0
        %1870 = vadd.xlane.f32.xlu0 %v1869
        %v1871 = vpop.xlane.xlu0 %1870
        %v1872 = vrcp.pop %v1868
        %v1873 = vmul.f32 %v1868, %v1872
        %v1874 = vsub.f32 1.0, %v1873
        %v1875 = vmul.f32 %v1872, %v1874
        %v1876 = vadd.f32 %v1872, %v1875
        %vm1877 = vweird.f32 %v1868
        %vm1878 = vweird.f32 %v1872
        %vm1879 = vmor %vm1877, %vm1878
        %v1880 = vsel %vm1879, %v1872, %v1876
        %v1881 = vand.u32 2147483647, %v1868
        %vm1882 = vcmp.eq.f32.partialorder %v1881, 8.507059e+37
        %v1883 = vand.u32 %v1868, 2147483648
        %v1884 = vor.u32 1.1754944e-38, %v1883
        %v1885 = vsel %vm1882, %v1884, %v1880
        %v1886 = vrcp.pop %v1871
        %v1887 = vmul.f32 %v1871, %v1886
        %v1888 = vsub.f32 1.0, %v1887
        %v1889 = vmul.f32 %v1886, %v1888
        %v1890 = vadd.f32 %v1886, %v1889
        %vm1891 = vweird.f32 %v1871
        %vm1892 = vweird.f32 %v1886
        %vm1893 = vmor %vm1891, %vm1892
        %v1894 = vsel %vm1893, %v1886, %v1890
        %v1895 = vand.u32 2147483647, %v1871
        %vm1896 = vcmp.eq.f32.partialorder %v1895, 8.507059e+37
        %v1897 = vand.u32 %v1871, 2147483648
        %v1898 = vor.u32 1.1754944e-38, %v1897
        %v1899 = vsel %vm1896, %v1898, %v1894
        %v1900 = vmul.f32 %v1863, %v1885
        %v1901 = vmul.f32 %v1865, %v1899
        %1902 = vrot.lane.b32.xlu0 %v1621, 88
        %v1903 = vpop.permute.xlu0 %1902
        %v1906 = vsel %vm788, %v1900, 0
        %1908 = vmatpush.msra.mxu0 0.0
        %1909 = vmatpush.msra.mxu0 0.0
        %1910 = vmatpush.msra.mxu0 0.0
        %1911 = vmatpush.msra.mxu0 0.0
        %1912 = vmatpush.msra.mxu0 0.0
        %1913 = vmatpush.msra.mxu0 0.0
        %1914 = vmatpush.msra.mxu0 0.0
        %1915 = vmatpush.msra.mxu0 0.0
        %1916 = vmatpush.msra.mxu0 0.0
        %1917 = vmatpush.msra.mxu0 0.0
        %1918 = vmatpush.msra.mxu0 0.0
        %1919 = vmatpush.msra.mxu0 0.0
        %1920 = vmatpush.msra.mxu0 0.0
        %1921 = vmatpush.msra.mxu0 0.0
        %1922 = vmatpush.msra.mxu0 0.0
        %1923 = vmatpush.msra.mxu0 %v1903
        %1924 = vmatmul.f32.gmra.mxu0 %v1906
        %v1925 = vpop.f32.mrf.mxu0
        %v1926 = vadd.f32 0.0, %v1925
        %1927 = vdwg.mxu0
        %1928 = vrot.lane.b32.xlu0 %v1624, 88
        %v1929 = vpop.permute.xlu0 %1928
        %v1932 = vsel %vm788, %v1901, 0
        %1934 = vmatpush.msra.mxu0 0.0
        %1935 = vmatpush.msra.mxu0 0.0
        %1936 = vmatpush.msra.mxu0 0.0
        %1937 = vmatpush.msra.mxu0 0.0
        %1938 = vmatpush.msra.mxu0 0.0
        %1939 = vmatpush.msra.mxu0 0.0
        %1940 = vmatpush.msra.mxu0 0.0
        %1941 = vmatpush.msra.mxu0 0.0
        %1942 = vmatpush.msra.mxu0 0.0
        %1943 = vmatpush.msra.mxu0 0.0
        %1944 = vmatpush.msra.mxu0 0.0
        %1945 = vmatpush.msra.mxu0 0.0
        %1946 = vmatpush.msra.mxu0 0.0
        %1947 = vmatpush.msra.mxu0 0.0
        %1948 = vmatpush.msra.mxu0 0.0
        %1949 = vmatpush.msra.mxu0 %v1929
        %1950 = vmatmul.f32.gmra.mxu0 %v1932
        %v1951 = vpop.f32.mrf.mxu0
        %v1952 = vadd.f32 0.0, %v1951
        %1953 = vdwg.mxu0
        %1956 = vrot.lane.b32.xlu0 %v1926, 8
        %v1957 = vpop.permute.xlu0 %1956
        %1958 = vrot.lane.b32.xlu0 %v1952, 8
        %v1959 = vpop.permute.xlu0 %1958
        %1962 = vst.msk [vmem:[#allocation2] sm:$0xff] %vm1114, %v1957
        %1963 = vst.msk [vmem:[#allocation2 + $0x8] sm:$0xff] %vm1114, %v1959
        %1964 = vrot.lane.b32.xlu0 %v1572, 112
        %v1965 = vpop.permute.xlu0 %1964
        %1966 = vrot.lane.b32.xlu0 %v1621, 112
        %v1967 = vpop.permute.xlu0 %1966
        %v1968 = vsel %vm788, %v1965, 0
        %v1970 = vsel %vm788, %v1967, 0
        %1972 = vmatpush.xpose.msra.mxu0 0.0
        %1973 = vmatpush.xpose.msra.mxu0 0.0
        %1974 = vmatpush.xpose.msra.mxu0 0.0
        %1975 = vmatpush.xpose.msra.mxu0 0.0
        %1976 = vmatpush.xpose.msra.mxu0 0.0
        %1977 = vmatpush.xpose.msra.mxu0 0.0
        %1978 = vmatpush.xpose.msra.mxu0 0.0
        %1979 = vmatpush.xpose.msra.mxu0 0.0
        %1980 = vmatpush.xpose.msra.mxu0 0.0
        %1981 = vmatpush.xpose.msra.mxu0 0.0
        %1982 = vmatpush.xpose.msra.mxu0 0.0
        %1983 = vmatpush.xpose.msra.mxu0 0.0
        %1984 = vmatpush.xpose.msra.mxu0 0.0
        %1985 = vmatpush.xpose.msra.mxu0 0.0
        %1986 = vmatpush.xpose.msra.mxu0 0.0
        %1987 = vmatpush.xpose.msra.mxu0 %v1970
        %1988 = vmatmul.f32.gmra.mxu0 %v1968
        %v1989 = vpop.f32.mrf.mxu0
        %v1990 = vadd.f32 0.0, %v1989
        %1991 = vdwg.mxu0
        %1992 = vrot.lane.b32.xlu0 %v1575, 112
        %v1993 = vpop.permute.xlu0 %1992
        %1994 = vrot.lane.b32.xlu0 %v1624, 112
        %v1995 = vpop.permute.xlu0 %1994
        %v1996 = vsel %vm788, %v1993, 0
        %v1998 = vsel %vm788, %v1995, 0
        %2000 = vmatpush.xpose.msra.mxu0 0.0
        %2001 = vmatpush.xpose.msra.mxu0 0.0
        %2002 = vmatpush.xpose.msra.mxu0 0.0
        %2003 = vmatpush.xpose.msra.mxu0 0.0
        %2004 = vmatpush.xpose.msra.mxu0 0.0
        %2005 = vmatpush.xpose.msra.mxu0 0.0
        %2006 = vmatpush.xpose.msra.mxu0 0.0
        %2007 = vmatpush.xpose.msra.mxu0 0.0
        %2008 = vmatpush.xpose.msra.mxu0 0.0
        %2009 = vmatpush.xpose.msra.mxu0 0.0
        %2010 = vmatpush.xpose.msra.mxu0 0.0
        %2011 = vmatpush.xpose.msra.mxu0 0.0
        %2012 = vmatpush.xpose.msra.mxu0 0.0
        %2013 = vmatpush.xpose.msra.mxu0 0.0
        %2014 = vmatpush.xpose.msra.mxu0 0.0
        %2015 = vmatpush.xpose.msra.mxu0 %v1998
        %2016 = vmatmul.f32.gmra.mxu0 %v1996
        %v2017 = vpop.f32.mrf.mxu0
        %v2018 = vadd.f32 0.0, %v2017
        %2019 = vdwg.mxu0
        %v2020 = vmul.f32 %v1990, 0.35355338
        %v2021 = vmul.f32 %v2018, 0.35355338
        %v2022 = vadd.f32 %v2020, %v1686
        %v2023 = vadd.f32 %v2021, %v1687
        %v2024 = vsel %vm788, %v2022, -inf
        %2025 = vmax.xlane.f32.xlu0 %v2024
        %v2026 = vpop.xlane.xlu0 %2025
        %v2027 = vsel %vm788, %v2023, -inf
        %2028 = vmax.xlane.f32.xlu0 %v2027
        %v2029 = vpop.xlane.xlu0 %2028
        %v2030 = vsub.f32 %v2022, %v2026
        %v2031 = vsub.f32 %v2023, %v2029
        %v2032 = vmul.f32 %v2030, 1.442695
        %v2033 = vpow.pop %v2032
        %v2034 = vmul.f32 %v2031, 1.442695
        %v2035 = vpow.pop %v2034
        %v2036 = vsel %vm788, %v2033, 0.0
        %2037 = vadd.xlane.f32.xlu0 %v2036
        %v2038 = vpop.xlane.xlu0 %2037
        %v2039 = vsel %vm788, %v2035, 0.0
        %2040 = vadd.xlane.f32.xlu0 %v2039
        %v2041 = vpop.xlane.xlu0 %2040
        %v2042 = vrcp.pop %v2038
        %v2043 = vmul.f32 %v2038, %v2042
        %v2044 = vsub.f32 1.0, %v2043
        %v2045 = vmul.f32 %v2042, %v2044
        %v2046 = vadd.f32 %v2042, %v2045
        %vm2047 = vweird.f32 %v2038
        %vm2048 = vweird.f32 %v2042
        %vm2049 = vmor %vm2047, %vm2048
        %v2050 = vsel %vm2049, %v2042, %v2046
        %v2051 = vand.u32 2147483647, %v2038
        %vm2052 = vcmp.eq.f32.partialorder %v2051, 8.507059e+37
        %v2053 = vand.u32 %v2038, 2147483648
        %v2054 = vor.u32 1.1754944e-38, %v2053
        %v2055 = vsel %vm2052, %v2054, %v2050
        %v2056 = vrcp.pop %v2041
        %v2057 = vmul.f32 %v2041, %v2056
        %v2058 = vsub.f32 1.0, %v2057
        %v2059 = vmul.f32 %v2056, %v2058
        %v2060 = vadd.f32 %v2056, %v2059
        %vm2061 = vweird.f32 %v2041
        %vm2062 = vweird.f32 %v2056
        %vm2063 = vmor %vm2061, %vm2062
        %v2064 = vsel %vm2063, %v2056, %v2060
        %v2065 = vand.u32 2147483647, %v2041
        %vm2066 = vcmp.eq.f32.partialorder %v2065, 8.507059e+37
        %v2067 = vand.u32 %v2041, 2147483648
        %v2068 = vor.u32 1.1754944e-38, %v2067
        %v2069 = vsel %vm2066, %v2068, %v2064
        %v2070 = vmul.f32 %v2033, %v2055
        %v2071 = vmul.f32 %v2035, %v2069
        %2072 = vrot.lane.b32.xlu0 %v1621, 80
        %v2073 = vpop.permute.xlu0 %2072
        %v2076 = vsel %vm788, %v2070, 0
        %2078 = vmatpush.msra.mxu0 0.0
        %2079 = vmatpush.msra.mxu0 0.0
        %2080 = vmatpush.msra.mxu0 0.0
        %2081 = vmatpush.msra.mxu0 0.0
        %2082 = vmatpush.msra.mxu0 0.0
        %2083 = vmatpush.msra.mxu0 0.0
        %2084 = vmatpush.msra.mxu0 0.0
        %2085 = vmatpush.msra.mxu0 0.0
        %2086 = vmatpush.msra.mxu0 0.0
        %2087 = vmatpush.msra.mxu0 0.0
        %2088 = vmatpush.msra.mxu0 0.0
        %2089 = vmatpush.msra.mxu0 0.0
        %2090 = vmatpush.msra.mxu0 0.0
        %2091 = vmatpush.msra.mxu0 0.0
        %2092 = vmatpush.msra.mxu0 0.0
        %2093 = vmatpush.msra.mxu0 %v2073
        %2094 = vmatmul.f32.gmra.mxu0 %v2076
        %v2095 = vpop.f32.mrf.mxu0
        %v2096 = vadd.f32 0.0, %v2095
        %2097 = vdwg.mxu0
        %2098 = vrot.lane.b32.xlu0 %v1624, 80
        %v2099 = vpop.permute.xlu0 %2098
        %v2102 = vsel %vm788, %v2071, 0
        %2104 = vmatpush.msra.mxu0 0.0
        %2105 = vmatpush.msra.mxu0 0.0
        %2106 = vmatpush.msra.mxu0 0.0
        %2107 = vmatpush.msra.mxu0 0.0
        %2108 = vmatpush.msra.mxu0 0.0
        %2109 = vmatpush.msra.mxu0 0.0
        %2110 = vmatpush.msra.mxu0 0.0
        %2111 = vmatpush.msra.mxu0 0.0
        %2112 = vmatpush.msra.mxu0 0.0
        %2113 = vmatpush.msra.mxu0 0.0
        %2114 = vmatpush.msra.mxu0 0.0
        %2115 = vmatpush.msra.mxu0 0.0
        %2116 = vmatpush.msra.mxu0 0.0
        %2117 = vmatpush.msra.mxu0 0.0
        %2118 = vmatpush.msra.mxu0 0.0
        %2119 = vmatpush.msra.mxu0 %v2099
        %2120 = vmatmul.f32.gmra.mxu0 %v2102
        %v2121 = vpop.f32.mrf.mxu0
        %v2122 = vadd.f32 0.0, %v2121
        %2123 = vdwg.mxu0
        %2126 = vrot.lane.b32.xlu0 %v2096, 16
        %v2127 = vpop.permute.xlu0 %2126
        %2128 = vrot.lane.b32.xlu0 %v2122, 16
        %v2129 = vpop.permute.xlu0 %2128
        %2132 = vst.msk [vmem:[#allocation2] sm:$0xff] %vm1285, %v2127
        %2133 = vst.msk [vmem:[#allocation2 + $0x8] sm:$0xff] %vm1285, %v2129
        %2134 = vrot.lane.b32.xlu0 %v1572, 104
        %v2135 = vpop.permute.xlu0 %2134
        %2136 = vrot.lane.b32.xlu0 %v1621, 104
        %v2137 = vpop.permute.xlu0 %2136
        %v2138 = vsel %vm788, %v2135, 0
        %v2140 = vsel %vm788, %v2137, 0
        %2142 = vmatpush.xpose.msra.mxu0 0.0
        %2143 = vmatpush.xpose.msra.mxu0 0.0
        %2144 = vmatpush.xpose.msra.mxu0 0.0
        %2145 = vmatpush.xpose.msra.mxu0 0.0
        %2146 = vmatpush.xpose.msra.mxu0 0.0
        %2147 = vmatpush.xpose.msra.mxu0 0.0
        %2148 = vmatpush.xpose.msra.mxu0 0.0
        %2149 = vmatpush.xpose.msra.mxu0 0.0
        %2150 = vmatpush.xpose.msra.mxu0 0.0
        %2151 = vmatpush.xpose.msra.mxu0 0.0
        %2152 = vmatpush.xpose.msra.mxu0 0.0
        %2153 = vmatpush.xpose.msra.mxu0 0.0
        %2154 = vmatpush.xpose.msra.mxu0 0.0
        %2155 = vmatpush.xpose.msra.mxu0 0.0
        %2156 = vmatpush.xpose.msra.mxu0 0.0
        %2157 = vmatpush.xpose.msra.mxu0 %v2140
        %2158 = vmatmul.f32.gmra.mxu0 %v2138
        %v2159 = vpop.f32.mrf.mxu0
        %v2160 = vadd.f32 0.0, %v2159
        %2161 = vdwg.mxu0
        %2162 = vrot.lane.b32.xlu0 %v1575, 104
        %v2163 = vpop.permute.xlu0 %2162
        %2164 = vrot.lane.b32.xlu0 %v1624, 104
        %v2165 = vpop.permute.xlu0 %2164
        %v2166 = vsel %vm788, %v2163, 0
        %v2168 = vsel %vm788, %v2165, 0
        %2170 = vmatpush.xpose.msra.mxu0 0.0
        %2171 = vmatpush.xpose.msra.mxu0 0.0
        %2172 = vmatpush.xpose.msra.mxu0 0.0
        %2173 = vmatpush.xpose.msra.mxu0 0.0
        %2174 = vmatpush.xpose.msra.mxu0 0.0
        %2175 = vmatpush.xpose.msra.mxu0 0.0
        %2176 = vmatpush.xpose.msra.mxu0 0.0
        %2177 = vmatpush.xpose.msra.mxu0 0.0
        %2178 = vmatpush.xpose.msra.mxu0 0.0
        %2179 = vmatpush.xpose.msra.mxu0 0.0
        %2180 = vmatpush.xpose.msra.mxu0 0.0
        %2181 = vmatpush.xpose.msra.mxu0 0.0
        %2182 = vmatpush.xpose.msra.mxu0 0.0
        %2183 = vmatpush.xpose.msra.mxu0 0.0
        %2184 = vmatpush.xpose.msra.mxu0 0.0
        %2185 = vmatpush.xpose.msra.mxu0 %v2168
        %2186 = vmatmul.f32.gmra.mxu0 %v2166
        %v2187 = vpop.f32.mrf.mxu0
        %v2188 = vadd.f32 0.0, %v2187
        %2189 = vdwg.mxu0
        %v2190 = vmul.f32 %v2160, 0.35355338
        %v2191 = vmul.f32 %v2188, 0.35355338
        %v2192 = vadd.f32 %v2190, %v1686
        %v2193 = vadd.f32 %v2191, %v1687
        %v2194 = vsel %vm788, %v2192, -inf
        %2195 = vmax.xlane.f32.xlu0 %v2194
        %v2196 = vpop.xlane.xlu0 %2195
        %v2197 = vsel %vm788, %v2193, -inf
        %2198 = vmax.xlane.f32.xlu0 %v2197
        %v2199 = vpop.xlane.xlu0 %2198
        %v2200 = vsub.f32 %v2192, %v2196
        %v2201 = vsub.f32 %v2193, %v2199
        %v2202 = vmul.f32 %v2200, 1.442695
        %v2203 = vpow.pop %v2202
        %v2204 = vmul.f32 %v2201, 1.442695
        %v2205 = vpow.pop %v2204
        %v2206 = vsel %vm788, %v2203, 0.0
        %2207 = vadd.xlane.f32.xlu0 %v2206
        %v2208 = vpop.xlane.xlu0 %2207
        %v2209 = vsel %vm788, %v2205, 0.0
        %2210 = vadd.xlane.f32.xlu0 %v2209
        %v2211 = vpop.xlane.xlu0 %2210
        %v2212 = vrcp.pop %v2208
        %v2213 = vmul.f32 %v2208, %v2212
        %v2214 = vsub.f32 1.0, %v2213
        %v2215 = vmul.f32 %v2212, %v2214
        %v2216 = vadd.f32 %v2212, %v2215
        %vm2217 = vweird.f32 %v2208
        %vm2218 = vweird.f32 %v2212
        %vm2219 = vmor %vm2217, %vm2218
        %v2220 = vsel %vm2219, %v2212, %v2216
        %v2221 = vand.u32 2147483647, %v2208
        %vm2222 = vcmp.eq.f32.partialorder %v2221, 8.507059e+37
        %v2223 = vand.u32 %v2208, 2147483648
        %v2224 = vor.u32 1.1754944e-38, %v2223
        %v2225 = vsel %vm2222, %v2224, %v2220
        %v2226 = vrcp.pop %v2211
        %v2227 = vmul.f32 %v2211, %v2226
        %v2228 = vsub.f32 1.0, %v2227
        %v2229 = vmul.f32 %v2226, %v2228
        %v2230 = vadd.f32 %v2226, %v2229
        %vm2231 = vweird.f32 %v2211
        %vm2232 = vweird.f32 %v2226
        %vm2233 = vmor %vm2231, %vm2232
        %v2234 = vsel %vm2233, %v2226, %v2230
        %v2235 = vand.u32 2147483647, %v2211
        %vm2236 = vcmp.eq.f32.partialorder %v2235, 8.507059e+37
        %v2237 = vand.u32 %v2211, 2147483648
        %v2238 = vor.u32 1.1754944e-38, %v2237
        %v2239 = vsel %vm2236, %v2238, %v2234
        %v2240 = vmul.f32 %v2203, %v2225
        %v2241 = vmul.f32 %v2205, %v2239
        %2242 = vrot.lane.b32.xlu0 %v1621, 72
        %v2243 = vpop.permute.xlu0 %2242
        %v2246 = vsel %vm788, %v2240, 0
        %2248 = vmatpush.msra.mxu0 0.0
        %2249 = vmatpush.msra.mxu0 0.0
        %2250 = vmatpush.msra.mxu0 0.0
        %2251 = vmatpush.msra.mxu0 0.0
        %2252 = vmatpush.msra.mxu0 0.0
        %2253 = vmatpush.msra.mxu0 0.0
        %2254 = vmatpush.msra.mxu0 0.0
        %2255 = vmatpush.msra.mxu0 0.0
        %2256 = vmatpush.msra.mxu0 0.0
        %2257 = vmatpush.msra.mxu0 0.0
        %2258 = vmatpush.msra.mxu0 0.0
        %2259 = vmatpush.msra.mxu0 0.0
        %2260 = vmatpush.msra.mxu0 0.0
        %2261 = vmatpush.msra.mxu0 0.0
        %2262 = vmatpush.msra.mxu0 0.0
        %2263 = vmatpush.msra.mxu0 %v2243
        %2264 = vmatmul.f32.gmra.mxu0 %v2246
        %v2265 = vpop.f32.mrf.mxu0
        %v2266 = vadd.f32 0.0, %v2265
        %2267 = vdwg.mxu0
        %2268 = vrot.lane.b32.xlu0 %v1624, 72
        %v2269 = vpop.permute.xlu0 %2268
        %v2272 = vsel %vm788, %v2241, 0
        %2274 = vmatpush.msra.mxu0 0.0
        %2275 = vmatpush.msra.mxu0 0.0
        %2276 = vmatpush.msra.mxu0 0.0
        %2277 = vmatpush.msra.mxu0 0.0
        %2278 = vmatpush.msra.mxu0 0.0
        %2279 = vmatpush.msra.mxu0 0.0
        %2280 = vmatpush.msra.mxu0 0.0
        %2281 = vmatpush.msra.mxu0 0.0
        %2282 = vmatpush.msra.mxu0 0.0
        %2283 = vmatpush.msra.mxu0 0.0
        %2284 = vmatpush.msra.mxu0 0.0
        %2285 = vmatpush.msra.mxu0 0.0
        %2286 = vmatpush.msra.mxu0 0.0
        %2287 = vmatpush.msra.mxu0 0.0
        %2288 = vmatpush.msra.mxu0 0.0
        %2289 = vmatpush.msra.mxu0 %v2269
        %2290 = vmatmul.f32.gmra.mxu0 %v2272
        %v2291 = vpop.f32.mrf.mxu0
        %v2292 = vadd.f32 0.0, %v2291
        %2293 = vdwg.mxu0
        %2296 = vrot.lane.b32.xlu0 %v2266, 24
        %v2297 = vpop.permute.xlu0 %2296
        %2298 = vrot.lane.b32.xlu0 %v2292, 24
        %v2299 = vpop.permute.xlu0 %2298
        %2302 = vst.msk [vmem:[#allocation2] sm:$0xff] %vm1456, %v2297
        %2303 = vst.msk [vmem:[#allocation2 + $0x8] sm:$0xff] %vm1456, %v2299
        %v2304 = vld [vmem:[#allocation2] sm:$0xff]
        %v2305 = vld [vmem:[#allocation2 + $0x8] sm:$0xff]
        %v2306 = vperm.slane %v684, 7
        %v2308 = vsel %vm689, %v2304, 0
        %v2311 = vsel %vm689, %v2305, 0
        %2313 = vmatpush.msra.mxu0 0.0
        %2314 = vmatpush.msra.mxu0 0.0
        %2315 = vmatpush.msra.mxu0 0.0
        %2316 = vmatpush.msra.mxu0 0.0
        %2317 = vmatpush.msra.mxu0 0.0
        %2318 = vmatpush.msra.mxu0 0.0
        %2319 = vmatpush.msra.mxu0 0.0
        %2320 = vmatpush.msra.mxu0 0.0
        %2321 = vmatpush.msra.mxu0 0.0
        %2322 = vmatpush.msra.mxu0 0.0
        %2323 = vmatpush.msra.mxu0 0.0
        %2324 = vmatpush.msra.mxu0 0.0
        %2325 = vmatpush.msra.mxu0 %v1629
        %2326 = vmatpush.msra.mxu0 %v1628
        %2327 = vmatpush.msra.mxu0 %v1627
        %2328 = vmatpush.msra.mxu0 %v1626
        %2329 = vmatmul.f32.gmra.mxu0 %v2308
        %v2330 = vpop.f32.mrf.mxu0
        %v2331 = vadd.f32 %v2306, %v2330
        %2332 = vmatmul.f32.gmra.mxu0 %v2311
        %v2333 = vpop.f32.mrf.mxu0
        %v2334 = vadd.f32 %v2306, %v2333
        %2335 = vdwg.mxu0
        %v2336 = vadd.f32 %v1491, %v2331
        %v2337 = vadd.f32 %v1492, %v2334
        %v2338 = vsel %vm689, %v2336, 0.0
        %2339 = vadd.xlane.f32.xlu0 %v2338
        %v2340 = vpop.xlane.xlu0 %2339
        %v2341 = vsel %vm689, %v2337, 0.0
        %2342 = vadd.xlane.f32.xlu0 %v2341
        %v2343 = vpop.xlane.xlu0 %2342
        %v2344 = vmul.f32 %v2340, %v702
        %v2345 = vmul.f32 %v2343, %v702
        %v2346 = vsub.f32 %v2336, %v2344
        %v2347 = vsub.f32 %v2337, %v2345
        %v2348 = vmul.f32 %v2346, %v2346
        %v2349 = vmul.f32 %v2347, %v2347
        %v2350 = vsel %vm689, %v2348, 0.0
        %2351 = vadd.xlane.f32.xlu0 %v2350
        %v2352 = vpop.xlane.xlu0 %2351
        %v2353 = vsel %vm689, %v2349, 0.0
        %2354 = vadd.xlane.f32.xlu0 %v2353
        %v2355 = vpop.xlane.xlu0 %2354
        %v2356 = vmul.f32 %v2352, %v702
        %v2357 = vmul.f32 %v2355, %v702
        %v2358 = vadd.f32 %v2356, 1e-05
        %v2359 = vadd.f32 %v2357, 1e-05
        %v2360 = vrsqrt.pop %v2358
        %v2361 = vmul.f32 %v2360, %v2358
        %v2362 = vmul.f32 %v2361, %v2360
        %v2363 = vmul.f32 0.5, %v2362
        %v2364 = vsub.f32 1.5, %v2363
        %v2365 = vmul.f32 %v2360, %v2364
        %vm2366 = vweird.f32 %v2358
        %vm2367 = vweird.f32 %v2360
        %vm2368 = vmor %vm2366, %vm2367
        %v2369 = vsel %vm2368, %v2360, %v2365
        %v2370 = vrsqrt.pop %v2359
        %v2371 = vmul.f32 %v2370, %v2359
        %v2372 = vmul.f32 %v2371, %v2370
        %v2373 = vmul.f32 0.5, %v2372
        %v2374 = vsub.f32 1.5, %v2373
        %v2375 = vmul.f32 %v2370, %v2374
        %vm2376 = vweird.f32 %v2359
        %vm2377 = vweird.f32 %v2370
        %vm2378 = vmor %vm2376, %vm2377
        %v2379 = vsel %vm2378, %v2370, %v2375
        %v2380 = vmul.f32 %v2346, %v2369
        %v2381 = vmul.f32 %v2347, %v2379
        %v2382 = vperm.slane %v684, 4
        %v2383 = vmul.f32 %v2380, %v2382
        %v2384 = vmul.f32 %v2381, %v2382
        %v2385 = vperm.slane %v684, 5
        %v2386 = vadd.f32 %v2383, %v2385
        %v2387 = vadd.f32 %v2384, %v2385
        %v2388 = vld [vmem:[%s553] sm:$0xff]
        %v2389 = vld [vmem:[%s553 + $0x8] sm:$0xff]
        %v2390 = vld [vmem:[%s553 + $0x10] sm:$0xff]
        %v2391 = vld [vmem:[%s553 + $0x18] sm:$0xff]
        %v2393 = vperm.slane %v688, 0
        %v2396 = vsel %vm689, %v2386, 0
        %v2399 = vsel %vm689, %v2387, 0
        %2401 = vmatpush.msra.mxu0 0.0
        %2402 = vmatpush.msra.mxu0 0.0
        %2403 = vmatpush.msra.mxu0 0.0
        %2404 = vmatpush.msra.mxu0 0.0
        %2405 = vmatpush.msra.mxu0 0.0
        %2406 = vmatpush.msra.mxu0 0.0
        %2407 = vmatpush.msra.mxu0 0.0
        %2408 = vmatpush.msra.mxu0 0.0
        %2409 = vmatpush.msra.mxu0 0.0
        %2410 = vmatpush.msra.mxu0 0.0
        %2411 = vmatpush.msra.mxu0 0.0
        %2412 = vmatpush.msra.mxu0 0.0
        %2413 = vmatpush.msra.mxu0 %v2391
        %2414 = vmatpush.msra.mxu0 %v2390
        %2415 = vmatpush.msra.mxu0 %v2389
        %2416 = vmatpush.msra.mxu0 %v2388
        %2417 = vmatmul.f32.gmra.mxu0 %v2396
        %v2418 = vpop.f32.mrf.mxu0
        %v2419 = vadd.f32 %v2393, %v2418
        %2420 = vmatmul.f32.gmra.mxu0 %v2399
        %v2421 = vpop.f32.mrf.mxu0
        %v2422 = vadd.f32 %v2393, %v2421
        %2423 = vdwg.mxu0
        %v2424 = vmax.f32 %v2419, 0.0
        %v2425 = vmax.f32 %v2422, 0.0
        %v2426 = vld [vmem:[%s650] sm:$0xff]
        %v2427 = vld [vmem:[%s650 + $0x8] sm:$0xff]
        %v2428 = vld [vmem:[%s650 + $0x10] sm:$0xff]
        %v2429 = vld [vmem:[%s650 + $0x18] sm:$0xff]
        %v2430 = vld [vmem:[%s650 + $0x20] sm:$0xff]
        %v2431 = vld [vmem:[%s650 + $0x28] sm:$0xff]
        %v2432 = vld [vmem:[%s650 + $0x30] sm:$0xff]
        %v2433 = vld [vmem:[%s650 + $0x38] sm:$0xff]
        %v2434 = vperm.slane %v685, 0
        %vm2435 = vcmask 523264
        %v2437 = vsel %vm2435, %v2424, 0
        %v2440 = vsel %vm2435, %v2425, 0
        %2442 = vmatpush.msra.mxu0 0.0
        %2443 = vmatpush.msra.mxu0 0.0
        %2444 = vmatpush.msra.mxu0 0.0
        %2445 = vmatpush.msra.mxu0 0.0
        %2446 = vmatpush.msra.mxu0 0.0
        %2447 = vmatpush.msra.mxu0 0.0
        %2448 = vmatpush.msra.mxu0 0.0
        %2449 = vmatpush.msra.mxu0 0.0
        %2450 = vmatpush.msra.mxu0 %v2433
        %2451 = vmatpush.msra.mxu0 %v2432
        %2452 = vmatpush.msra.mxu0 %v2431
        %2453 = vmatpush.msra.mxu0 %v2430
        %2454 = vmatpush.msra.mxu0 %v2429
        %2455 = vmatpush.msra.mxu0 %v2428
        %2456 = vmatpush.msra.mxu0 %v2427
        %2457 = vmatpush.msra.mxu0 %v2426
        %2458 = vmatmul.f32.gmra.mxu0 %v2437
        %v2459 = vpop.f32.mrf.mxu0
        %v2460 = vadd.f32 %v2434, %v2459
        %2461 = vmatmul.f32.gmra.mxu0 %v2440
        %v2462 = vpop.f32.mrf.mxu0
        %v2463 = vadd.f32 %v2434, %v2462
        %2464 = vdwg.mxu0
        %v2465 = vadd.f32 %v2336, %v2460
        %v2466 = vadd.f32 %v2337, %v2463
        %2467 = vst.msk [vmem:[#allocation9] sm:$0xff] %vm689, %v2465
        %2468 = vst.msk [vmem:[#allocation9 + $0x8] sm:$0xff] %vm689, %v2466
        // Predicated region
        $region93: #{tpu_custom_call.1} parent=75 // pred_check
          %p2469 = pneg %p382
        $region94: #{tpu_custom_call.1} parent=75 // pred_check_branch
          %2471 = sbr.rel (%p2469) target = $region96
        $region95: #{tpu_custom_call.1} parent=75 // pred_region
          %2473 = vsyncadd [#allocation5], 0
          %s2474 = sshll.u32 [#allocation9], 4
          %s2475 = int_to_ptr.vmem [resolvable:$true] %s2474
          %s2476 = sshll.u32 %s14, 4
          %s2477 = int_to_ptr.hbm [resolvable:$true] %s2476
          %2482 = dma.vmem_to_hbm [thread:$0]  %s2475, 256, %s2477, [#allocation5], 128, 128, 8
        $region96: #{tpu_custom_call.1} parent=75 // pred_fallthru
          _
        // Predicated region
        $region97: #{tpu_custom_call.1} parent=75 // pred_check
          %p2483 = pneg %p382
        $region98: #{tpu_custom_call.1} parent=75 // pred_check_branch
          %2485 = sbr.rel (%p2483) target = $region100
        $region99: #{tpu_custom_call.1} parent=75 // pred_region
          %2487 = dma.done [#allocation5], 256
        $region100: #{tpu_custom_call.1} parent=75 // pred_fallthru
          _
      $region76: #{tpu_custom_call.1} parent=5 // pred_fallthru
        _
      %p2488 = scmp.le.s32.totalorder 2, %s25
      // Predicated region
      $region101: #{tpu_custom_call.1} parent=5 // pred_check
        %p2489 = pneg %p2488
      $region102: #{tpu_custom_call.1} parent=5 // pred_check_branch
        %2491 = sbr.rel (%p2489) target = $region104
      $region103: #{tpu_custom_call.1} parent=5 // pred_region
        %s2492 = ssub.s32 %s25, 2
      $region104: #{tpu_custom_call.1} parent=5 // pred_fallthru
        _
    $region6: #{tpu_custom_call.1} parent=1 // loop_footer
      %s29 = sadd.s32 1, %s25
    $region7: #{tpu_custom_call.1} parent=1 // loop_footer_branch
      %24 = sbr.rel target = $region3
    $region8: #{tpu_custom_call.1} parent=1 // loop_exit
      _
    %2493 = vsyncpa [#allocation4], 1
    %s2494 = scalar_lea.sflag [#allocation4], 1
    %2495 = vsyncpa %s2494, 1
    %2496 = vsyncpa [#allocation7], 1
    %s2497 = scalar_lea.sflag [#allocation7], 1
    %2498 = vsyncpa %s2497, 1
    %2499 = vsyncpa [#allocation5], 1
    %s2500 = scalar_lea.sflag [#allocation5], 1
    %2501 = vsyncpa %s2500, 1

</llo_original>
